<compile_context>
chip_gen: v7x
topology: tpu7x:2x2x1
jax: 0.10.0
libtpu: 0.0.40
codegen_flags: <defaults>
</compile_context>

<pallas_src>
import jax
import jax.numpy as jnp
from jax.experimental import pallas as pl
from jax.experimental.pallas import tpu as pltpu

# Model / problem sizes (small, consistent with the module's __init__).
H = 32       # hidden_size
F_E = 8      # edge_feats_size
L = 2        # num_layers
N = 8        # nodes per graph
E = 16       # edges per graph
G = 8        # total graphs in the batch
GB = 4       # graphs packed per grid step (block-diagonal group)
LN_EPS = 1e-5


def mpnn_kernel(x_ref, eattr_ref, gather_ref, agg_ref,
                wet_ref, bet_ref,
                w1_ref, b1_ref, w2p_ref, b2m_ref, bconv_ref,
                gamma_ref, beta_ref,
                rexp_ref, texp_ref,
                out_ref):
    x = x_ref[0]                         # [GB*N, H]   stacked node features
    gather = gather_ref[0]               # [GB*E, GB*N] block-diag edge-source one-hot
    aggm = agg_ref[0]                    # [GB*N, GB*E] block-diag 1/deg at edge targets
    rexp = rexp_ref[...]                 # [H, H*H]  R[h, h*H+k] = 1
    texp = texp_ref[...]                 # [H, H*H]  T[k, h*H+k] = 1

    # edge_transform: Linear(edge_feats_size -> hidden_size), shared by layers
    e = jnp.dot(eattr_ref[0], wet_ref[...],
                preferred_element_type=jnp.float32) + bet_ref[...]    # [GB*E, H]

    for l in range(L):
        # edge network first half: Linear(H, H) -> ReLU
        hr = jnp.dot(e, w1_ref[l], preferred_element_type=jnp.float32) + b1_ref[l]
        hr = jnp.maximum(hr, 0.0)                                      # [GB*E, H]

        # gather source-node features per edge (dense block-diag one-hot matmul)
        x_src = jnp.dot(gather, x, preferred_element_type=jnp.float32)  # [GB*E, H]

        # NNConv message, reformulated as a single long-K MXU matmul:
        #   msg[e, o] = sum_h x_src[e,h] * (hr[e] @ w2 + b2)[h*H + o]
        #             = sum_{h,k} (x_src[e,h] * hr[e,k]) * W2p[h*H+k, o]
        #               + (x_src @ B2)[e, o]
        x_rep = jnp.dot(x_src, rexp, preferred_element_type=jnp.float32)   # [GB*E, H*H]
        h_tile = jnp.dot(hr, texp, preferred_element_type=jnp.float32)     # [GB*E, H*H]
        p = x_rep * h_tile                                                 # [GB*E, H*H]
        msg = (jnp.dot(p, w2p_ref[l], preferred_element_type=jnp.float32)
               + jnp.dot(x_src, b2m_ref[l], preferred_element_type=jnp.float32))

        # mean aggregation onto target nodes + NNConv bias
        out = jnp.dot(aggm, msg, preferred_element_type=jnp.float32) + bconv_ref[l]

        # LayerNorm over the hidden dim
        mu = jnp.mean(out, axis=-1, keepdims=True)
        var = jnp.mean((out - mu) ** 2, axis=-1, keepdims=True)
        out = (out - mu) * jax.lax.rsqrt(var + LN_EPS)
        out = out * gamma_ref[l] + beta_ref[l]

        # dropout(p=0, eval) is identity; residual ReLU
        x = jnp.maximum(out, 0.0) + x

    out_ref[0] = x


def make_group_operators(edge_index, gb):
    """Static block-diagonal graph operators, built once per batch (hoisted)."""
    g_total = edge_index.shape[0]
    ng = g_total // gb
    src, dst = edge_index[:, 0, :], edge_index[:, 1, :]                # [G, E]
    src_oh = jax.nn.one_hot(src, N, dtype=jnp.float32)                 # [G, E, N]
    dst_oh = jax.nn.one_hot(dst, N, dtype=jnp.float32)                 # [G, E, N]
    deg = jnp.sum(dst_oh, axis=1)                                      # [G, N]
    agg = jnp.swapaxes(dst_oh, 1, 2) / jnp.clip(deg, 1.0, None)[:, :, None]  # [G, N, E]

    eye = jnp.eye(gb, dtype=jnp.float32)

    def blockdiag(mats):  # [ng, gb, r, c] -> [ng, gb*r, gb*c]
        _, _, r, c = mats.shape
        return jnp.einsum("ij,girc->girjc", eye, mats).reshape(ng, gb * r, gb * c)

    gather_g = blockdiag(src_oh.reshape(ng, gb, E, N))                 # [ng, GB*E, GB*N]
    agg_g = blockdiag(agg.reshape(ng, gb, N, E))                       # [ng, GB*N, GB*E]
    return gather_g, agg_g


def prepare_kernel_params(params):
    """Layout-permute NNConv weights once (hoisted out of the forward)."""
    w2p = (params["w2"].reshape(L, H, H, H)      # [l, k, h, o]
           .transpose(0, 2, 1, 3)                # [l, h, k, o]
           .reshape(L, H * H, H))                # W2p[l, h*H+k, o] = w2[l, k, h*H+o]
    b2m = params["b2"].reshape(L, H, H)          # B2[l, h, o] = b2[l, 0, h*H+o]
    eye = jnp.eye(H, dtype=jnp.float32)
    rexp = jnp.repeat(eye, H, axis=1)            # [H, H*H], R[h, h*H+k] = 1
    texp = jnp.tile(eye, (1, H))                 # [H, H*H], T[k, h*H+k] = 1
    kp = dict(params)
    kp.update(w2p=w2p, b2m=b2m, rexp=rexp, texp=texp)
    return kp


def mpnn_forward(x_groups, eattr_groups, gather_groups, agg_groups, kp):
    ng, rows, _ = x_groups.shape

    def per_group(a):
        nd = a.ndim
        return pl.BlockSpec((1,) + a.shape[1:],
                            lambda g, _nd=nd: (g,) + (0,) * (_nd - 1))

    def shared(a):
        nd = a.ndim
        return pl.BlockSpec(a.shape, lambda g, _nd=nd: (0,) * _nd)

    graph_args = (x_groups, eattr_groups, gather_groups, agg_groups)
    param_args = (kp["wet"], kp["bet"], kp["w1"], kp["b1"],
                  kp["w2p"], kp["b2m"], kp["bconv"], kp["gamma"], kp["beta"],
                  kp["rexp"], kp["texp"])

    return pl.pallas_call(
        mpnn_kernel,
        out_shape=jax.ShapeDtypeStruct((ng, rows, H), jnp.float32),
        grid=(ng,),
        in_specs=[per_group(a) for a in graph_args]
                 + [shared(a) for a in param_args],
        out_specs=pl.BlockSpec((1, rows, H), lambda g: (g, 0, 0)),
        compiler_params=pltpu.CompilerParams(
            dimension_semantics=("parallel",)),
    )(*graph_args, *param_args)


def mpnn_reference(x, edge_attr, edge_index, params):
    """Pure-JAX reference mirroring the PyTorch forward (per graph)."""
    outs = []
    for g in range(x.shape[0]):
        xg = x[g]
        src, dst = edge_index[g, 0], edge_index[g, 1]
        e = edge_attr[g] @ params["wet"] + params["bet"]
        for l in range(L):
            h = jax.nn.relu(e @ params["w1"][l] + params["b1"][l])
            we = (h @ params["w2"][l] + params["b2"][l]).reshape(E, H, H)
            msg = jnp.einsum("eh,eho->eo", xg[src], we)
            summed = jnp.zeros((N, H), jnp.float32).at[dst].add(msg)
            deg = jnp.zeros((N,), jnp.float32).at[dst].add(1.0)
            agg = summed / jnp.clip(deg, 1.0, None)[:, None]
            out = agg + params["bconv"][l]
            mu = out.mean(-1, keepdims=True)
            var = ((out - mu) ** 2).mean(-1, keepdims=True)
            out = (out - mu) / jnp.sqrt(var + LN_EPS)
            out = out * params["gamma"][l] + params["beta"][l]
            xg = jax.nn.relu(out) + xg
        outs.append(xg)
    return jnp.stack(outs, axis=0)


if __name__ == "__main__":
    key = jax.random.PRNGKey(0)
    ks = jax.random.split(key, 12)

    def u(k, shape, fan_in):
        bound = 1.0 / (fan_in ** 0.5)
        return jax.random.uniform(k, shape, jnp.float32, -bound, bound)

    # Deterministic synthetic parameters (weights stored as [in, out]).
    params = dict(
        wet=u(ks[0], (F_E, H), F_E),           # edge_transform weight
        bet=u(ks[1], (1, H), F_E),             # edge_transform bias
        w1=u(ks[2], (L, H, H), H),             # edge network linear 1
        b1=u(ks[3], (L, 1, H), H),
        w2=u(ks[4], (L, H, H * H), H),         # edge network linear 2 (H -> H*H)
        b2=u(ks[5], (L, 1, H * H), H),
        bconv=u(ks[6], (L, 1, H), H),          # NNConv bias
        gamma=jnp.ones((L, 1, H), jnp.float32),    # LayerNorm weight
        beta=jnp.zeros((L, 1, H), jnp.float32),    # LayerNorm bias
    )
    kernel_params = prepare_kernel_params(params)   # hoisted, done once

    # Inputs: a batch of G independent small graphs (PyG-style batching).
    x = jax.random.normal(ks[7], (G, N, H), jnp.float32)
    edge_attr = jax.random.normal(ks[8], (G, E, F_E), jnp.float32)
    edge_index = jax.random.randint(ks[9], (G, 2, E), 0, N, jnp.int32)
    batch_index = jnp.zeros((G, N), jnp.int32)  # only used by 'graph' norm; unused here

    # Hoisted static operators + block-diagonal group packing (GB graphs / step).
    num_groups = G // GB
    gather_g, agg_g = make_group_operators(edge_index, GB)
    x_groups = x.reshape(num_groups, GB * N, H)
    eattr_groups = edge_attr.reshape(num_groups, GB * E, F_E)

    out = mpnn_forward(x_groups, eattr_groups, gather_g, agg_g, kernel_params)
    out = jax.block_until_ready(out)
    out = out.reshape(G, N, H)

    ref = mpnn_reference(x, edge_attr, edge_index, params)
    assert out.shape == (G, N, H) and out.dtype == jnp.float32
    assert jnp.allclose(out, ref, rtol=1e-2, atol=1e-2), float(
        jnp.max(jnp.abs(out - ref)))

    print("KERNEL_OK")
</pallas_src>

<mosaic_0001>
module attributes {stable_mosaic.version = 11 : i64} {
  func.func @mpnn_kernel(%arg0: i32, %arg1: memref<1x32x32xf32, #tpu.memory_space<vmem>>, %arg2: memref<1x64x8xf32, #tpu.memory_space<vmem>>, %arg3: memref<1x64x32xf32, #tpu.memory_space<vmem>>, %arg4: memref<1x32x64xf32, #tpu.memory_space<vmem>>, %arg5: memref<8x32xf32, #tpu.memory_space<vmem>>, %arg6: memref<1x32xf32, #tpu.memory_space<vmem>>, %arg7: memref<2x32x32xf32, #tpu.memory_space<vmem>>, %arg8: memref<2x1x32xf32, #tpu.memory_space<vmem>>, %arg9: memref<2x1024x32xf32, #tpu.memory_space<vmem>>, %arg10: memref<2x32x32xf32, #tpu.memory_space<vmem>>, %arg11: memref<2x1x32xf32, #tpu.memory_space<vmem>>, %arg12: memref<2x1x32xf32, #tpu.memory_space<vmem>>, %arg13: memref<2x1x32xf32, #tpu.memory_space<vmem>>, %arg14: memref<32x1024xf32, #tpu.memory_space<vmem>>, %arg15: memref<32x1024xf32, #tpu.memory_space<vmem>>, %arg16: memref<1x32x32xf32, #tpu.memory_space<vmem>>) attributes {dimension_semantics = [#tpu.dimension_semantics<parallel>], iteration_bounds = array<i64: 2>, scalar_prefetch = 0 : i64, scratch_operands = 0 : i64, tpu.core_type = #tpu.core_type<tc>, window_params = [{transform_indices = @transform_0, window_bounds = array<i64: 1, 32, 32>}, {transform_indices = @transform_1, window_bounds = array<i64: 1, 64, 8>}, {transform_indices = @transform_2, window_bounds = array<i64: 1, 64, 32>}, {transform_indices = @transform_3, window_bounds = array<i64: 1, 32, 64>}, {pipeline_mode = #tpu.pipeline_mode<synchronous>, transform_indices = @transform_4, window_bounds = array<i64: 8, 32>}, {pipeline_mode = #tpu.pipeline_mode<synchronous>, transform_indices = @transform_5, window_bounds = array<i64: 1, 32>}, {pipeline_mode = #tpu.pipeline_mode<synchronous>, transform_indices = @transform_6, window_bounds = array<i64: 2, 32, 32>}, {pipeline_mode = #tpu.pipeline_mode<synchronous>, transform_indices = @transform_7, window_bounds = array<i64: 2, 1, 32>}, {pipeline_mode = #tpu.pipeline_mode<synchronous>, transform_indices = @transform_8, window_bounds = array<i64: 2, 1024, 32>}, {pipeline_mode = #tpu.pipeline_mode<synchronous>, transform_indices = @transform_9, window_bounds = array<i64: 2, 32, 32>}, {pipeline_mode = #tpu.pipeline_mode<synchronous>, transform_indices = @transform_10, window_bounds = array<i64: 2, 1, 32>}, {pipeline_mode = #tpu.pipeline_mode<synchronous>, transform_indices = @transform_11, window_bounds = array<i64: 2, 1, 32>}, {pipeline_mode = #tpu.pipeline_mode<synchronous>, transform_indices = @transform_12, window_bounds = array<i64: 2, 1, 32>}, {pipeline_mode = #tpu.pipeline_mode<synchronous>, transform_indices = @transform_13, window_bounds = array<i64: 32, 1024>}, {pipeline_mode = #tpu.pipeline_mode<synchronous>, transform_indices = @transform_14, window_bounds = array<i64: 32, 1024>}, {transform_indices = @transform_15, window_bounds = array<i64: 1, 32, 32>}]} {
    %c0 = arith.constant 0 : index
    %c0_0 = arith.constant 0 : index
    %c0_1 = arith.constant 0 : index
    %0 = vector.load %arg1[%c0, %c0_0, %c0_1] : memref<1x32x32xf32, #tpu.memory_space<vmem>>, vector<1x32x32xf32>
    %1 = vector.shape_cast %0 : vector<1x32x32xf32> to vector<32x32xf32>
    %c0_2 = arith.constant 0 : index
    %c0_3 = arith.constant 0 : index
    %c0_4 = arith.constant 0 : index
    %2 = vector.load %arg3[%c0_2, %c0_3, %c0_4] : memref<1x64x32xf32, #tpu.memory_space<vmem>>, vector<1x64x32xf32>
    %3 = vector.shape_cast %2 : vector<1x64x32xf32> to vector<64x32xf32>
    %c0_5 = arith.constant 0 : index
    %c0_6 = arith.constant 0 : index
    %c0_7 = arith.constant 0 : index
    %4 = vector.load %arg4[%c0_5, %c0_6, %c0_7] : memref<1x32x64xf32, #tpu.memory_space<vmem>>, vector<1x32x64xf32>
    %5 = vector.shape_cast %4 : vector<1x32x64xf32> to vector<32x64xf32>
    %c0_8 = arith.constant 0 : index
    %c0_9 = arith.constant 0 : index
    %6 = vector.load %arg14[%c0_8, %c0_9] : memref<32x1024xf32, #tpu.memory_space<vmem>>, vector<32x1024xf32>
    %c0_10 = arith.constant 0 : index
    %c0_11 = arith.constant 0 : index
    %7 = vector.load %arg15[%c0_10, %c0_11] : memref<32x1024xf32, #tpu.memory_space<vmem>>, vector<32x1024xf32>
    %c0_12 = arith.constant 0 : index
    %c0_13 = arith.constant 0 : index
    %c0_14 = arith.constant 0 : index
    %8 = vector.load %arg2[%c0_12, %c0_13, %c0_14] : memref<1x64x8xf32, #tpu.memory_space<vmem>>, vector<1x64x8xf32>
    %9 = vector.shape_cast %8 : vector<1x64x8xf32> to vector<64x8xf32>
    %c0_15 = arith.constant 0 : index
    %c0_16 = arith.constant 0 : index
    %10 = vector.load %arg5[%c0_15, %c0_16] : memref<8x32xf32, #tpu.memory_space<vmem>>, vector<8x32xf32>
    %cst = arith.constant dense<0.000000e+00> : vector<64x32xf32>
    %11 = tpu.matmul %9, %10, %cst {dimension_numbers = #tpu.dot_dimension_numbers<[1], [0], [0], [1], [0, 0, 1, 1], [], []>} : vector<64x8xf32>, vector<8x32xf32>, vector<64x32xf32> -> vector<64x32xf32>
    %c0_17 = arith.constant 0 : index
    %c0_18 = arith.constant 0 : index
    %12 = vector.load %arg6[%c0_17, %c0_18] : memref<1x32xf32, #tpu.memory_space<vmem>>, vector<1x32xf32>
    %13 = vector.broadcast %12 : vector<1x32xf32> to vector<64x32xf32>
    %14 = arith.addf %11, %13 : vector<64x32xf32>
    %c0_19 = arith.constant 0 : index
    %c0_20 = arith.constant 0 : index
    %c0_21 = arith.constant 0 : index
    %15 = vector.load %arg7[%c0_19, %c0_20, %c0_21] : memref<2x32x32xf32, #tpu.memory_space<vmem>>, vector<1x32x32xf32>
    %16 = vector.shape_cast %15 : vector<1x32x32xf32> to vector<32x32xf32>
    %cst_22 = arith.constant dense<0.000000e+00> : vector<64x32xf32>
    %17 = tpu.matmul %14, %16, %cst_22 {dimension_numbers = #tpu.dot_dimension_numbers<[1], [0], [0], [1], [0, 0, 1, 1], [], []>} : vector<64x32xf32>, vector<32x32xf32>, vector<64x32xf32> -> vector<64x32xf32>
    %c0_23 = arith.constant 0 : index
    %c0_24 = arith.constant 0 : index
    %c0_25 = arith.constant 0 : index
    %18 = vector.load %arg8[%c0_23, %c0_24, %c0_25] : memref<2x1x32xf32, #tpu.memory_space<vmem>>, vector<1x1x32xf32>
    %19 = vector.shape_cast %18 : vector<1x1x32xf32> to vector<1x32xf32>
    %20 = vector.broadcast %19 : vector<1x32xf32> to vector<64x32xf32>
    %21 = arith.addf %17, %20 : vector<64x32xf32>
    %cst_26 = arith.constant 0.000000e+00 : f32
    %22 = vector.broadcast %cst_26 : f32 to vector<64x32xf32>
    %23 = arith.maximumf %21, %22 : vector<64x32xf32>
    %cst_27 = arith.constant dense<0.000000e+00> : vector<64x32xf32>
    %24 = tpu.matmul %3, %1, %cst_27 {dimension_numbers = #tpu.dot_dimension_numbers<[1], [0], [0], [1], [0, 0, 1, 1], [], []>} : vector<64x32xf32>, vector<32x32xf32>, vector<64x32xf32> -> vector<64x32xf32>
    %cst_28 = arith.constant dense<0.000000e+00> : vector<64x1024xf32>
    %25 = tpu.matmul %24, %6, %cst_28 {dimension_numbers = #tpu.dot_dimension_numbers<[1], [0], [0], [1], [0, 0, 1, 1], [], []>} : vector<64x32xf32>, vector<32x1024xf32>, vector<64x1024xf32> -> vector<64x1024xf32>
    %cst_29 = arith.constant dense<0.000000e+00> : vector<64x1024xf32>
    %26 = tpu.matmul %23, %7, %cst_29 {dimension_numbers = #tpu.dot_dimension_numbers<[1], [0], [0], [1], [0, 0, 1, 1], [], []>} : vector<64x32xf32>, vector<32x1024xf32>, vector<64x1024xf32> -> vector<64x1024xf32>
    %27 = arith.mulf %25, %26 : vector<64x1024xf32>
    %c0_30 = arith.constant 0 : index
    %c0_31 = arith.constant 0 : index
    %c0_32 = arith.constant 0 : index
    %28 = vector.load %arg9[%c0_30, %c0_31, %c0_32] : memref<2x1024x32xf32, #tpu.memory_space<vmem>>, vector<1x1024x32xf32>
    %29 = vector.shape_cast %28 : vector<1x1024x32xf32> to vector<1024x32xf32>
    %cst_33 = arith.constant dense<0.000000e+00> : vector<64x32xf32>
    %30 = tpu.matmul %27, %29, %cst_33 {dimension_numbers = #tpu.dot_dimension_numbers<[1], [0], [0], [1], [0, 0, 1, 1], [], []>} : vector<64x1024xf32>, vector<1024x32xf32>, vector<64x32xf32> -> vector<64x32xf32>
    %c0_34 = arith.constant 0 : index
    %c0_35 = arith.constant 0 : index
    %c0_36 = arith.constant 0 : index
    %31 = vector.load %arg10[%c0_34, %c0_35, %c0_36] : memref<2x32x32xf32, #tpu.memory_space<vmem>>, vector<1x32x32xf32>
    %32 = vector.shape_cast %31 : vector<1x32x32xf32> to vector<32x32xf32>
    %cst_37 = arith.constant dense<0.000000e+00> : vector<64x32xf32>
    %33 = tpu.matmul %24, %32, %cst_37 {dimension_numbers = #tpu.dot_dimension_numbers<[1], [0], [0], [1], [0, 0, 1, 1], [], []>} : vector<64x32xf32>, vector<32x32xf32>, vector<64x32xf32> -> vector<64x32xf32>
    %34 = arith.addf %30, %33 : vector<64x32xf32>
    %cst_38 = arith.constant dense<0.000000e+00> : vector<32x32xf32>
    %35 = tpu.matmul %5, %34, %cst_38 {dimension_numbers = #tpu.dot_dimension_numbers<[1], [0], [0], [1], [0, 0, 1, 1], [], []>} : vector<32x64xf32>, vector<64x32xf32>, vector<32x32xf32> -> vector<32x32xf32>
    %c0_39 = arith.constant 0 : index
    %c0_40 = arith.constant 0 : index
    %c0_41 = arith.constant 0 : index
    %36 = vector.load %arg11[%c0_39, %c0_40, %c0_41] : memref<2x1x32xf32, #tpu.memory_space<vmem>>, vector<1x1x32xf32>
    %37 = vector.shape_cast %36 : vector<1x1x32xf32> to vector<1x32xf32>
    %38 = vector.broadcast %37 : vector<1x32xf32> to vector<32x32xf32>
    %39 = arith.addf %35, %38 : vector<32x32xf32>
    %cst_42 = arith.constant dense<0.000000e+00> : vector<32xf32>
    %40 = vector.multi_reduction <add>, %39, %cst_42 [1] : vector<32x32xf32> to vector<32xf32>
    %41 = vector.shape_cast %40 : vector<32xf32> to vector<32x1xf32>
    %cst_43 = arith.constant 3.200000e+01 : f32
    %42 = vector.broadcast %cst_43 : f32 to vector<32x1xf32>
    %43 = arith.divf %41, %42 : vector<32x1xf32>
    %44 = vector.broadcast %43 : vector<32x1xf32> to vector<32x32xf32>
    %45 = arith.subf %39, %44 : vector<32x32xf32>
    %46 = arith.mulf %45, %45 : vector<32x32xf32>
    %cst_44 = arith.constant dense<0.000000e+00> : vector<32xf32>
    %47 = vector.multi_reduction <add>, %46, %cst_44 [1] : vector<32x32xf32> to vector<32xf32>
    %48 = vector.shape_cast %47 : vector<32xf32> to vector<32x1xf32>
    %cst_45 = arith.constant 3.200000e+01 : f32
    %49 = vector.broadcast %cst_45 : f32 to vector<32x1xf32>
    %50 = arith.divf %48, %49 : vector<32x1xf32>
    %51 = vector.broadcast %43 : vector<32x1xf32> to vector<32x32xf32>
    %52 = arith.subf %39, %51 : vector<32x32xf32>
    %cst_46 = arith.constant 9.99999974E-6 : f32
    %53 = vector.broadcast %cst_46 : f32 to vector<32x1xf32>
    %54 = arith.addf %50, %53 : vector<32x1xf32>
    %55 = math.rsqrt %54 : vector<32x1xf32>
    %56 = vector.broadcast %55 : vector<32x1xf32> to vector<32x32xf32>
    %57 = arith.mulf %52, %56 : vector<32x32xf32>
    %c0_47 = arith.constant 0 : index
    %c0_48 = arith.constant 0 : index
    %c0_49 = arith.constant 0 : index
    %58 = vector.load %arg12[%c0_47, %c0_48, %c0_49] : memref<2x1x32xf32, #tpu.memory_space<vmem>>, vector<1x1x32xf32>
    %59 = vector.shape_cast %58 : vector<1x1x32xf32> to vector<1x32xf32>
    %60 = vector.broadcast %59 : vector<1x32xf32> to vector<32x32xf32>
    %61 = arith.mulf %57, %60 : vector<32x32xf32>
    %c0_50 = arith.constant 0 : index
    %c0_51 = arith.constant 0 : index
    %c0_52 = arith.constant 0 : index
    %62 = vector.load %arg13[%c0_50, %c0_51, %c0_52] : memref<2x1x32xf32, #tpu.memory_space<vmem>>, vector<1x1x32xf32>
    %63 = vector.shape_cast %62 : vector<1x1x32xf32> to vector<1x32xf32>
    %64 = vector.broadcast %63 : vector<1x32xf32> to vector<32x32xf32>
    %65 = arith.addf %61, %64 : vector<32x32xf32>
    %cst_53 = arith.constant 0.000000e+00 : f32
    %66 = vector.broadcast %cst_53 : f32 to vector<32x32xf32>
    %67 = arith.maximumf %65, %66 : vector<32x32xf32>
    %68 = arith.addf %67, %1 : vector<32x32xf32>
    %c1 = arith.constant 1 : index
    %c0_54 = arith.constant 0 : index
    %c0_55 = arith.constant 0 : index
    %69 = vector.load %arg7[%c1, %c0_54, %c0_55] : memref<2x32x32xf32, #tpu.memory_space<vmem>>, vector<1x32x32xf32>
    %70 = vector.shape_cast %69 : vector<1x32x32xf32> to vector<32x32xf32>
    %cst_56 = arith.constant dense<0.000000e+00> : vector<64x32xf32>
    %71 = tpu.matmul %14, %70, %cst_56 {dimension_numbers = #tpu.dot_dimension_numbers<[1], [0], [0], [1], [0, 0, 1, 1], [], []>} : vector<64x32xf32>, vector<32x32xf32>, vector<64x32xf32> -> vector<64x32xf32>
    %c1_57 = arith.constant 1 : index
    %c0_58 = arith.constant 0 : index
    %c0_59 = arith.constant 0 : index
    %72 = vector.load %arg8[%c1_57, %c0_58, %c0_59] : memref<2x1x32xf32, #tpu.memory_space<vmem>>, vector<1x1x32xf32>
    %73 = vector.shape_cast %72 : vector<1x1x32xf32> to vector<1x32xf32>
    %74 = vector.broadcast %73 : vector<1x32xf32> to vector<64x32xf32>
    %75 = arith.addf %71, %74 : vector<64x32xf32>
    %cst_60 = arith.constant 0.000000e+00 : f32
    %76 = vector.broadcast %cst_60 : f32 to vector<64x32xf32>
    %77 = arith.maximumf %75, %76 : vector<64x32xf32>
    %cst_61 = arith.constant dense<0.000000e+00> : vector<64x32xf32>
    %78 = tpu.matmul %3, %68, %cst_61 {dimension_numbers = #tpu.dot_dimension_numbers<[1], [0], [0], [1], [0, 0, 1, 1], [], []>} : vector<64x32xf32>, vector<32x32xf32>, vector<64x32xf32> -> vector<64x32xf32>
    %cst_62 = arith.constant dense<0.000000e+00> : vector<64x1024xf32>
    %79 = tpu.matmul %78, %6, %cst_62 {dimension_numbers = #tpu.dot_dimension_numbers<[1], [0], [0], [1], [0, 0, 1, 1], [], []>} : vector<64x32xf32>, vector<32x1024xf32>, vector<64x1024xf32> -> vector<64x1024xf32>
    %cst_63 = arith.constant dense<0.000000e+00> : vector<64x1024xf32>
    %80 = tpu.matmul %77, %7, %cst_63 {dimension_numbers = #tpu.dot_dimension_numbers<[1], [0], [0], [1], [0, 0, 1, 1], [], []>} : vector<64x32xf32>, vector<32x1024xf32>, vector<64x1024xf32> -> vector<64x1024xf32>
    %81 = arith.mulf %79, %80 : vector<64x1024xf32>
    %c1_64 = arith.constant 1 : index
    %c0_65 = arith.constant 0 : index
    %c0_66 = arith.constant 0 : index
    %82 = vector.load %arg9[%c1_64, %c0_65, %c0_66] : memref<2x1024x32xf32, #tpu.memory_space<vmem>>, vector<1x1024x32xf32>
    %83 = vector.shape_cast %82 : vector<1x1024x32xf32> to vector<1024x32xf32>
    %cst_67 = arith.constant dense<0.000000e+00> : vector<64x32xf32>
    %84 = tpu.matmul %81, %83, %cst_67 {dimension_numbers = #tpu.dot_dimension_numbers<[1], [0], [0], [1], [0, 0, 1, 1], [], []>} : vector<64x1024xf32>, vector<1024x32xf32>, vector<64x32xf32> -> vector<64x32xf32>
    %c1_68 = arith.constant 1 : index
    %c0_69 = arith.constant 0 : index
    %c0_70 = arith.constant 0 : index
    %85 = vector.load %arg10[%c1_68, %c0_69, %c0_70] : memref<2x32x32xf32, #tpu.memory_space<vmem>>, vector<1x32x32xf32>
    %86 = vector.shape_cast %85 : vector<1x32x32xf32> to vector<32x32xf32>
    %cst_71 = arith.constant dense<0.000000e+00> : vector<64x32xf32>
    %87 = tpu.matmul %78, %86, %cst_71 {dimension_numbers = #tpu.dot_dimension_numbers<[1], [0], [0], [1], [0, 0, 1, 1], [], []>} : vector<64x32xf32>, vector<32x32xf32>, vector<64x32xf32> -> vector<64x32xf32>
    %88 = arith.addf %84, %87 : vector<64x32xf32>
    %cst_72 = arith.constant dense<0.000000e+00> : vector<32x32xf32>
    %89 = tpu.matmul %5, %88, %cst_72 {dimension_numbers = #tpu.dot_dimension_numbers<[1], [0], [0], [1], [0, 0, 1, 1], [], []>} : vector<32x64xf32>, vector<64x32xf32>, vector<32x32xf32> -> vector<32x32xf32>
    %c1_73 = arith.constant 1 : index
    %c0_74 = arith.constant 0 : index
    %c0_75 = arith.constant 0 : index
    %90 = vector.load %arg11[%c1_73, %c0_74, %c0_75] : memref<2x1x32xf32, #tpu.memory_space<vmem>>, vector<1x1x32xf32>
    %91 = vector.shape_cast %90 : vector<1x1x32xf32> to vector<1x32xf32>
    %92 = vector.broadcast %91 : vector<1x32xf32> to vector<32x32xf32>
    %93 = arith.addf %89, %92 : vector<32x32xf32>
    %cst_76 = arith.constant dense<0.000000e+00> : vector<32xf32>
    %94 = vector.multi_reduction <add>, %93, %cst_76 [1] : vector<32x32xf32> to vector<32xf32>
    %95 = vector.shape_cast %94 : vector<32xf32> to vector<32x1xf32>
    %cst_77 = arith.constant 3.200000e+01 : f32
    %96 = vector.broadcast %cst_77 : f32 to vector<32x1xf32>
    %97 = arith.divf %95, %96 : vector<32x1xf32>
    %98 = vector.broadcast %97 : vector<32x1xf32> to vector<32x32xf32>
    %99 = arith.subf %93, %98 : vector<32x32xf32>
    %100 = arith.mulf %99, %99 : vector<32x32xf32>
    %cst_78 = arith.constant dense<0.000000e+00> : vector<32xf32>
    %101 = vector.multi_reduction <add>, %100, %cst_78 [1] : vector<32x32xf32> to vector<32xf32>
    %102 = vector.shape_cast %101 : vector<32xf32> to vector<32x1xf32>
    %cst_79 = arith.constant 3.200000e+01 : f32
    %103 = vector.broadcast %cst_79 : f32 to vector<32x1xf32>
    %104 = arith.divf %102, %103 : vector<32x1xf32>
    %105 = vector.broadcast %97 : vector<32x1xf32> to vector<32x32xf32>
    %106 = arith.subf %93, %105 : vector<32x32xf32>
    %cst_80 = arith.constant 9.99999974E-6 : f32
    %107 = vector.broadcast %cst_80 : f32 to vector<32x1xf32>
    %108 = arith.addf %104, %107 : vector<32x1xf32>
    %109 = math.rsqrt %108 : vector<32x1xf32>
    %110 = vector.broadcast %109 : vector<32x1xf32> to vector<32x32xf32>
    %111 = arith.mulf %106, %110 : vector<32x32xf32>
    %c1_81 = arith.constant 1 : index
    %c0_82 = arith.constant 0 : index
    %c0_83 = arith.constant 0 : index
    %112 = vector.load %arg12[%c1_81, %c0_82, %c0_83] : memref<2x1x32xf32, #tpu.memory_space<vmem>>, vector<1x1x32xf32>
    %113 = vector.shape_cast %112 : vector<1x1x32xf32> to vector<1x32xf32>
    %114 = vector.broadcast %113 : vector<1x32xf32> to vector<32x32xf32>
    %115 = arith.mulf %111, %114 : vector<32x32xf32>
    %c1_84 = arith.constant 1 : index
    %c0_85 = arith.constant 0 : index
    %c0_86 = arith.constant 0 : index
    %116 = vector.load %arg13[%c1_84, %c0_85, %c0_86] : memref<2x1x32xf32, #tpu.memory_space<vmem>>, vector<1x1x32xf32>
    %117 = vector.shape_cast %116 : vector<1x1x32xf32> to vector<1x32xf32>
    %118 = vector.broadcast %117 : vector<1x32xf32> to vector<32x32xf32>
    %119 = arith.addf %115, %118 : vector<32x32xf32>
    %cst_87 = arith.constant 0.000000e+00 : f32
    %120 = vector.broadcast %cst_87 : f32 to vector<32x32xf32>
    %121 = arith.maximumf %119, %120 : vector<32x32xf32>
    %122 = arith.addf %121, %68 : vector<32x32xf32>
    %c0_88 = arith.constant 0 : index
    %c0_89 = arith.constant 0 : index
    %c0_90 = arith.constant 0 : index
    %123 = vector.load %arg16[%c0_88, %c0_89, %c0_90] : memref<1x32x32xf32, #tpu.memory_space<vmem>>, vector<1x32x32xf32>
    %124 = vector.shape_cast %123 : vector<1x32x32xf32> to vector<32x32xf32>
    %125 = vector.shape_cast %122 : vector<32x32xf32> to vector<1x32x32xf32>
    tpu.vector_store %arg16[%c0_88, %c0_89, %c0_90], %125 {strides = array<i32>} : memref<1x32x32xf32, #tpu.memory_space<vmem>>, vector<1x32x32xf32>,
    return
  }
  func.func @transform_0(%arg0: i32) -> (i32, i32, i32) {
    %c0_i32 = arith.constant 0 : i32
    %c0_i32_0 = arith.constant 0 : i32
    %c0_i32_1 = arith.constant 0 : i32
    return %arg0, %c0_i32, %c0_i32_0 : i32, i32, i32
  }
  func.func @transform_1(%arg0: i32) -> (i32, i32, i32) {
    %c0_i32 = arith.constant 0 : i32
    %c0_i32_0 = arith.constant 0 : i32
    %c0_i32_1 = arith.constant 0 : i32
    return %arg0, %c0_i32, %c0_i32_0 : i32, i32, i32
  }
  func.func @transform_2(%arg0: i32) -> (i32, i32, i32) {
    %c0_i32 = arith.constant 0 : i32
    %c0_i32_0 = arith.constant 0 : i32
    %c0_i32_1 = arith.constant 0 : i32
    return %arg0, %c0_i32, %c0_i32_0 : i32, i32, i32
  }
  func.func @transform_3(%arg0: i32) -> (i32, i32, i32) {
    %c0_i32 = arith.constant 0 : i32
    %c0_i32_0 = arith.constant 0 : i32
    %c0_i32_1 = arith.constant 0 : i32
    return %arg0, %c0_i32, %c0_i32_0 : i32, i32, i32
  }
  func.func @transform_4(%arg0: i32) -> (i32, i32) {
    %c0_i32 = arith.constant 0 : i32
    %c0_i32_0 = arith.constant 0 : i32
    %c0_i32_1 = arith.constant 0 : i32
    return %c0_i32, %c0_i32_0 : i32, i32
  }
  func.func @transform_5(%arg0: i32) -> (i32, i32) {
    %c0_i32 = arith.constant 0 : i32
    %c0_i32_0 = arith.constant 0 : i32
    %c0_i32_1 = arith.constant 0 : i32
    return %c0_i32, %c0_i32_0 : i32, i32
  }
  func.func @transform_6(%arg0: i32) -> (i32, i32, i32) {
    %c0_i32 = arith.constant 0 : i32
    %c0_i32_0 = arith.constant 0 : i32
    %c0_i32_1 = arith.constant 0 : i32
    %c0_i32_2 = arith.constant 0 : i32
    return %c0_i32, %c0_i32_0, %c0_i32_1 : i32, i32, i32
  }
  func.func @transform_7(%arg0: i32) -> (i32, i32, i32) {
    %c0_i32 = arith.constant 0 : i32
    %c0_i32_0 = arith.constant 0 : i32
    %c0_i32_1 = arith.constant 0 : i32
    %c0_i32_2 = arith.constant 0 : i32
    return %c0_i32, %c0_i32_0, %c0_i32_1 : i32, i32, i32
  }
  func.func @transform_8(%arg0: i32) -> (i32, i32, i32) {
    %c0_i32 = arith.constant 0 : i32
    %c0_i32_0 = arith.constant 0 : i32
    %c0_i32_1 = arith.constant 0 : i32
    %c0_i32_2 = arith.constant 0 : i32
    return %c0_i32, %c0_i32_0, %c0_i32_1 : i32, i32, i32
  }
  func.func @transform_9(%arg0: i32) -> (i32, i32, i32) {
    %c0_i32 = arith.constant 0 : i32
    %c0_i32_0 = arith.constant 0 : i32
    %c0_i32_1 = arith.constant 0 : i32
    %c0_i32_2 = arith.constant 0 : i32
    return %c0_i32, %c0_i32_0, %c0_i32_1 : i32, i32, i32
  }
  func.func @transform_10(%arg0: i32) -> (i32, i32, i32) {
    %c0_i32 = arith.constant 0 : i32
    %c0_i32_0 = arith.constant 0 : i32
    %c0_i32_1 = arith.constant 0 : i32
    %c0_i32_2 = arith.constant 0 : i32
    return %c0_i32, %c0_i32_0, %c0_i32_1 : i32, i32, i32
  }
  func.func @transform_11(%arg0: i32) -> (i32, i32, i32) {
    %c0_i32 = arith.constant 0 : i32
    %c0_i32_0 = arith.constant 0 : i32
    %c0_i32_1 = arith.constant 0 : i32
    %c0_i32_2 = arith.constant 0 : i32
    return %c0_i32, %c0_i32_0, %c0_i32_1 : i32, i32, i32
  }
  func.func @transform_12(%arg0: i32) -> (i32, i32, i32) {
    %c0_i32 = arith.constant 0 : i32
    %c0_i32_0 = arith.constant 0 : i32
    %c0_i32_1 = arith.constant 0 : i32
    %c0_i32_2 = arith.constant 0 : i32
    return %c0_i32, %c0_i32_0, %c0_i32_1 : i32, i32, i32
  }
  func.func @transform_13(%arg0: i32) -> (i32, i32) {
    %c0_i32 = arith.constant 0 : i32
    %c0_i32_0 = arith.constant 0 : i32
    %c0_i32_1 = arith.constant 0 : i32
    return %c0_i32, %c0_i32_0 : i32, i32
  }
  func.func @transform_14(%arg0: i32) -> (i32, i32) {
    %c0_i32 = arith.constant 0 : i32
    %c0_i32_0 = arith.constant 0 : i32
    %c0_i32_1 = arith.constant 0 : i32
    return %c0_i32, %c0_i32_0 : i32, i32
  }
  func.func @transform_15(%arg0: i32) -> (i32, i32, i32) {
    %c0_i32 = arith.constant 0 : i32
    %c0_i32_0 = arith.constant 0 : i32
    %c0_i32_1 = arith.constant 0 : i32
    return %arg0, %c0_i32, %c0_i32_0 : i32, i32, i32
  }
}

</mosaic_0001>

<llo_original>
// kernel: tpu_custom_call.1
$region0: #{tpu_custom_call.1}
  #allocation0 [shape = 'u32[]', space=smem, size = 0x4, offset = 0x4, fixed_abs, tag = 'smem constant byte address 0x4 - core index']
  #allocation1 [shape = 'u32[144,128]{1,0:T(1,128)}', space=vmem, size = 0x12000, scoped, tag = 'internal scratch']
  %s0 = inlined_call_operand.vmem [shape: f32[2,32,32], index: 0, kind: input, shape index: {}]
  %s1 = inlined_call_operand.vmem [shape: f32[2,64,8], index: 1, kind: input, shape index: {}]
  %s2 = inlined_call_operand.vmem [shape: f32[2,64,32], index: 2, kind: input, shape index: {}]
  %s3 = inlined_call_operand.vmem [shape: f32[2,32,64], index: 3, kind: input, shape index: {}]
  %s4 = inlined_call_operand.vmem [shape: f32[8,32], index: 4, kind: input, shape index: {}]
  %s5 = inlined_call_operand.vmem [shape: f32[1,32], index: 5, kind: input, shape index: {}]
  %s6 = inlined_call_operand.vmem [shape: f32[2,32,32], index: 6, kind: input, shape index: {}]
  %s7 = inlined_call_operand.vmem [shape: f32[2,1,32], index: 7, kind: input, shape index: {}]
  %s8 = inlined_call_operand.vmem [shape: f32[2,1024,32], index: 8, kind: input, shape index: {}]
  %s9 = inlined_call_operand.vmem [shape: f32[2,32,32], index: 9, kind: input, shape index: {}]
  %s10 = inlined_call_operand.vmem [shape: f32[2,1,32], index: 10, kind: input, shape index: {}]
  %s11 = inlined_call_operand.vmem [shape: f32[2,1,32], index: 11, kind: input, shape index: {}]
  %s12 = inlined_call_operand.vmem [shape: f32[2,1,32], index: 12, kind: input, shape index: {}]
  %s13 = inlined_call_operand.vmem [shape: f32[32,1024], index: 13, kind: input, shape index: {}]
  %s14 = inlined_call_operand.vmem [shape: f32[32,1024], index: 14, kind: input, shape index: {}]
  %s15 = inlined_call_operand.hbm [shape: f32[2,32,32], index: 15, kind: output, shape index: {}]
  %s16 = sld [smem:[#allocation0]]
  $region93: #{tpu_custom_call.1} parent=0
    _
  %s18 = ssub.s32 1, %s16
  %s19 = scalar_select 0, %s18, %s16
  $region1: #{tpu_custom_call.1} parent=0
    #allocation2 [shape = 'u8[32768]{0}', space=vmem, size = 0x8000, scoped, tag = 'output window, operand 0']
    #allocation3 [shape = 's32[2]{0}', space=sflag, size = 0x8, scoped, tag = 'scoped memory for tpu_custom_call.1']
    %20 = vsyncpa [#allocation3], 0
    %s21 = scalar_lea.sflag [#allocation3], 1
    %22 = vsyncpa %s21, 0
    loop: start=0, step=1, limit=4
    $region2: #{tpu_custom_call.1} parent=1 // loop_pre_header
      _
    $region3: #{tpu_custom_call.1} parent=1 // loop_header
      %s24 = sphi 0, %s28
      %p25 = scmp.ge.s32.totalorder %s24, 4
      %s34 = sphi 0, %s36
      %s37 = sphi 0, %s34
      %s38 = sphi 0, %s37
      %s54 = sphi 0, %s38
      %s60 = sphi 0, %s62
      %s63 = sphi 0, %s60
      %s64 = sphi 0, %s63
      %s80 = sphi 0, %s64
      %s86 = sphi 0, %s88
      %s89 = sphi 0, %s86
      %s90 = sphi 0, %s89
      %s106 = sphi 0, %s90
      %s112 = sphi 0, %s114
      %s115 = sphi 0, %s112
      %s116 = sphi 0, %s115
      %s132 = sphi 0, %s116
      %s136 = sphi 0, %s136
      %s138 = sphi 0, %s136
      %s139 = sphi 0, %s138
      %s153 = sphi 0, %s139
      %s157 = sphi 0, %s157
      %s159 = sphi 0, %s157
      %s160 = sphi 0, %s159
      %s174 = sphi 0, %s160
      %s178 = sphi 0, %s178
      %s180 = sphi 0, %s178
      %s181 = sphi 0, %s180
      %s195 = sphi 0, %s181
      %s199 = sphi 0, %s199
      %s201 = sphi 0, %s199
      %s202 = sphi 0, %s201
      %s216 = sphi 0, %s202
      %s220 = sphi 0, %s220
      %s222 = sphi 0, %s220
      %s223 = sphi 0, %s222
      %s237 = sphi 0, %s223
      %s241 = sphi 0, %s241
      %s243 = sphi 0, %s241
      %s244 = sphi 0, %s243
      %s258 = sphi 0, %s244
      %s262 = sphi 0, %s262
      %s264 = sphi 0, %s262
      %s265 = sphi 0, %s264
      %s279 = sphi 0, %s265
      %s283 = sphi 0, %s283
      %s285 = sphi 0, %s283
      %s286 = sphi 0, %s285
      %s300 = sphi 0, %s286
      %s304 = sphi 0, %s304
      %s306 = sphi 0, %s304
      %s307 = sphi 0, %s306
      %s321 = sphi 0, %s307
      %s325 = sphi 0, %s325
      %s327 = sphi 0, %s325
      %s328 = sphi 0, %s327
      %s342 = sphi 0, %s328
      %s346 = sphi 0, %s346
      %s348 = sphi 0, %s346
      %s349 = sphi 0, %s348
      %s363 = sphi 0, %s349
      %s369 = sphi 0, %s371
      %s372 = sphi 0, %s369
      %s373 = sphi 0, %s372
      %s389 = sphi 0, %s373
    $region4: #{tpu_custom_call.1} parent=1 // loop_header_branch
      %27 = sbr.rel (%p25) target = $region8
    $region5: #{tpu_custom_call.1} parent=1 // loop_body
      %s29 = ssub.s32 %s24, 1
      %s30 = ssub.s32 %s24, 2
      %s31 = sadd.s32 %s24, 1
      %s32 = ssub.s32 %s24, %s31
      %p33 = scmp.eq.s32.totalorder %s32, 0
      %s35 = sadd.s32 %s34, 1
      %s36 = scalar_select %p33, %s34, %s35
      %p39 = pneg %p33
      %p40 = scmp.eq.s32.totalorder %s24, 1
      %p41 = por %p39, %p40
      %p42 = scmp.ne.s32.totalorder %s34, %s37
      %p43 = scmp.eq.s32.totalorder %s24, 0
      %p44 = por %p42, %p43
      %p45 = scmp.ne.s32.totalorder %s34, %s37
      %p46 = scmp.eq.s32.totalorder %s29, 1
      %p47 = por %p45, %p46
      %p48 = scmp.ne.s32.totalorder %s37, %s38
      %p49 = scmp.eq.s32.totalorder %s29, 0
      %p50 = por %p48, %p49
      %p51 = scmp.ne.s32.totalorder %s37, %s38
      %p52 = scmp.eq.s32.totalorder %s30, 1
      %p53 = por %p51, %p52
      %p55 = scmp.ne.s32.totalorder %s38, %s54
      %p56 = scmp.eq.s32.totalorder %s30, 0
      %p57 = por %p55, %p56
      %s58 = ssub.s32 %s24, %s31
      %p59 = scmp.eq.s32.totalorder %s58, 0
      %s61 = sadd.s32 %s60, 1
      %s62 = scalar_select %p59, %s60, %s61
      %p65 = pneg %p59
      %p66 = scmp.eq.s32.totalorder %s24, 1
      %p67 = por %p65, %p66
      %p68 = scmp.ne.s32.totalorder %s60, %s63
      %p69 = scmp.eq.s32.totalorder %s24, 0
      %p70 = por %p68, %p69
      %p71 = scmp.ne.s32.totalorder %s60, %s63
      %p72 = scmp.eq.s32.totalorder %s29, 1
      %p73 = por %p71, %p72
      %p74 = scmp.ne.s32.totalorder %s63, %s64
      %p75 = scmp.eq.s32.totalorder %s29, 0
      %p76 = por %p74, %p75
      %p77 = scmp.ne.s32.totalorder %s63, %s64
      %p78 = scmp.eq.s32.totalorder %s30, 1
      %p79 = por %p77, %p78
      %p81 = scmp.ne.s32.totalorder %s64, %s80
      %p82 = scmp.eq.s32.totalorder %s30, 0
      %p83 = por %p81, %p82
      %s84 = ssub.s32 %s24, %s31
      %p85 = scmp.eq.s32.totalorder %s84, 0
      %s87 = sadd.s32 %s86, 1
      %s88 = scalar_select %p85, %s86, %s87
      %p91 = pneg %p85
      %p92 = scmp.eq.s32.totalorder %s24, 1
      %p93 = por %p91, %p92
      %p94 = scmp.ne.s32.totalorder %s86, %s89
      %p95 = scmp.eq.s32.totalorder %s24, 0
      %p96 = por %p94, %p95
      %p97 = scmp.ne.s32.totalorder %s86, %s89
      %p98 = scmp.eq.s32.totalorder %s29, 1
      %p99 = por %p97, %p98
      %p100 = scmp.ne.s32.totalorder %s89, %s90
      %p101 = scmp.eq.s32.totalorder %s29, 0
      %p102 = por %p100, %p101
      %p103 = scmp.ne.s32.totalorder %s89, %s90
      %p104 = scmp.eq.s32.totalorder %s30, 1
      %p105 = por %p103, %p104
      %p107 = scmp.ne.s32.totalorder %s90, %s106
      %p108 = scmp.eq.s32.totalorder %s30, 0
      %p109 = por %p107, %p108
      %s110 = ssub.s32 %s24, %s31
      %p111 = scmp.eq.s32.totalorder %s110, 0
      %s113 = sadd.s32 %s112, 1
      %s114 = scalar_select %p111, %s112, %s113
      %p117 = pneg %p111
      %p118 = scmp.eq.s32.totalorder %s24, 1
      %p119 = por %p117, %p118
      %p120 = scmp.ne.s32.totalorder %s112, %s115
      %p121 = scmp.eq.s32.totalorder %s24, 0
      %p122 = por %p120, %p121
      %p123 = scmp.ne.s32.totalorder %s112, %s115
      %p124 = scmp.eq.s32.totalorder %s29, 1
      %p125 = por %p123, %p124
      %p126 = scmp.ne.s32.totalorder %s115, %s116
      %p127 = scmp.eq.s32.totalorder %s29, 0
      %p128 = por %p126, %p127
      %p129 = scmp.ne.s32.totalorder %s115, %s116
      %p130 = scmp.eq.s32.totalorder %s30, 1
      %p131 = por %p129, %p130
      %p133 = scmp.ne.s32.totalorder %s116, %s132
      %p134 = scmp.eq.s32.totalorder %s30, 0
      %p135 = por %p133, %p134
      %s137 = sadd.s32 %s136, 1
      %p140 = scmp.eq.s32.totalorder %s24, 1
      %p141 = scmp.ne.s32.totalorder %s136, %s138
      %p142 = scmp.eq.s32.totalorder %s24, 0
      %p143 = por %p141, %p142
      %p144 = scmp.ne.s32.totalorder %s136, %s138
      %p145 = scmp.eq.s32.totalorder %s29, 1
      %p146 = por %p144, %p145
      %p147 = scmp.ne.s32.totalorder %s138, %s139
      %p148 = scmp.eq.s32.totalorder %s29, 0
      %p149 = por %p147, %p148
      %p150 = scmp.ne.s32.totalorder %s138, %s139
      %p151 = scmp.eq.s32.totalorder %s30, 1
      %p152 = por %p150, %p151
      %p154 = scmp.ne.s32.totalorder %s139, %s153
      %p155 = scmp.eq.s32.totalorder %s30, 0
      %p156 = por %p154, %p155
      %s158 = sadd.s32 %s157, 1
      %p161 = scmp.eq.s32.totalorder %s24, 1
      %p162 = scmp.ne.s32.totalorder %s157, %s159
      %p163 = scmp.eq.s32.totalorder %s24, 0
      %p164 = por %p162, %p163
      %p165 = scmp.ne.s32.totalorder %s157, %s159
      %p166 = scmp.eq.s32.totalorder %s29, 1
      %p167 = por %p165, %p166
      %p168 = scmp.ne.s32.totalorder %s159, %s160
      %p169 = scmp.eq.s32.totalorder %s29, 0
      %p170 = por %p168, %p169
      %p171 = scmp.ne.s32.totalorder %s159, %s160
      %p172 = scmp.eq.s32.totalorder %s30, 1
      %p173 = por %p171, %p172
      %p175 = scmp.ne.s32.totalorder %s160, %s174
      %p176 = scmp.eq.s32.totalorder %s30, 0
      %p177 = por %p175, %p176
      %s179 = sadd.s32 %s178, 1
      %p182 = scmp.eq.s32.totalorder %s24, 1
      %p183 = scmp.ne.s32.totalorder %s178, %s180
      %p184 = scmp.eq.s32.totalorder %s24, 0
      %p185 = por %p183, %p184
      %p186 = scmp.ne.s32.totalorder %s178, %s180
      %p187 = scmp.eq.s32.totalorder %s29, 1
      %p188 = por %p186, %p187
      %p189 = scmp.ne.s32.totalorder %s180, %s181
      %p190 = scmp.eq.s32.totalorder %s29, 0
      %p191 = por %p189, %p190
      %p192 = scmp.ne.s32.totalorder %s180, %s181
      %p193 = scmp.eq.s32.totalorder %s30, 1
      %p194 = por %p192, %p193
      %p196 = scmp.ne.s32.totalorder %s181, %s195
      %p197 = scmp.eq.s32.totalorder %s30, 0
      %p198 = por %p196, %p197
      %s200 = sadd.s32 %s199, 1
      %p203 = scmp.eq.s32.totalorder %s24, 1
      %p204 = scmp.ne.s32.totalorder %s199, %s201
      %p205 = scmp.eq.s32.totalorder %s24, 0
      %p206 = por %p204, %p205
      %p207 = scmp.ne.s32.totalorder %s199, %s201
      %p208 = scmp.eq.s32.totalorder %s29, 1
      %p209 = por %p207, %p208
      %p210 = scmp.ne.s32.totalorder %s201, %s202
      %p211 = scmp.eq.s32.totalorder %s29, 0
      %p212 = por %p210, %p211
      %p213 = scmp.ne.s32.totalorder %s201, %s202
      %p214 = scmp.eq.s32.totalorder %s30, 1
      %p215 = por %p213, %p214
      %p217 = scmp.ne.s32.totalorder %s202, %s216
      %p218 = scmp.eq.s32.totalorder %s30, 0
      %p219 = por %p217, %p218
      %s221 = sadd.s32 %s220, 1
      %p224 = scmp.eq.s32.totalorder %s24, 1
      %p225 = scmp.ne.s32.totalorder %s220, %s222
      %p226 = scmp.eq.s32.totalorder %s24, 0
      %p227 = por %p225, %p226
      %p228 = scmp.ne.s32.totalorder %s220, %s222
      %p229 = scmp.eq.s32.totalorder %s29, 1
      %p230 = por %p228, %p229
      %p231 = scmp.ne.s32.totalorder %s222, %s223
      %p232 = scmp.eq.s32.totalorder %s29, 0
      %p233 = por %p231, %p232
      %p234 = scmp.ne.s32.totalorder %s222, %s223
      %p235 = scmp.eq.s32.totalorder %s30, 1
      %p236 = por %p234, %p235
      %p238 = scmp.ne.s32.totalorder %s223, %s237
      %p239 = scmp.eq.s32.totalorder %s30, 0
      %p240 = por %p238, %p239
      %s242 = sadd.s32 %s241, 1
      %p245 = scmp.eq.s32.totalorder %s24, 1
      %p246 = scmp.ne.s32.totalorder %s241, %s243
      %p247 = scmp.eq.s32.totalorder %s24, 0
      %p248 = por %p246, %p247
      %p249 = scmp.ne.s32.totalorder %s241, %s243
      %p250 = scmp.eq.s32.totalorder %s29, 1
      %p251 = por %p249, %p250
      %p252 = scmp.ne.s32.totalorder %s243, %s244
      %p253 = scmp.eq.s32.totalorder %s29, 0
      %p254 = por %p252, %p253
      %p255 = scmp.ne.s32.totalorder %s243, %s244
      %p256 = scmp.eq.s32.totalorder %s30, 1
      %p257 = por %p255, %p256
      %p259 = scmp.ne.s32.totalorder %s244, %s258
      %p260 = scmp.eq.s32.totalorder %s30, 0
      %p261 = por %p259, %p260
      %s263 = sadd.s32 %s262, 1
      %p266 = scmp.eq.s32.totalorder %s24, 1
      %p267 = scmp.ne.s32.totalorder %s262, %s264
      %p268 = scmp.eq.s32.totalorder %s24, 0
      %p269 = por %p267, %p268
      %p270 = scmp.ne.s32.totalorder %s262, %s264
      %p271 = scmp.eq.s32.totalorder %s29, 1
      %p272 = por %p270, %p271
      %p273 = scmp.ne.s32.totalorder %s264, %s265
      %p274 = scmp.eq.s32.totalorder %s29, 0
      %p275 = por %p273, %p274
      %p276 = scmp.ne.s32.totalorder %s264, %s265
      %p277 = scmp.eq.s32.totalorder %s30, 1
      %p278 = por %p276, %p277
      %p280 = scmp.ne.s32.totalorder %s265, %s279
      %p281 = scmp.eq.s32.totalorder %s30, 0
      %p282 = por %p280, %p281
      %s284 = sadd.s32 %s283, 1
      %p287 = scmp.eq.s32.totalorder %s24, 1
      %p288 = scmp.ne.s32.totalorder %s283, %s285
      %p289 = scmp.eq.s32.totalorder %s24, 0
      %p290 = por %p288, %p289
      %p291 = scmp.ne.s32.totalorder %s283, %s285
      %p292 = scmp.eq.s32.totalorder %s29, 1
      %p293 = por %p291, %p292
      %p294 = scmp.ne.s32.totalorder %s285, %s286
      %p295 = scmp.eq.s32.totalorder %s29, 0
      %p296 = por %p294, %p295
      %p297 = scmp.ne.s32.totalorder %s285, %s286
      %p298 = scmp.eq.s32.totalorder %s30, 1
      %p299 = por %p297, %p298
      %p301 = scmp.ne.s32.totalorder %s286, %s300
      %p302 = scmp.eq.s32.totalorder %s30, 0
      %p303 = por %p301, %p302
      %s305 = sadd.s32 %s304, 1
      %p308 = scmp.eq.s32.totalorder %s24, 1
      %p309 = scmp.ne.s32.totalorder %s304, %s306
      %p310 = scmp.eq.s32.totalorder %s24, 0
      %p311 = por %p309, %p310
      %p312 = scmp.ne.s32.totalorder %s304, %s306
      %p313 = scmp.eq.s32.totalorder %s29, 1
      %p314 = por %p312, %p313
      %p315 = scmp.ne.s32.totalorder %s306, %s307
      %p316 = scmp.eq.s32.totalorder %s29, 0
      %p317 = por %p315, %p316
      %p318 = scmp.ne.s32.totalorder %s306, %s307
      %p319 = scmp.eq.s32.totalorder %s30, 1
      %p320 = por %p318, %p319
      %p322 = scmp.ne.s32.totalorder %s307, %s321
      %p323 = scmp.eq.s32.totalorder %s30, 0
      %p324 = por %p322, %p323
      %s326 = sadd.s32 %s325, 1
      %p329 = scmp.eq.s32.totalorder %s24, 1
      %p330 = scmp.ne.s32.totalorder %s325, %s327
      %p331 = scmp.eq.s32.totalorder %s24, 0
      %p332 = por %p330, %p331
      %p333 = scmp.ne.s32.totalorder %s325, %s327
      %p334 = scmp.eq.s32.totalorder %s29, 1
      %p335 = por %p333, %p334
      %p336 = scmp.ne.s32.totalorder %s327, %s328
      %p337 = scmp.eq.s32.totalorder %s29, 0
      %p338 = por %p336, %p337
      %p339 = scmp.ne.s32.totalorder %s327, %s328
      %p340 = scmp.eq.s32.totalorder %s30, 1
      %p341 = por %p339, %p340
      %p343 = scmp.ne.s32.totalorder %s328, %s342
      %p344 = scmp.eq.s32.totalorder %s30, 0
      %p345 = por %p343, %p344
      %s347 = sadd.s32 %s346, 1
      %p350 = scmp.eq.s32.totalorder %s24, 1
      %p351 = scmp.ne.s32.totalorder %s346, %s348
      %p352 = scmp.eq.s32.totalorder %s24, 0
      %p353 = por %p351, %p352
      %p354 = scmp.ne.s32.totalorder %s346, %s348
      %p355 = scmp.eq.s32.totalorder %s29, 1
      %p356 = por %p354, %p355
      %p357 = scmp.ne.s32.totalorder %s348, %s349
      %p358 = scmp.eq.s32.totalorder %s29, 0
      %p359 = por %p357, %p358
      %p360 = scmp.ne.s32.totalorder %s348, %s349
      %p361 = scmp.eq.s32.totalorder %s30, 1
      %p362 = por %p360, %p361
      %p364 = scmp.ne.s32.totalorder %s349, %s363
      %p365 = scmp.eq.s32.totalorder %s30, 0
      %p366 = por %p364, %p365
      %s367 = ssub.s32 %s24, %s31
      %p368 = scmp.eq.s32.totalorder %s367, 0
      %s370 = sadd.s32 %s369, 1
      %s371 = scalar_select %p368, %s369, %s370
      %p374 = pneg %p368
      %p375 = scmp.eq.s32.totalorder %s24, 1
      %p376 = por %p374, %p375
      %p377 = scmp.ne.s32.totalorder %s369, %s372
      %p378 = scmp.eq.s32.totalorder %s24, 0
      %p379 = por %p377, %p378
      %p380 = scmp.ne.s32.totalorder %s369, %s372
      %p381 = scmp.eq.s32.totalorder %s29, 1
      %p382 = por %p380, %p381
      %p383 = scmp.ne.s32.totalorder %s372, %s373
      %p384 = scmp.eq.s32.totalorder %s29, 0
      %p385 = por %p383, %p384
      %p386 = scmp.ne.s32.totalorder %s372, %s373
      %p387 = scmp.eq.s32.totalorder %s30, 1
      %p388 = por %p386, %p387
      %p390 = scmp.ne.s32.totalorder %s373, %s389
      %p391 = scmp.eq.s32.totalorder %s30, 0
      %p392 = por %p390, %p391
      %p393 = scmp.le.s32.totalorder 1, %s24
      %p394 = scmp.lt.s32.totalorder %s24, 3
      %p395 = pnand %p393, %p394
      %p396 = pneg %p395
      // Predicated region
      $region9: #{tpu_custom_call.1} parent=5 // pred_check
        _
      $region10: #{tpu_custom_call.1} parent=5 // pred_check_branch
        %398 = sbr.rel (%p395) target = $region12
      $region11: #{tpu_custom_call.1} parent=5 // pred_region
        %s399 = ssub.s32 %s24, 1
        // Predicated region
        $region13: #{tpu_custom_call.1} parent=11 // pred_check
          %p400 = pneg %p149
        $region14: #{tpu_custom_call.1} parent=11 // pred_check_branch
          %402 = sbr.rel (%p400) target = $region16
        $region15: #{tpu_custom_call.1} parent=11 // pred_region
          _
        $region16: #{tpu_custom_call.1} parent=11 // pred_fallthru
          _
        // Predicated region
        $region17: #{tpu_custom_call.1} parent=11 // pred_check
          %p403 = pneg %p170
        $region18: #{tpu_custom_call.1} parent=11 // pred_check_branch
          %405 = sbr.rel (%p403) target = $region20
        $region19: #{tpu_custom_call.1} parent=11 // pred_region
          _
        $region20: #{tpu_custom_call.1} parent=11 // pred_fallthru
          _
        // Predicated region
        $region21: #{tpu_custom_call.1} parent=11 // pred_check
          %p406 = pneg %p191
        $region22: #{tpu_custom_call.1} parent=11 // pred_check_branch
          %408 = sbr.rel (%p406) target = $region24
        $region23: #{tpu_custom_call.1} parent=11 // pred_region
          _
        $region24: #{tpu_custom_call.1} parent=11 // pred_fallthru
          _
        // Predicated region
        $region25: #{tpu_custom_call.1} parent=11 // pred_check
          %p409 = pneg %p212
        $region26: #{tpu_custom_call.1} parent=11 // pred_check_branch
          %411 = sbr.rel (%p409) target = $region28
        $region27: #{tpu_custom_call.1} parent=11 // pred_region
          _
        $region28: #{tpu_custom_call.1} parent=11 // pred_fallthru
          _
        // Predicated region
        $region29: #{tpu_custom_call.1} parent=11 // pred_check
          %p412 = pneg %p233
        $region30: #{tpu_custom_call.1} parent=11 // pred_check_branch
          %414 = sbr.rel (%p412) target = $region32
        $region31: #{tpu_custom_call.1} parent=11 // pred_region
          _
        $region32: #{tpu_custom_call.1} parent=11 // pred_fallthru
          _
        // Predicated region
        $region33: #{tpu_custom_call.1} parent=11 // pred_check
          %p415 = pneg %p254
        $region34: #{tpu_custom_call.1} parent=11 // pred_check_branch
          %417 = sbr.rel (%p415) target = $region36
        $region35: #{tpu_custom_call.1} parent=11 // pred_region
          _
        $region36: #{tpu_custom_call.1} parent=11 // pred_fallthru
          _
        // Predicated region
        $region37: #{tpu_custom_call.1} parent=11 // pred_check
          %p418 = pneg %p275
        $region38: #{tpu_custom_call.1} parent=11 // pred_check_branch
          %420 = sbr.rel (%p418) target = $region40
        $region39: #{tpu_custom_call.1} parent=11 // pred_region
          _
        $region40: #{tpu_custom_call.1} parent=11 // pred_fallthru
          _
        // Predicated region
        $region41: #{tpu_custom_call.1} parent=11 // pred_check
          %p421 = pneg %p296
        $region42: #{tpu_custom_call.1} parent=11 // pred_check_branch
          %423 = sbr.rel (%p421) target = $region44
        $region43: #{tpu_custom_call.1} parent=11 // pred_region
          _
        $region44: #{tpu_custom_call.1} parent=11 // pred_fallthru
          _
        // Predicated region
        $region45: #{tpu_custom_call.1} parent=11 // pred_check
          %p424 = pneg %p317
        $region46: #{tpu_custom_call.1} parent=11 // pred_check_branch
          %426 = sbr.rel (%p424) target = $region48
        $region47: #{tpu_custom_call.1} parent=11 // pred_region
          _
        $region48: #{tpu_custom_call.1} parent=11 // pred_fallthru
          _
        // Predicated region
        $region49: #{tpu_custom_call.1} parent=11 // pred_check
          %p427 = pneg %p338
        $region50: #{tpu_custom_call.1} parent=11 // pred_check_branch
          %429 = sbr.rel (%p427) target = $region52
        $region51: #{tpu_custom_call.1} parent=11 // pred_region
          _
        $region52: #{tpu_custom_call.1} parent=11 // pred_fallthru
          _
        // Predicated region
        $region53: #{tpu_custom_call.1} parent=11 // pred_check
          %p430 = pneg %p359
        $region54: #{tpu_custom_call.1} parent=11 // pred_check_branch
          %432 = sbr.rel (%p430) target = $region56
        $region55: #{tpu_custom_call.1} parent=11 // pred_region
          _
        $region56: #{tpu_custom_call.1} parent=11 // pred_fallthru
          _
      $region12: #{tpu_custom_call.1} parent=5 // pred_fallthru
        _
      %p433 = scmp.lt.s32.totalorder %s24, 2
      // Predicated region
      $region57: #{tpu_custom_call.1} parent=5 // pred_check
        %p434 = pneg %p433
      $region58: #{tpu_custom_call.1} parent=5 // pred_check_branch
        %436 = sbr.rel (%p434) target = $region60
      $region59: #{tpu_custom_call.1} parent=5 // pred_region
        // Predicated region
        $region61: #{tpu_custom_call.1} parent=59 // pred_check
          %p437 = pneg %p44
        $region62: #{tpu_custom_call.1} parent=59 // pred_check_branch
          %439 = sbr.rel (%p437) target = $region64
        $region63: #{tpu_custom_call.1} parent=59 // pred_region
          %p440 = scmp.lt.s32.totalorder %s24, 1
          %s441 = scalar_select %p440, %s24, 1
          %s442 = smul.addr %s441, 4
          %s443 = smul.addr %s442, 8
          %s444 = scalar_lea.vmem %s0, %s443
        $region64: #{tpu_custom_call.1} parent=59 // pred_fallthru
          _
        // Predicated region
        $region65: #{tpu_custom_call.1} parent=59 // pred_check
          %p445 = pneg %p70
        $region66: #{tpu_custom_call.1} parent=59 // pred_check_branch
          %447 = sbr.rel (%p445) target = $region68
        $region67: #{tpu_custom_call.1} parent=59 // pred_region
          %p448 = scmp.lt.s32.totalorder %s24, 1
          %s449 = scalar_select %p448, %s24, 1
          %s450 = smul.addr %s449, 8
          %s451 = smul.addr %s450, 8
          %s452 = scalar_lea.vmem %s1, %s451
        $region68: #{tpu_custom_call.1} parent=59 // pred_fallthru
          _
        // Predicated region
        $region69: #{tpu_custom_call.1} parent=59 // pred_check
          %p453 = pneg %p96
        $region70: #{tpu_custom_call.1} parent=59 // pred_check_branch
          %455 = sbr.rel (%p453) target = $region72
        $region71: #{tpu_custom_call.1} parent=59 // pred_region
          %p456 = scmp.lt.s32.totalorder %s24, 1
          %s457 = scalar_select %p456, %s24, 1
          %s458 = smul.addr %s457, 8
          %s459 = smul.addr %s458, 8
          %s460 = scalar_lea.vmem %s2, %s459
        $region72: #{tpu_custom_call.1} parent=59 // pred_fallthru
          _
        // Predicated region
        $region73: #{tpu_custom_call.1} parent=59 // pred_check
          %p461 = pneg %p122
        $region74: #{tpu_custom_call.1} parent=59 // pred_check_branch
          %463 = sbr.rel (%p461) target = $region76
        $region75: #{tpu_custom_call.1} parent=59 // pred_region
          %p464 = scmp.lt.s32.totalorder %s24, 1
          %s465 = scalar_select %p464, %s24, 1
          %s466 = smul.addr %s465, 4
          %s467 = smul.addr %s466, 8
          %s468 = scalar_lea.vmem %s3, %s467
        $region76: #{tpu_custom_call.1} parent=59 // pred_fallthru
          _
      $region60: #{tpu_custom_call.1} parent=5 // pred_fallthru
        _
      %p469 = scmp.le.s32.totalorder 1, %s24
      %p470 = scmp.lt.s32.totalorder %s24, 3
      %p471 = pnand %p469, %p470
      %p472 = pneg %p471
      // Predicated region
      $region77: #{tpu_custom_call.1} parent=5 // pred_check
        _
      $region78: #{tpu_custom_call.1} parent=5 // pred_check_branch
        %474 = sbr.rel (%p471) target = $region80
      $region79: #{tpu_custom_call.1} parent=5 // pred_region
        %s475 = ssub.s32 %s24, 1
        %p476 = scmp.lt.s32.totalorder %s29, 1
        %s477 = scalar_select %p476, %s29, 1
        %s478 = smul.addr %s477, 4
        %s479 = smul.addr %s478, 8
        %s480 = scalar_lea.vmem %s0, %s479
        %p481 = pneg %p50
        %p482 = pneg %p47
        %p483 = scmp.lt.s32.totalorder %s29, 1
        %s484 = scalar_select %p483, %s29, 1
        %s485 = smul.addr %s484, 8
        %s486 = smul.addr %s485, 8
        %s487 = scalar_lea.vmem %s1, %s486
        %p488 = pneg %p76
        %p489 = pneg %p73
        %p490 = scmp.lt.s32.totalorder %s29, 1
        %s491 = scalar_select %p490, %s29, 1
        %s492 = smul.addr %s491, 8
        %s493 = smul.addr %s492, 8
        %s494 = scalar_lea.vmem %s2, %s493
        %p495 = pneg %p102
        %p496 = pneg %p99
        %p497 = scmp.lt.s32.totalorder %s29, 1
        %s498 = scalar_select %p497, %s29, 1
        %s499 = smul.addr %s498, 4
        %s500 = smul.addr %s499, 8
        %s501 = scalar_lea.vmem %s3, %s500
        %p502 = pneg %p128
        %p503 = pneg %p125
        %p504 = pneg %p149
        %p505 = pneg %p146
        %p506 = pneg %p170
        %p507 = pneg %p167
        %p508 = pneg %p191
        %p509 = pneg %p188
        %p510 = pneg %p212
        %p511 = pneg %p209
        %p512 = pneg %p233
        %p513 = pneg %p230
        %p514 = pneg %p254
        %p515 = pneg %p251
        %p516 = pneg %p275
        %p517 = pneg %p272
        %p518 = pneg %p296
        %p519 = pneg %p293
        %p520 = pneg %p317
        %p521 = pneg %p314
        %p522 = pneg %p338
        %p523 = pneg %p335
        %p524 = pneg %p359
        %p525 = pneg %p356
        %p526 = pneg %p385
        %p527 = pneg %p382
        %s528 = sand.u32 %s372, 1
        %s529 = scalar_lea.sflag [#allocation3], %s528
        %s530 = sand.u32 %s372, 1
        %s531 = smul.addr %s530, 32
        %s532 = scalar_lea.vmem [#allocation2], %s531
        %p533 = scmp.lt.s32.totalorder %s29, 1
        %s534 = scalar_select %p533, %s29, 1
        %s535 = smul.addr %s534, 4
        %s536 = smul.addr %s535, 8
        %s537 = scalar_lea.vmem %s0, %s536
        %p538 = scmp.lt.s32.totalorder %s29, 1
        %s539 = scalar_select %p538, %s29, 1
        %s540 = smul.addr %s539, 8
        %s541 = smul.addr %s540, 8
        %s542 = scalar_lea.vmem %s1, %s541
        %p543 = scmp.lt.s32.totalorder %s29, 1
        %s544 = scalar_select %p543, %s29, 1
        %s545 = smul.addr %s544, 8
        %s546 = smul.addr %s545, 8
        %s547 = scalar_lea.vmem %s2, %s546
        %p548 = scmp.lt.s32.totalorder %s29, 1
        %s549 = scalar_select %p548, %s29, 1
        %s550 = smul.addr %s549, 4
        %s551 = smul.addr %s550, 8
        %s552 = scalar_lea.vmem %s3, %s551
        %v553 = vld [vmem:[%s537] sm:$0xff]
        %v554 = vld [vmem:[%s537 + $0x8] sm:$0xff]
        %v555 = vld [vmem:[%s537 + $0x10] sm:$0xff]
        %v556 = vld [vmem:[%s537 + $0x18] sm:$0xff]
        %v557 = vld [vmem:[%s547] sm:$0xff]
        %v558 = vld [vmem:[%s547 + $0x8] sm:$0xff]
        %v559 = vld [vmem:[%s547 + $0x10] sm:$0xff]
        %v560 = vld [vmem:[%s547 + $0x18] sm:$0xff]
        %v561 = vld [vmem:[%s547 + $0x20] sm:$0xff]
        %v562 = vld [vmem:[%s547 + $0x28] sm:$0xff]
        %v563 = vld [vmem:[%s547 + $0x30] sm:$0xff]
        %v564 = vld [vmem:[%s547 + $0x38] sm:$0xff]
        %v565 = vld [vmem:[%s552] sm:$0xff]
        %v566 = vld [vmem:[%s552 + $0x8] sm:$0xff]
        %v567 = vld [vmem:[%s552 + $0x10] sm:$0xff]
        %v568 = vld [vmem:[%s552 + $0x18] sm:$0xff]
        %v569 = vld [vmem:[%s13] sm:$0xff]
        %v570 = vld [vmem:[%s13 + $0x8] sm:$0xff]
        %v571 = vld [vmem:[%s13 + $0x10] sm:$0xff]
        %v572 = vld [vmem:[%s13 + $0x18] sm:$0xff]
        %v573 = vld [vmem:[%s13 + $0x20] sm:$0xff]
        %v574 = vld [vmem:[%s13 + $0x28] sm:$0xff]
        %v575 = vld [vmem:[%s13 + $0x30] sm:$0xff]
        %v576 = vld [vmem:[%s13 + $0x38] sm:$0xff]
        %v577 = vld [vmem:[%s13 + $0x40] sm:$0xff]
        %v578 = vld [vmem:[%s13 + $0x48] sm:$0xff]
        %v579 = vld [vmem:[%s13 + $0x50] sm:$0xff]
        %v580 = vld [vmem:[%s13 + $0x58] sm:$0xff]
        %v581 = vld [vmem:[%s13 + $0x60] sm:$0xff]
        %v582 = vld [vmem:[%s13 + $0x68] sm:$0xff]
        %v583 = vld [vmem:[%s13 + $0x70] sm:$0xff]
        %v584 = vld [vmem:[%s13 + $0x78] sm:$0xff]
        %v585 = vld [vmem:[%s13 + $0x80] sm:$0xff]
        %v586 = vld [vmem:[%s13 + $0x88] sm:$0xff]
        %v587 = vld [vmem:[%s13 + $0x90] sm:$0xff]
        %v588 = vld [vmem:[%s13 + $0x98] sm:$0xff]
        %v589 = vld [vmem:[%s13 + $0xa0] sm:$0xff]
        %v590 = vld [vmem:[%s13 + $0xa8] sm:$0xff]
        %v591 = vld [vmem:[%s13 + $0xb0] sm:$0xff]
        %v592 = vld [vmem:[%s13 + $0xb8] sm:$0xff]
        %v593 = vld [vmem:[%s13 + $0xc0] sm:$0xff]
        %v594 = vld [vmem:[%s13 + $0xc8] sm:$0xff]
        %v595 = vld [vmem:[%s13 + $0xd0] sm:$0xff]
        %v596 = vld [vmem:[%s13 + $0xd8] sm:$0xff]
        %v597 = vld [vmem:[%s13 + $0xe0] sm:$0xff]
        %v598 = vld [vmem:[%s13 + $0xe8] sm:$0xff]
        %v599 = vld [vmem:[%s13 + $0xf0] sm:$0xff]
        %v600 = vld [vmem:[%s13 + $0xf8] sm:$0xff]
        %v601 = vld [vmem:[%s14] sm:$0xff]
        %v602 = vld [vmem:[%s14 + $0x8] sm:$0xff]
        %v603 = vld [vmem:[%s14 + $0x10] sm:$0xff]
        %v604 = vld [vmem:[%s14 + $0x18] sm:$0xff]
        %v605 = vld [vmem:[%s14 + $0x20] sm:$0xff]
        %v606 = vld [vmem:[%s14 + $0x28] sm:$0xff]
        %v607 = vld [vmem:[%s14 + $0x30] sm:$0xff]
        %v608 = vld [vmem:[%s14 + $0x38] sm:$0xff]
        %v609 = vld [vmem:[%s14 + $0x40] sm:$0xff]
        %v610 = vld [vmem:[%s14 + $0x48] sm:$0xff]
        %v611 = vld [vmem:[%s14 + $0x50] sm:$0xff]
        %v612 = vld [vmem:[%s14 + $0x58] sm:$0xff]
        %v613 = vld [vmem:[%s14 + $0x60] sm:$0xff]
        %v614 = vld [vmem:[%s14 + $0x68] sm:$0xff]
        %v615 = vld [vmem:[%s14 + $0x70] sm:$0xff]
        %v616 = vld [vmem:[%s14 + $0x78] sm:$0xff]
        %v617 = vld [vmem:[%s14 + $0x80] sm:$0xff]
        %v618 = vld [vmem:[%s14 + $0x88] sm:$0xff]
        %v619 = vld [vmem:[%s14 + $0x90] sm:$0xff]
        %v620 = vld [vmem:[%s14 + $0x98] sm:$0xff]
        %v621 = vld [vmem:[%s14 + $0xa0] sm:$0xff]
        %v622 = vld [vmem:[%s14 + $0xa8] sm:$0xff]
        %v623 = vld [vmem:[%s14 + $0xb0] sm:$0xff]
        %v624 = vld [vmem:[%s14 + $0xb8] sm:$0xff]
        %v625 = vld [vmem:[%s14 + $0xc0] sm:$0xff]
        %v626 = vld [vmem:[%s14 + $0xc8] sm:$0xff]
        %v627 = vld [vmem:[%s14 + $0xd0] sm:$0xff]
        %v628 = vld [vmem:[%s14 + $0xd8] sm:$0xff]
        %v629 = vld [vmem:[%s14 + $0xe0] sm:$0xff]
        %v630 = vld [vmem:[%s14 + $0xe8] sm:$0xff]
        %v631 = vld [vmem:[%s14 + $0xf0] sm:$0xff]
        %v632 = vld [vmem:[%s14 + $0xf8] sm:$0xff]
        %v633 = vld [vmem:[%s542] sm:$0xff]
        %v634 = vld [vmem:[%s542 + $0x8] sm:$0xff]
        %v635 = vld [vmem:[%s542 + $0x10] sm:$0xff]
        %v636 = vld [vmem:[%s542 + $0x18] sm:$0xff]
        %v637 = vld [vmem:[%s542 + $0x20] sm:$0xff]
        %v638 = vld [vmem:[%s542 + $0x28] sm:$0xff]
        %v639 = vld [vmem:[%s542 + $0x30] sm:$0xff]
        %v640 = vld [vmem:[%s542 + $0x38] sm:$0xff]
        %v641 = vld [vmem:[%s4] sm:$0xff]
        %v642 = vld [vmem:[%s5] sm:$0x1]
        %v644 = vlaneseq
        %v645 = vshrl.u32 %v644, 7
        %v646 = vsub.s32 0, %v645
        %v647 = vrot.slane %v642, %v646
        %vm649 = vcmask 64512
        %v651 = vsel %vm649, %v633, 0
        %v654 = vsel %vm649, %v634, 0
        %v657 = vsel %vm649, %v635, 0
        %v660 = vsel %vm649, %v636, 0
        %v663 = vsel %vm649, %v637, 0
        %v666 = vsel %vm649, %v638, 0
        %v669 = vsel %vm649, %v639, 0
        %v672 = vsel %vm649, %v640, 0
        %674 = vmatprep.subr.mxu0 0.0
        %675 = vmatpush1.msra.mxu0 %v641
        %676 = vmatprep.subr.mxu0 0.0
        %677 = vmatpush1.msra.mxu0 0.0
        %678 = vmatprep.subr.mxu0 0.0
        %679 = vmatpush1.msra.mxu0 0.0
        %680 = vmatprep.subr.mxu0 0.0
        %681 = vmatpush1.msra.mxu0 0.0
        %682 = vmatprep.subr.mxu0 0.0
        %683 = vmatpush1.msra.mxu0 0.0
        %684 = vmatprep.subr.mxu0 0.0
        %685 = vmatpush1.msra.mxu0 0.0
        %686 = vmatprep.subr.mxu0 0.0
        %687 = vmatpush1.msra.mxu0 0.0
        %688 = vmatprep.subr.mxu0 0.0
        %689 = vmatpush1.msra.mxu0 0.0
        %690 = vmatprep.subr.mxu0 0.0
        %691 = vmatpush1.msra.mxu0 0.0
        %692 = vmatprep.subr.mxu0 0.0
        %693 = vmatpush1.msra.mxu0 0.0
        %694 = vmatprep.subr.mxu0 0.0
        %695 = vmatpush1.msra.mxu0 0.0
        %696 = vmatprep.subr.mxu0 0.0
        %697 = vmatpush1.msra.mxu0 0.0
        %698 = vmatprep.subr.mxu0 0.0
        %699 = vmatpush1.msra.mxu0 0.0
        %700 = vmatprep.subr.mxu0 0.0
        %701 = vmatpush1.msra.mxu0 0.0
        %702 = vmatprep.subr.mxu0 0.0
        %703 = vmatpush1.msra.mxu0 0.0
        %704 = vmatprep.subr.mxu0 0.0
        %705 = vmatpush1.msra.mxu0 0.0
        %706 = vmatprep.subr.mxu0 0.0
        %707 = vmatpush1.msra.mxu0 0.0
        %708 = vmatprep.subr.mxu0 0.0
        %709 = vmatpush1.msra.mxu0 0.0
        %710 = vmatprep.subr.mxu0 0.0
        %711 = vmatpush1.msra.mxu0 0.0
        %712 = vmatprep.subr.mxu0 0.0
        %713 = vmatpush1.msra.mxu0 0.0
        %714 = vmatprep.subr.mxu0 0.0
        %715 = vmatpush1.msra.mxu0 0.0
        %716 = vmatprep.subr.mxu0 0.0
        %717 = vmatpush1.msra.mxu0 0.0
        %718 = vmatprep.subr.mxu0 0.0
        %719 = vmatpush1.msra.mxu0 0.0
        %720 = vmatprep.subr.mxu0 0.0
        %721 = vmatpush1.msra.mxu0 0.0
        %722 = vmatprep.subr.mxu0 0.0
        %723 = vmatpush1.msra.mxu0 0.0
        %724 = vmatprep.subr.mxu0 0.0
        %725 = vmatpush1.msra.mxu0 0.0
        %726 = vmatprep.subr.mxu0 0.0
        %727 = vmatpush1.msra.mxu0 0.0
        %728 = vmatprep.subr.mxu0 0.0
        %729 = vmatpush1.msra.mxu0 0.0
        %730 = vmatprep.subr.mxu0 0.0
        %731 = vmatpush1.msra.mxu0 0.0
        %732 = vmatprep.subr.mxu0 0.0
        %733 = vmatpush1.msra.mxu0 0.0
        %734 = vmatprep.subr.mxu0 0.0
        %735 = vmatpush1.msra.mxu0 0.0
        %736 = vmatprep.subr.mxu0 0.0
        %737 = vmatpush1.msra.mxu0 0.0
        %738 = vmatprep.mubr.f32.mxu0 0.0
        %739 = vmatmul.mubr.f32.gmra.mrb[0].mxu0 %v651
        %v740 = vpop.f32.mrb[0].mxu0
        %v741 = vadd.f32 %v647, %v740
        %v742 = vpop.f32.mrb[0].mxu0
        %743 = vmatprep.mubr.f32.mxu0 0.0
        %744 = vmatmul.mubr.f32.gmra.mrb[0].mxu0 %v654
        %v745 = vpop.f32.mrb[0].mxu0
        %v746 = vadd.f32 %v647, %v745
        %v747 = vpop.f32.mrb[0].mxu0
        %748 = vmatprep.mubr.f32.mxu0 0.0
        %749 = vmatmul.mubr.f32.gmra.mrb[0].mxu0 %v657
        %v750 = vpop.f32.mrb[0].mxu0
        %v751 = vadd.f32 %v647, %v750
        %v752 = vpop.f32.mrb[0].mxu0
        %753 = vmatprep.mubr.f32.mxu0 0.0
        %754 = vmatmul.mubr.f32.gmra.mrb[0].mxu0 %v660
        %v755 = vpop.f32.mrb[0].mxu0
        %v756 = vadd.f32 %v647, %v755
        %v757 = vpop.f32.mrb[0].mxu0
        %758 = vmatprep.mubr.f32.mxu0 0.0
        %759 = vmatmul.mubr.f32.gmra.mrb[0].mxu0 %v663
        %v760 = vpop.f32.mrb[0].mxu0
        %v761 = vadd.f32 %v647, %v760
        %v762 = vpop.f32.mrb[0].mxu0
        %763 = vmatprep.mubr.f32.mxu0 0.0
        %764 = vmatmul.mubr.f32.gmra.mrb[0].mxu0 %v666
        %v765 = vpop.f32.mrb[0].mxu0
        %v766 = vadd.f32 %v647, %v765
        %v767 = vpop.f32.mrb[0].mxu0
        %768 = vmatprep.mubr.f32.mxu0 0.0
        %769 = vmatmul.mubr.f32.gmra.mrb[0].mxu0 %v669
        %v770 = vpop.f32.mrb[0].mxu0
        %v771 = vadd.f32 %v647, %v770
        %v772 = vpop.f32.mrb[0].mxu0
        %773 = vmatprep.mubr.f32.mxu0 0.0
        %774 = vmatmul.mubr.f32.gmra.mrb[0].mxu0 %v672
        %v775 = vpop.f32.mrb[0].mxu0
        %v776 = vadd.f32 %v647, %v775
        %v777 = vpop.f32.mrb[0].mxu0
        %778 = vdwg.mxu0
        %v779 = vld [vmem:[%s6] sm:$0xff]
        %v780 = vld [vmem:[%s6 + $0x8] sm:$0xff]
        %v781 = vld [vmem:[%s6 + $0x10] sm:$0xff]
        %v782 = vld [vmem:[%s6 + $0x18] sm:$0xff]
        %v783 = vld [vmem:[%s7] sm:$0x1]
        %v785 = vlaneseq
        %v786 = vshrl.u32 %v785, 7
        %v787 = vsub.s32 0, %v786
        %v788 = vrot.slane %v783, %v787
        %vm790 = vcmask 261120
        %v792 = vsel %vm790, %v741, 0
        %v795 = vsel %vm790, %v746, 0
        %v798 = vsel %vm790, %v751, 0
        %v801 = vsel %vm790, %v756, 0
        %v804 = vsel %vm790, %v761, 0
        %v807 = vsel %vm790, %v766, 0
        %v810 = vsel %vm790, %v771, 0
        %v813 = vsel %vm790, %v776, 0
        %815 = vmatprep.subr.mxu0 0.0
        %816 = vmatpush1.msra.mxu0 %v779
        %817 = vmatprep.subr.mxu0 0.0
        %818 = vmatpush1.msra.mxu0 %v780
        %819 = vmatprep.subr.mxu0 0.0
        %820 = vmatpush1.msra.mxu0 %v781
        %821 = vmatprep.subr.mxu0 0.0
        %822 = vmatpush1.msra.mxu0 %v782
        %823 = vmatprep.subr.mxu0 0.0
        %824 = vmatpush1.msra.mxu0 0.0
        %825 = vmatprep.subr.mxu0 0.0
        %826 = vmatpush1.msra.mxu0 0.0
        %827 = vmatprep.subr.mxu0 0.0
        %828 = vmatpush1.msra.mxu0 0.0
        %829 = vmatprep.subr.mxu0 0.0
        %830 = vmatpush1.msra.mxu0 0.0
        %831 = vmatprep.subr.mxu0 0.0
        %832 = vmatpush1.msra.mxu0 0.0
        %833 = vmatprep.subr.mxu0 0.0
        %834 = vmatpush1.msra.mxu0 0.0
        %835 = vmatprep.subr.mxu0 0.0
        %836 = vmatpush1.msra.mxu0 0.0
        %837 = vmatprep.subr.mxu0 0.0
        %838 = vmatpush1.msra.mxu0 0.0
        %839 = vmatprep.subr.mxu0 0.0
        %840 = vmatpush1.msra.mxu0 0.0
        %841 = vmatprep.subr.mxu0 0.0
        %842 = vmatpush1.msra.mxu0 0.0
        %843 = vmatprep.subr.mxu0 0.0
        %844 = vmatpush1.msra.mxu0 0.0
        %845 = vmatprep.subr.mxu0 0.0
        %846 = vmatpush1.msra.mxu0 0.0
        %847 = vmatprep.subr.mxu0 0.0
        %848 = vmatpush1.msra.mxu0 0.0
        %849 = vmatprep.subr.mxu0 0.0
        %850 = vmatpush1.msra.mxu0 0.0
        %851 = vmatprep.subr.mxu0 0.0
        %852 = vmatpush1.msra.mxu0 0.0
        %853 = vmatprep.subr.mxu0 0.0
        %854 = vmatpush1.msra.mxu0 0.0
        %855 = vmatprep.subr.mxu0 0.0
        %856 = vmatpush1.msra.mxu0 0.0
        %857 = vmatprep.subr.mxu0 0.0
        %858 = vmatpush1.msra.mxu0 0.0
        %859 = vmatprep.subr.mxu0 0.0
        %860 = vmatpush1.msra.mxu0 0.0
        %861 = vmatprep.subr.mxu0 0.0
        %862 = vmatpush1.msra.mxu0 0.0
        %863 = vmatprep.subr.mxu0 0.0
        %864 = vmatpush1.msra.mxu0 0.0
        %865 = vmatprep.subr.mxu0 0.0
        %866 = vmatpush1.msra.mxu0 0.0
        %867 = vmatprep.subr.mxu0 0.0
        %868 = vmatpush1.msra.mxu0 0.0
        %869 = vmatprep.subr.mxu0 0.0
        %870 = vmatpush1.msra.mxu0 0.0
        %871 = vmatprep.subr.mxu0 0.0
        %872 = vmatpush1.msra.mxu0 0.0
        %873 = vmatprep.subr.mxu0 0.0
        %874 = vmatpush1.msra.mxu0 0.0
        %875 = vmatprep.subr.mxu0 0.0
        %876 = vmatpush1.msra.mxu0 0.0
        %877 = vmatprep.subr.mxu0 0.0
        %878 = vmatpush1.msra.mxu0 0.0
        %879 = vmatprep.mubr.f32.mxu0 0.0
        %880 = vmatmul.mubr.f32.gmra.mrb[0].mxu0 %v792
        %v881 = vpop.f32.mrb[0].mxu0
        %v882 = vadd.f32 %v788, %v881
        %v883 = vpop.f32.mrb[0].mxu0
        %884 = vmatprep.mubr.f32.mxu0 0.0
        %885 = vmatmul.mubr.f32.gmra.mrb[0].mxu0 %v795
        %v886 = vpop.f32.mrb[0].mxu0
        %v887 = vadd.f32 %v788, %v886
        %v888 = vpop.f32.mrb[0].mxu0
        %889 = vmatprep.mubr.f32.mxu0 0.0
        %890 = vmatmul.mubr.f32.gmra.mrb[0].mxu0 %v798
        %v891 = vpop.f32.mrb[0].mxu0
        %v892 = vadd.f32 %v788, %v891
        %v893 = vpop.f32.mrb[0].mxu0
        %894 = vmatprep.mubr.f32.mxu0 0.0
        %895 = vmatmul.mubr.f32.gmra.mrb[0].mxu0 %v801
        %v896 = vpop.f32.mrb[0].mxu0
        %v897 = vadd.f32 %v788, %v896
        %v898 = vpop.f32.mrb[0].mxu0
        %899 = vmatprep.mubr.f32.mxu0 0.0
        %900 = vmatmul.mubr.f32.gmra.mrb[0].mxu0 %v804
        %v901 = vpop.f32.mrb[0].mxu0
        %v902 = vadd.f32 %v788, %v901
        %v903 = vpop.f32.mrb[0].mxu0
        %904 = vmatprep.mubr.f32.mxu0 0.0
        %905 = vmatmul.mubr.f32.gmra.mrb[0].mxu0 %v807
        %v906 = vpop.f32.mrb[0].mxu0
        %v907 = vadd.f32 %v788, %v906
        %v908 = vpop.f32.mrb[0].mxu0
        %909 = vmatprep.mubr.f32.mxu0 0.0
        %910 = vmatmul.mubr.f32.gmra.mrb[0].mxu0 %v810
        %v911 = vpop.f32.mrb[0].mxu0
        %v912 = vadd.f32 %v788, %v911
        %v913 = vpop.f32.mrb[0].mxu0
        %914 = vmatprep.mubr.f32.mxu0 0.0
        %915 = vmatmul.mubr.f32.gmra.mrb[0].mxu0 %v813
        %v916 = vpop.f32.mrb[0].mxu0
        %v917 = vadd.f32 %v788, %v916
        %v918 = vpop.f32.mrb[0].mxu0
        %919 = vdwg.mxu0
        %v920 = vmax.f32 %v882, 0.0
        %v921 = vmax.f32 %v887, 0.0
        %v922 = vmax.f32 %v892, 0.0
        %v923 = vmax.f32 %v897, 0.0
        %v924 = vmax.f32 %v902, 0.0
        %v925 = vmax.f32 %v907, 0.0
        %v926 = vmax.f32 %v912, 0.0
        %v927 = vmax.f32 %v917, 0.0
        %v929 = vsel %vm790, %v557, 0
        %v932 = vsel %vm790, %v558, 0
        %v935 = vsel %vm790, %v559, 0
        %v938 = vsel %vm790, %v560, 0
        %v941 = vsel %vm790, %v561, 0
        %v944 = vsel %vm790, %v562, 0
        %v947 = vsel %vm790, %v563, 0
        %v950 = vsel %vm790, %v564, 0
        %952 = vmatprep.subr.mxu0 0.0
        %953 = vmatpush1.msra.mxu0 %v553
        %954 = vmatprep.subr.mxu0 0.0
        %955 = vmatpush1.msra.mxu0 %v554
        %956 = vmatprep.subr.mxu0 0.0
        %957 = vmatpush1.msra.mxu0 %v555
        %958 = vmatprep.subr.mxu0 0.0
        %959 = vmatpush1.msra.mxu0 %v556
        %960 = vmatprep.subr.mxu0 0.0
        %961 = vmatpush1.msra.mxu0 0.0
        %962 = vmatprep.subr.mxu0 0.0
        %963 = vmatpush1.msra.mxu0 0.0
        %964 = vmatprep.subr.mxu0 0.0
        %965 = vmatpush1.msra.mxu0 0.0
        %966 = vmatprep.subr.mxu0 0.0
        %967 = vmatpush1.msra.mxu0 0.0
        %968 = vmatprep.subr.mxu0 0.0
        %969 = vmatpush1.msra.mxu0 0.0
        %970 = vmatprep.subr.mxu0 0.0
        %971 = vmatpush1.msra.mxu0 0.0
        %972 = vmatprep.subr.mxu0 0.0
        %973 = vmatpush1.msra.mxu0 0.0
        %974 = vmatprep.subr.mxu0 0.0
        %975 = vmatpush1.msra.mxu0 0.0
        %976 = vmatprep.subr.mxu0 0.0
        %977 = vmatpush1.msra.mxu0 0.0
        %978 = vmatprep.subr.mxu0 0.0
        %979 = vmatpush1.msra.mxu0 0.0
        %980 = vmatprep.subr.mxu0 0.0
        %981 = vmatpush1.msra.mxu0 0.0
        %982 = vmatprep.subr.mxu0 0.0
        %983 = vmatpush1.msra.mxu0 0.0
        %984 = vmatprep.subr.mxu0 0.0
        %985 = vmatpush1.msra.mxu0 0.0
        %986 = vmatprep.subr.mxu0 0.0
        %987 = vmatpush1.msra.mxu0 0.0
        %988 = vmatprep.subr.mxu0 0.0
        %989 = vmatpush1.msra.mxu0 0.0
        %990 = vmatprep.subr.mxu0 0.0
        %991 = vmatpush1.msra.mxu0 0.0
        %992 = vmatprep.subr.mxu0 0.0
        %993 = vmatpush1.msra.mxu0 0.0
        %994 = vmatprep.subr.mxu0 0.0
        %995 = vmatpush1.msra.mxu0 0.0
        %996 = vmatprep.subr.mxu0 0.0
        %997 = vmatpush1.msra.mxu0 0.0
        %998 = vmatprep.subr.mxu0 0.0
        %999 = vmatpush1.msra.mxu0 0.0
        %1000 = vmatprep.subr.mxu0 0.0
        %1001 = vmatpush1.msra.mxu0 0.0
        %1002 = vmatprep.subr.mxu0 0.0
        %1003 = vmatpush1.msra.mxu0 0.0
        %1004 = vmatprep.subr.mxu0 0.0
        %1005 = vmatpush1.msra.mxu0 0.0
        %1006 = vmatprep.subr.mxu0 0.0
        %1007 = vmatpush1.msra.mxu0 0.0
        %1008 = vmatprep.subr.mxu0 0.0
        %1009 = vmatpush1.msra.mxu0 0.0
        %1010 = vmatprep.subr.mxu0 0.0
        %1011 = vmatpush1.msra.mxu0 0.0
        %1012 = vmatprep.subr.mxu0 0.0
        %1013 = vmatpush1.msra.mxu0 0.0
        %1014 = vmatprep.subr.mxu0 0.0
        %1015 = vmatpush1.msra.mxu0 0.0
        %1016 = vmatprep.mubr.f32.mxu0 0.0
        %1017 = vmatmul.mubr.f32.gmra.mrb[0].mxu0 %v929
        %v1018 = vpop.f32.mrb[0].mxu0
        %v1019 = vadd.f32 0.0, %v1018
        %v1020 = vpop.f32.mrb[0].mxu0
        %1021 = vmatprep.mubr.f32.mxu0 0.0
        %1022 = vmatmul.mubr.f32.gmra.mrb[0].mxu0 %v932
        %v1023 = vpop.f32.mrb[0].mxu0
        %v1024 = vadd.f32 0.0, %v1023
        %v1025 = vpop.f32.mrb[0].mxu0
        %1026 = vmatprep.mubr.f32.mxu0 0.0
        %1027 = vmatmul.mubr.f32.gmra.mrb[0].mxu0 %v935
        %v1028 = vpop.f32.mrb[0].mxu0
        %v1029 = vadd.f32 0.0, %v1028
        %v1030 = vpop.f32.mrb[0].mxu0
        %1031 = vmatprep.mubr.f32.mxu0 0.0
        %1032 = vmatmul.mubr.f32.gmra.mrb[0].mxu0 %v938
        %v1033 = vpop.f32.mrb[0].mxu0
        %v1034 = vadd.f32 0.0, %v1033
        %v1035 = vpop.f32.mrb[0].mxu0
        %1036 = vmatprep.mubr.f32.mxu0 0.0
        %1037 = vmatmul.mubr.f32.gmra.mrb[0].mxu0 %v941
        %v1038 = vpop.f32.mrb[0].mxu0
        %v1039 = vadd.f32 0.0, %v1038
        %v1040 = vpop.f32.mrb[0].mxu0
        %1041 = vmatprep.mubr.f32.mxu0 0.0
        %1042 = vmatmul.mubr.f32.gmra.mrb[0].mxu0 %v944
        %v1043 = vpop.f32.mrb[0].mxu0
        %v1044 = vadd.f32 0.0, %v1043
        %v1045 = vpop.f32.mrb[0].mxu0
        %1046 = vmatprep.mubr.f32.mxu0 0.0
        %1047 = vmatmul.mubr.f32.gmra.mrb[0].mxu0 %v947
        %v1048 = vpop.f32.mrb[0].mxu0
        %v1049 = vadd.f32 0.0, %v1048
        %v1050 = vpop.f32.mrb[0].mxu0
        %1051 = vmatprep.mubr.f32.mxu0 0.0
        %1052 = vmatmul.mubr.f32.gmra.mrb[0].mxu0 %v950
        %v1053 = vpop.f32.mrb[0].mxu0
        %v1054 = vadd.f32 0.0, %v1053
        %v1055 = vpop.f32.mrb[0].mxu0
        %1056 = vdwg.mxu0
        %v1058 = vsel %vm790, %v1019, 0
        %v1061 = vsel %vm790, %v1024, 0
        %v1064 = vsel %vm790, %v1029, 0
        %v1067 = vsel %vm790, %v1034, 0
        %v1070 = vsel %vm790, %v1039, 0
        %v1073 = vsel %vm790, %v1044, 0
        %v1076 = vsel %vm790, %v1049, 0
        %v1079 = vsel %vm790, %v1054, 0
        %1081 = vmatprep.subr.mxu0 %v570
        %1082 = vmatpush1.msra.mxu0 %v569
        %1083 = vmatprep.subr.mxu0 %v578
        %1084 = vmatpush1.msra.mxu0 %v577
        %1085 = vmatprep.subr.mxu0 %v586
        %1086 = vmatpush1.msra.mxu0 %v585
        %1087 = vmatprep.subr.mxu0 %v594
        %1088 = vmatpush1.msra.mxu0 %v593
        %1089 = vmatprep.subr.mxu0 0.0
        %1090 = vmatpush1.msra.mxu0 0.0
        %1091 = vmatprep.subr.mxu0 0.0
        %1092 = vmatpush1.msra.mxu0 0.0
        %1093 = vmatprep.subr.mxu0 0.0
        %1094 = vmatpush1.msra.mxu0 0.0
        %1095 = vmatprep.subr.mxu0 0.0
        %1096 = vmatpush1.msra.mxu0 0.0
        %1097 = vmatprep.subr.mxu0 0.0
        %1098 = vmatpush1.msra.mxu0 0.0
        %1099 = vmatprep.subr.mxu0 0.0
        %1100 = vmatpush1.msra.mxu0 0.0
        %1101 = vmatprep.subr.mxu0 0.0
        %1102 = vmatpush1.msra.mxu0 0.0
        %1103 = vmatprep.subr.mxu0 0.0
        %1104 = vmatpush1.msra.mxu0 0.0
        %1105 = vmatprep.subr.mxu0 0.0
        %1106 = vmatpush1.msra.mxu0 0.0
        %1107 = vmatprep.subr.mxu0 0.0
        %1108 = vmatpush1.msra.mxu0 0.0
        %1109 = vmatprep.subr.mxu0 0.0
        %1110 = vmatpush1.msra.mxu0 0.0
        %1111 = vmatprep.subr.mxu0 0.0
        %1112 = vmatpush1.msra.mxu0 0.0
        %1113 = vmatprep.subr.mxu0 0.0
        %1114 = vmatpush1.msra.mxu0 0.0
        %1115 = vmatprep.subr.mxu0 0.0
        %1116 = vmatpush1.msra.mxu0 0.0
        %1117 = vmatprep.subr.mxu0 0.0
        %1118 = vmatpush1.msra.mxu0 0.0
        %1119 = vmatprep.subr.mxu0 0.0
        %1120 = vmatpush1.msra.mxu0 0.0
        %1121 = vmatprep.subr.mxu0 0.0
        %1122 = vmatpush1.msra.mxu0 0.0
        %1123 = vmatprep.subr.mxu0 0.0
        %1124 = vmatpush1.msra.mxu0 0.0
        %1125 = vmatprep.subr.mxu0 0.0
        %1126 = vmatpush1.msra.mxu0 0.0
        %1127 = vmatprep.subr.mxu0 0.0
        %1128 = vmatpush1.msra.mxu0 0.0
        %1129 = vmatprep.subr.mxu0 0.0
        %1130 = vmatpush1.msra.mxu0 0.0
        %1131 = vmatprep.subr.mxu0 0.0
        %1132 = vmatpush1.msra.mxu0 0.0
        %1133 = vmatprep.subr.mxu0 0.0
        %1134 = vmatpush1.msra.mxu0 0.0
        %1135 = vmatprep.subr.mxu0 0.0
        %1136 = vmatpush1.msra.mxu0 0.0
        %1137 = vmatprep.subr.mxu0 0.0
        %1138 = vmatpush1.msra.mxu0 0.0
        %1139 = vmatprep.subr.mxu0 0.0
        %1140 = vmatpush1.msra.mxu0 0.0
        %1141 = vmatprep.subr.mxu0 0.0
        %1142 = vmatpush1.msra.mxu0 0.0
        %1143 = vmatprep.subr.mxu0 0.0
        %1144 = vmatpush1.msra.mxu0 0.0
        %1145 = vmatprep.mubr.f32.mxu0 0.0
        %1146 = vmatmul.mubr.f32.gmra.mrb[0].mxu0 %v1058
        %v1147 = vpop.f32.mrb[0].mxu0
        %v1148 = vadd.f32 0.0, %v1147
        %v1149 = vpop.f32.mrb[0].mxu0
        %v1150 = vadd.f32 0.0, %v1149
        %1151 = vmatprep.mubr.f32.mxu0 0.0
        %1152 = vmatmul.mubr.f32.gmra.mrb[0].mxu0 %v1061
        %v1153 = vpop.f32.mrb[0].mxu0
        %v1154 = vadd.f32 0.0, %v1153
        %v1155 = vpop.f32.mrb[0].mxu0
        %v1156 = vadd.f32 0.0, %v1155
        %1157 = vmatprep.mubr.f32.mxu0 0.0
        %1158 = vmatmul.mubr.f32.gmra.mrb[0].mxu0 %v1064
        %v1159 = vpop.f32.mrb[0].mxu0
        %v1160 = vadd.f32 0.0, %v1159
        %v1161 = vpop.f32.mrb[0].mxu0
        %v1162 = vadd.f32 0.0, %v1161
        %1163 = vmatprep.mubr.f32.mxu0 0.0
        %1164 = vmatmul.mubr.f32.gmra.mrb[0].mxu0 %v1067
        %v1165 = vpop.f32.mrb[0].mxu0
        %v1166 = vadd.f32 0.0, %v1165
        %v1167 = vpop.f32.mrb[0].mxu0
        %v1168 = vadd.f32 0.0, %v1167
        %1169 = vmatprep.mubr.f32.mxu0 0.0
        %1170 = vmatmul.mubr.f32.gmra.mrb[0].mxu0 %v1070
        %v1171 = vpop.f32.mrb[0].mxu0
        %v1172 = vadd.f32 0.0, %v1171
        %v1173 = vpop.f32.mrb[0].mxu0
        %v1174 = vadd.f32 0.0, %v1173
        %1175 = vmatprep.mubr.f32.mxu0 0.0
        %1176 = vmatmul.mubr.f32.gmra.mrb[0].mxu0 %v1073
        %v1177 = vpop.f32.mrb[0].mxu0
        %v1178 = vadd.f32 0.0, %v1177
        %v1179 = vpop.f32.mrb[0].mxu0
        %v1180 = vadd.f32 0.0, %v1179
        %1181 = vmatprep.mubr.f32.mxu0 0.0
        %1182 = vmatmul.mubr.f32.gmra.mrb[0].mxu0 %v1076
        %v1183 = vpop.f32.mrb[0].mxu0
        %v1184 = vadd.f32 0.0, %v1183
        %v1185 = vpop.f32.mrb[0].mxu0
        %v1186 = vadd.f32 0.0, %v1185
        %1187 = vmatprep.mubr.f32.mxu0 0.0
        %1188 = vmatmul.mubr.f32.gmra.mrb[0].mxu0 %v1079
        %v1189 = vpop.f32.mrb[0].mxu0
        %v1190 = vadd.f32 0.0, %v1189
        %v1191 = vpop.f32.mrb[0].mxu0
        %v1192 = vadd.f32 0.0, %v1191
        %1193 = vdwg.mxu0
        %1194 = vmatprep.subr.mxu0 %v572
        %1195 = vmatpush1.msra.mxu0 %v571
        %1196 = vmatprep.subr.mxu0 %v580
        %1197 = vmatpush1.msra.mxu0 %v579
        %1198 = vmatprep.subr.mxu0 %v588
        %1199 = vmatpush1.msra.mxu0 %v587
        %1200 = vmatprep.subr.mxu0 %v596
        %1201 = vmatpush1.msra.mxu0 %v595
        %1202 = vmatprep.subr.mxu0 0.0
        %1203 = vmatpush1.msra.mxu0 0.0
        %1204 = vmatprep.subr.mxu0 0.0
        %1205 = vmatpush1.msra.mxu0 0.0
        %1206 = vmatprep.subr.mxu0 0.0
        %1207 = vmatpush1.msra.mxu0 0.0
        %1208 = vmatprep.subr.mxu0 0.0
        %1209 = vmatpush1.msra.mxu0 0.0
        %1210 = vmatprep.subr.mxu0 0.0
        %1211 = vmatpush1.msra.mxu0 0.0
        %1212 = vmatprep.subr.mxu0 0.0
        %1213 = vmatpush1.msra.mxu0 0.0
        %1214 = vmatprep.subr.mxu0 0.0
        %1215 = vmatpush1.msra.mxu0 0.0
        %1216 = vmatprep.subr.mxu0 0.0
        %1217 = vmatpush1.msra.mxu0 0.0
        %1218 = vmatprep.subr.mxu0 0.0
        %1219 = vmatpush1.msra.mxu0 0.0
        %1220 = vmatprep.subr.mxu0 0.0
        %1221 = vmatpush1.msra.mxu0 0.0
        %1222 = vmatprep.subr.mxu0 0.0
        %1223 = vmatpush1.msra.mxu0 0.0
        %1224 = vmatprep.subr.mxu0 0.0
        %1225 = vmatpush1.msra.mxu0 0.0
        %1226 = vmatprep.subr.mxu0 0.0
        %1227 = vmatpush1.msra.mxu0 0.0
        %1228 = vmatprep.subr.mxu0 0.0
        %1229 = vmatpush1.msra.mxu0 0.0
        %1230 = vmatprep.subr.mxu0 0.0
        %1231 = vmatpush1.msra.mxu0 0.0
        %1232 = vmatprep.subr.mxu0 0.0
        %1233 = vmatpush1.msra.mxu0 0.0
        %1234 = vmatprep.subr.mxu0 0.0
        %1235 = vmatpush1.msra.mxu0 0.0
        %1236 = vmatprep.subr.mxu0 0.0
        %1237 = vmatpush1.msra.mxu0 0.0
        %1238 = vmatprep.subr.mxu0 0.0
        %1239 = vmatpush1.msra.mxu0 0.0
        %1240 = vmatprep.subr.mxu0 0.0
        %1241 = vmatpush1.msra.mxu0 0.0
        %1242 = vmatprep.subr.mxu0 0.0
        %1243 = vmatpush1.msra.mxu0 0.0
        %1244 = vmatprep.subr.mxu0 0.0
        %1245 = vmatpush1.msra.mxu0 0.0
        %1246 = vmatprep.subr.mxu0 0.0
        %1247 = vmatpush1.msra.mxu0 0.0
        %1248 = vmatprep.subr.mxu0 0.0
        %1249 = vmatpush1.msra.mxu0 0.0
        %1250 = vmatprep.subr.mxu0 0.0
        %1251 = vmatpush1.msra.mxu0 0.0
        %1252 = vmatprep.subr.mxu0 0.0
        %1253 = vmatpush1.msra.mxu0 0.0
        %1254 = vmatprep.subr.mxu0 0.0
        %1255 = vmatpush1.msra.mxu0 0.0
        %1256 = vmatprep.subr.mxu0 0.0
        %1257 = vmatpush1.msra.mxu0 0.0
        %1258 = vmatprep.mubr.f32.mxu0 0.0
        %1259 = vmatmul.mubr.f32.gmra.mrb[0].mxu0 %v1058
        %v1260 = vpop.f32.mrb[0].mxu0
        %v1261 = vadd.f32 0.0, %v1260
        %v1262 = vpop.f32.mrb[0].mxu0
        %v1263 = vadd.f32 0.0, %v1262
        %1264 = vmatprep.mubr.f32.mxu0 0.0
        %1265 = vmatmul.mubr.f32.gmra.mrb[0].mxu0 %v1061
        %v1266 = vpop.f32.mrb[0].mxu0
        %v1267 = vadd.f32 0.0, %v1266
        %v1268 = vpop.f32.mrb[0].mxu0
        %v1269 = vadd.f32 0.0, %v1268
        %1270 = vmatprep.mubr.f32.mxu0 0.0
        %1271 = vmatmul.mubr.f32.gmra.mrb[0].mxu0 %v1064
        %v1272 = vpop.f32.mrb[0].mxu0
        %v1273 = vadd.f32 0.0, %v1272
        %v1274 = vpop.f32.mrb[0].mxu0
        %v1275 = vadd.f32 0.0, %v1274
        %1276 = vmatprep.mubr.f32.mxu0 0.0
        %1277 = vmatmul.mubr.f32.gmra.mrb[0].mxu0 %v1067
        %v1278 = vpop.f32.mrb[0].mxu0
        %v1279 = vadd.f32 0.0, %v1278
        %v1280 = vpop.f32.mrb[0].mxu0
        %v1281 = vadd.f32 0.0, %v1280
        %1282 = vmatprep.mubr.f32.mxu0 0.0
        %1283 = vmatmul.mubr.f32.gmra.mrb[0].mxu0 %v1070
        %v1284 = vpop.f32.mrb[0].mxu0
        %v1285 = vadd.f32 0.0, %v1284
        %v1286 = vpop.f32.mrb[0].mxu0
        %v1287 = vadd.f32 0.0, %v1286
        %1288 = vmatprep.mubr.f32.mxu0 0.0
        %1289 = vmatmul.mubr.f32.gmra.mrb[0].mxu0 %v1073
        %v1290 = vpop.f32.mrb[0].mxu0
        %v1291 = vadd.f32 0.0, %v1290
        %v1292 = vpop.f32.mrb[0].mxu0
        %v1293 = vadd.f32 0.0, %v1292
        %1294 = vmatprep.mubr.f32.mxu0 0.0
        %1295 = vmatmul.mubr.f32.gmra.mrb[0].mxu0 %v1076
        %v1296 = vpop.f32.mrb[0].mxu0
        %v1297 = vadd.f32 0.0, %v1296
        %v1298 = vpop.f32.mrb[0].mxu0
        %v1299 = vadd.f32 0.0, %v1298
        %1300 = vmatprep.mubr.f32.mxu0 0.0
        %1301 = vmatmul.mubr.f32.gmra.mrb[0].mxu0 %v1079
        %v1302 = vpop.f32.mrb[0].mxu0
        %v1303 = vadd.f32 0.0, %v1302
        %v1304 = vpop.f32.mrb[0].mxu0
        %v1305 = vadd.f32 0.0, %v1304
        %1306 = vdwg.mxu0
        %1307 = vmatprep.subr.mxu0 %v574
        %1308 = vmatpush1.msra.mxu0 %v573
        %1309 = vmatprep.subr.mxu0 %v582
        %1310 = vmatpush1.msra.mxu0 %v581
        %1311 = vmatprep.subr.mxu0 %v590
        %1312 = vmatpush1.msra.mxu0 %v589
        %1313 = vmatprep.subr.mxu0 %v598
        %1314 = vmatpush1.msra.mxu0 %v597
        %1315 = vmatprep.subr.mxu0 0.0
        %1316 = vmatpush1.msra.mxu0 0.0
        %1317 = vmatprep.subr.mxu0 0.0
        %1318 = vmatpush1.msra.mxu0 0.0
        %1319 = vmatprep.subr.mxu0 0.0
        %1320 = vmatpush1.msra.mxu0 0.0
        %1321 = vmatprep.subr.mxu0 0.0
        %1322 = vmatpush1.msra.mxu0 0.0
        %1323 = vmatprep.subr.mxu0 0.0
        %1324 = vmatpush1.msra.mxu0 0.0
        %1325 = vmatprep.subr.mxu0 0.0
        %1326 = vmatpush1.msra.mxu0 0.0
        %1327 = vmatprep.subr.mxu0 0.0
        %1328 = vmatpush1.msra.mxu0 0.0
        %1329 = vmatprep.subr.mxu0 0.0
        %1330 = vmatpush1.msra.mxu0 0.0
        %1331 = vmatprep.subr.mxu0 0.0
        %1332 = vmatpush1.msra.mxu0 0.0
        %1333 = vmatprep.subr.mxu0 0.0
        %1334 = vmatpush1.msra.mxu0 0.0
        %1335 = vmatprep.subr.mxu0 0.0
        %1336 = vmatpush1.msra.mxu0 0.0
        %1337 = vmatprep.subr.mxu0 0.0
        %1338 = vmatpush1.msra.mxu0 0.0
        %1339 = vmatprep.subr.mxu0 0.0
        %1340 = vmatpush1.msra.mxu0 0.0
        %1341 = vmatprep.subr.mxu0 0.0
        %1342 = vmatpush1.msra.mxu0 0.0
        %1343 = vmatprep.subr.mxu0 0.0
        %1344 = vmatpush1.msra.mxu0 0.0
        %1345 = vmatprep.subr.mxu0 0.0
        %1346 = vmatpush1.msra.mxu0 0.0
        %1347 = vmatprep.subr.mxu0 0.0
        %1348 = vmatpush1.msra.mxu0 0.0
        %1349 = vmatprep.subr.mxu0 0.0
        %1350 = vmatpush1.msra.mxu0 0.0
        %1351 = vmatprep.subr.mxu0 0.0
        %1352 = vmatpush1.msra.mxu0 0.0
        %1353 = vmatprep.subr.mxu0 0.0
        %1354 = vmatpush1.msra.mxu0 0.0
        %1355 = vmatprep.subr.mxu0 0.0
        %1356 = vmatpush1.msra.mxu0 0.0
        %1357 = vmatprep.subr.mxu0 0.0
        %1358 = vmatpush1.msra.mxu0 0.0
        %1359 = vmatprep.subr.mxu0 0.0
        %1360 = vmatpush1.msra.mxu0 0.0
        %1361 = vmatprep.subr.mxu0 0.0
        %1362 = vmatpush1.msra.mxu0 0.0
        %1363 = vmatprep.subr.mxu0 0.0
        %1364 = vmatpush1.msra.mxu0 0.0
        %1365 = vmatprep.subr.mxu0 0.0
        %1366 = vmatpush1.msra.mxu0 0.0
        %1367 = vmatprep.subr.mxu0 0.0
        %1368 = vmatpush1.msra.mxu0 0.0
        %1369 = vmatprep.subr.mxu0 0.0
        %1370 = vmatpush1.msra.mxu0 0.0
        %1371 = vmatprep.mubr.f32.mxu0 0.0
        %1372 = vmatmul.mubr.f32.gmra.mrb[0].mxu0 %v1058
        %v1373 = vpop.f32.mrb[0].mxu0
        %v1374 = vadd.f32 0.0, %v1373
        %v1375 = vpop.f32.mrb[0].mxu0
        %v1376 = vadd.f32 0.0, %v1375
        %1377 = vmatprep.mubr.f32.mxu0 0.0
        %1378 = vmatmul.mubr.f32.gmra.mrb[0].mxu0 %v1061
        %v1379 = vpop.f32.mrb[0].mxu0
        %v1380 = vadd.f32 0.0, %v1379
        %v1381 = vpop.f32.mrb[0].mxu0
        %v1382 = vadd.f32 0.0, %v1381
        %1383 = vmatprep.mubr.f32.mxu0 0.0
        %1384 = vmatmul.mubr.f32.gmra.mrb[0].mxu0 %v1064
        %v1385 = vpop.f32.mrb[0].mxu0
        %v1386 = vadd.f32 0.0, %v1385
        %v1387 = vpop.f32.mrb[0].mxu0
        %v1388 = vadd.f32 0.0, %v1387
        %1389 = vmatprep.mubr.f32.mxu0 0.0
        %1390 = vmatmul.mubr.f32.gmra.mrb[0].mxu0 %v1067
        %v1391 = vpop.f32.mrb[0].mxu0
        %v1392 = vadd.f32 0.0, %v1391
        %v1393 = vpop.f32.mrb[0].mxu0
        %v1394 = vadd.f32 0.0, %v1393
        %1395 = vmatprep.mubr.f32.mxu0 0.0
        %1396 = vmatmul.mubr.f32.gmra.mrb[0].mxu0 %v1070
        %v1397 = vpop.f32.mrb[0].mxu0
        %v1398 = vadd.f32 0.0, %v1397
        %v1399 = vpop.f32.mrb[0].mxu0
        %v1400 = vadd.f32 0.0, %v1399
        %1401 = vmatprep.mubr.f32.mxu0 0.0
        %1402 = vmatmul.mubr.f32.gmra.mrb[0].mxu0 %v1073
        %v1403 = vpop.f32.mrb[0].mxu0
        %v1404 = vadd.f32 0.0, %v1403
        %v1405 = vpop.f32.mrb[0].mxu0
        %v1406 = vadd.f32 0.0, %v1405
        %1407 = vmatprep.mubr.f32.mxu0 0.0
        %1408 = vmatmul.mubr.f32.gmra.mrb[0].mxu0 %v1076
        %v1409 = vpop.f32.mrb[0].mxu0
        %v1410 = vadd.f32 0.0, %v1409
        %v1411 = vpop.f32.mrb[0].mxu0
        %v1412 = vadd.f32 0.0, %v1411
        %1413 = vmatprep.mubr.f32.mxu0 0.0
        %1414 = vmatmul.mubr.f32.gmra.mrb[0].mxu0 %v1079
        %v1415 = vpop.f32.mrb[0].mxu0
        %v1416 = vadd.f32 0.0, %v1415
        %v1417 = vpop.f32.mrb[0].mxu0
        %v1418 = vadd.f32 0.0, %v1417
        %1419 = vdwg.mxu0
        %1420 = vmatprep.subr.mxu0 %v576
        %1421 = vmatpush1.msra.mxu0 %v575
        %1422 = vmatprep.subr.mxu0 %v584
        %1423 = vmatpush1.msra.mxu0 %v583
        %1424 = vmatprep.subr.mxu0 %v592
        %1425 = vmatpush1.msra.mxu0 %v591
        %1426 = vmatprep.subr.mxu0 %v600
        %1427 = vmatpush1.msra.mxu0 %v599
        %1428 = vmatprep.subr.mxu0 0.0
        %1429 = vmatpush1.msra.mxu0 0.0
        %1430 = vmatprep.subr.mxu0 0.0
        %1431 = vmatpush1.msra.mxu0 0.0
        %1432 = vmatprep.subr.mxu0 0.0
        %1433 = vmatpush1.msra.mxu0 0.0
        %1434 = vmatprep.subr.mxu0 0.0
        %1435 = vmatpush1.msra.mxu0 0.0
        %1436 = vmatprep.subr.mxu0 0.0
        %1437 = vmatpush1.msra.mxu0 0.0
        %1438 = vmatprep.subr.mxu0 0.0
        %1439 = vmatpush1.msra.mxu0 0.0
        %1440 = vmatprep.subr.mxu0 0.0
        %1441 = vmatpush1.msra.mxu0 0.0
        %1442 = vmatprep.subr.mxu0 0.0
        %1443 = vmatpush1.msra.mxu0 0.0
        %1444 = vmatprep.subr.mxu0 0.0
        %1445 = vmatpush1.msra.mxu0 0.0
        %1446 = vmatprep.subr.mxu0 0.0
        %1447 = vmatpush1.msra.mxu0 0.0
        %1448 = vmatprep.subr.mxu0 0.0
        %1449 = vmatpush1.msra.mxu0 0.0
        %1450 = vmatprep.subr.mxu0 0.0
        %1451 = vmatpush1.msra.mxu0 0.0
        %1452 = vmatprep.subr.mxu0 0.0
        %1453 = vmatpush1.msra.mxu0 0.0
        %1454 = vmatprep.subr.mxu0 0.0
        %1455 = vmatpush1.msra.mxu0 0.0
        %1456 = vmatprep.subr.mxu0 0.0
        %1457 = vmatpush1.msra.mxu0 0.0
        %1458 = vmatprep.subr.mxu0 0.0
        %1459 = vmatpush1.msra.mxu0 0.0
        %1460 = vmatprep.subr.mxu0 0.0
        %1461 = vmatpush1.msra.mxu0 0.0
        %1462 = vmatprep.subr.mxu0 0.0
        %1463 = vmatpush1.msra.mxu0 0.0
        %1464 = vmatprep.subr.mxu0 0.0
        %1465 = vmatpush1.msra.mxu0 0.0
        %1466 = vmatprep.subr.mxu0 0.0
        %1467 = vmatpush1.msra.mxu0 0.0
        %1468 = vmatprep.subr.mxu0 0.0
        %1469 = vmatpush1.msra.mxu0 0.0
        %1470 = vmatprep.subr.mxu0 0.0
        %1471 = vmatpush1.msra.mxu0 0.0
        %1472 = vmatprep.subr.mxu0 0.0
        %1473 = vmatpush1.msra.mxu0 0.0
        %1474 = vmatprep.subr.mxu0 0.0
        %1475 = vmatpush1.msra.mxu0 0.0
        %1476 = vmatprep.subr.mxu0 0.0
        %1477 = vmatpush1.msra.mxu0 0.0
        %1478 = vmatprep.subr.mxu0 0.0
        %1479 = vmatpush1.msra.mxu0 0.0
        %1480 = vmatprep.subr.mxu0 0.0
        %1481 = vmatpush1.msra.mxu0 0.0
        %1482 = vmatprep.subr.mxu0 0.0
        %1483 = vmatpush1.msra.mxu0 0.0
        %1484 = vmatprep.mubr.f32.mxu0 0.0
        %1485 = vmatmul.mubr.f32.gmra.mrb[0].mxu0 %v1058
        %v1486 = vpop.f32.mrb[0].mxu0
        %v1487 = vadd.f32 0.0, %v1486
        %v1488 = vpop.f32.mrb[0].mxu0
        %v1489 = vadd.f32 0.0, %v1488
        %1490 = vmatprep.mubr.f32.mxu0 0.0
        %1491 = vmatmul.mubr.f32.gmra.mrb[0].mxu0 %v1061
        %v1492 = vpop.f32.mrb[0].mxu0
        %v1493 = vadd.f32 0.0, %v1492
        %v1494 = vpop.f32.mrb[0].mxu0
        %v1495 = vadd.f32 0.0, %v1494
        %1496 = vmatprep.mubr.f32.mxu0 0.0
        %1497 = vmatmul.mubr.f32.gmra.mrb[0].mxu0 %v1064
        %v1498 = vpop.f32.mrb[0].mxu0
        %v1499 = vadd.f32 0.0, %v1498
        %v1500 = vpop.f32.mrb[0].mxu0
        %v1501 = vadd.f32 0.0, %v1500
        %1502 = vmatprep.mubr.f32.mxu0 0.0
        %1503 = vmatmul.mubr.f32.gmra.mrb[0].mxu0 %v1067
        %v1504 = vpop.f32.mrb[0].mxu0
        %v1505 = vadd.f32 0.0, %v1504
        %v1506 = vpop.f32.mrb[0].mxu0
        %v1507 = vadd.f32 0.0, %v1506
        %1508 = vmatprep.mubr.f32.mxu0 0.0
        %1509 = vmatmul.mubr.f32.gmra.mrb[0].mxu0 %v1070
        %v1510 = vpop.f32.mrb[0].mxu0
        %v1511 = vadd.f32 0.0, %v1510
        %v1512 = vpop.f32.mrb[0].mxu0
        %v1513 = vadd.f32 0.0, %v1512
        %1514 = vmatprep.mubr.f32.mxu0 0.0
        %1515 = vmatmul.mubr.f32.gmra.mrb[0].mxu0 %v1073
        %v1516 = vpop.f32.mrb[0].mxu0
        %v1517 = vadd.f32 0.0, %v1516
        %v1518 = vpop.f32.mrb[0].mxu0
        %v1519 = vadd.f32 0.0, %v1518
        %1520 = vmatprep.mubr.f32.mxu0 0.0
        %1521 = vmatmul.mubr.f32.gmra.mrb[0].mxu0 %v1076
        %v1522 = vpop.f32.mrb[0].mxu0
        %v1523 = vadd.f32 0.0, %v1522
        %v1524 = vpop.f32.mrb[0].mxu0
        %v1525 = vadd.f32 0.0, %v1524
        %1526 = vmatprep.mubr.f32.mxu0 0.0
        %1527 = vmatmul.mubr.f32.gmra.mrb[0].mxu0 %v1079
        %v1528 = vpop.f32.mrb[0].mxu0
        %v1529 = vadd.f32 0.0, %v1528
        %v1530 = vpop.f32.mrb[0].mxu0
        %v1531 = vadd.f32 0.0, %v1530
        %1532 = vdwg.mxu0
        %v1534 = vsel %vm790, %v920, 0
        %v1537 = vsel %vm790, %v921, 0
        %v1540 = vsel %vm790, %v922, 0
        %v1543 = vsel %vm790, %v923, 0
        %v1546 = vsel %vm790, %v924, 0
        %v1549 = vsel %vm790, %v925, 0
        %v1552 = vsel %vm790, %v926, 0
        %v1555 = vsel %vm790, %v927, 0
        %1557 = vmatprep.subr.mxu0 %v602
        %1558 = vmatpush1.msra.mxu0 %v601
        %1559 = vmatprep.subr.mxu0 %v610
        %1560 = vmatpush1.msra.mxu0 %v609
        %1561 = vmatprep.subr.mxu0 %v618
        %1562 = vmatpush1.msra.mxu0 %v617
        %1563 = vmatprep.subr.mxu0 %v626
        %1564 = vmatpush1.msra.mxu0 %v625
        %1565 = vmatprep.subr.mxu0 0.0
        %1566 = vmatpush1.msra.mxu0 0.0
        %1567 = vmatprep.subr.mxu0 0.0
        %1568 = vmatpush1.msra.mxu0 0.0
        %1569 = vmatprep.subr.mxu0 0.0
        %1570 = vmatpush1.msra.mxu0 0.0
        %1571 = vmatprep.subr.mxu0 0.0
        %1572 = vmatpush1.msra.mxu0 0.0
        %1573 = vmatprep.subr.mxu0 0.0
        %1574 = vmatpush1.msra.mxu0 0.0
        %1575 = vmatprep.subr.mxu0 0.0
        %1576 = vmatpush1.msra.mxu0 0.0
        %1577 = vmatprep.subr.mxu0 0.0
        %1578 = vmatpush1.msra.mxu0 0.0
        %1579 = vmatprep.subr.mxu0 0.0
        %1580 = vmatpush1.msra.mxu0 0.0
        %1581 = vmatprep.subr.mxu0 0.0
        %1582 = vmatpush1.msra.mxu0 0.0
        %1583 = vmatprep.subr.mxu0 0.0
        %1584 = vmatpush1.msra.mxu0 0.0
        %1585 = vmatprep.subr.mxu0 0.0
        %1586 = vmatpush1.msra.mxu0 0.0
        %1587 = vmatprep.subr.mxu0 0.0
        %1588 = vmatpush1.msra.mxu0 0.0
        %1589 = vmatprep.subr.mxu0 0.0
        %1590 = vmatpush1.msra.mxu0 0.0
        %1591 = vmatprep.subr.mxu0 0.0
        %1592 = vmatpush1.msra.mxu0 0.0
        %1593 = vmatprep.subr.mxu0 0.0
        %1594 = vmatpush1.msra.mxu0 0.0
        %1595 = vmatprep.subr.mxu0 0.0
        %1596 = vmatpush1.msra.mxu0 0.0
        %1597 = vmatprep.subr.mxu0 0.0
        %1598 = vmatpush1.msra.mxu0 0.0
        %1599 = vmatprep.subr.mxu0 0.0
        %1600 = vmatpush1.msra.mxu0 0.0
        %1601 = vmatprep.subr.mxu0 0.0
        %1602 = vmatpush1.msra.mxu0 0.0
        %1603 = vmatprep.subr.mxu0 0.0
        %1604 = vmatpush1.msra.mxu0 0.0
        %1605 = vmatprep.subr.mxu0 0.0
        %1606 = vmatpush1.msra.mxu0 0.0
        %1607 = vmatprep.subr.mxu0 0.0
        %1608 = vmatpush1.msra.mxu0 0.0
        %1609 = vmatprep.subr.mxu0 0.0
        %1610 = vmatpush1.msra.mxu0 0.0
        %1611 = vmatprep.subr.mxu0 0.0
        %1612 = vmatpush1.msra.mxu0 0.0
        %1613 = vmatprep.subr.mxu0 0.0
        %1614 = vmatpush1.msra.mxu0 0.0
        %1615 = vmatprep.subr.mxu0 0.0
        %1616 = vmatpush1.msra.mxu0 0.0
        %1617 = vmatprep.subr.mxu0 0.0
        %1618 = vmatpush1.msra.mxu0 0.0
        %1619 = vmatprep.subr.mxu0 0.0
        %1620 = vmatpush1.msra.mxu0 0.0
        %1621 = vmatprep.mubr.f32.mxu0 0.0
        %1622 = vmatmul.mubr.f32.gmra.mrb[0].mxu0 %v1534
        %v1623 = vpop.f32.mrb[0].mxu0
        %v1624 = vadd.f32 0.0, %v1623
        %v1625 = vpop.f32.mrb[0].mxu0
        %v1626 = vadd.f32 0.0, %v1625
        %1627 = vmatprep.mubr.f32.mxu0 0.0
        %1628 = vmatmul.mubr.f32.gmra.mrb[0].mxu0 %v1537
        %v1629 = vpop.f32.mrb[0].mxu0
        %v1630 = vadd.f32 0.0, %v1629
        %v1631 = vpop.f32.mrb[0].mxu0
        %v1632 = vadd.f32 0.0, %v1631
        %1633 = vmatprep.mubr.f32.mxu0 0.0
        %1634 = vmatmul.mubr.f32.gmra.mrb[0].mxu0 %v1540
        %v1635 = vpop.f32.mrb[0].mxu0
        %v1636 = vadd.f32 0.0, %v1635
        %v1637 = vpop.f32.mrb[0].mxu0
        %v1638 = vadd.f32 0.0, %v1637
        %1639 = vmatprep.mubr.f32.mxu0 0.0
        %1640 = vmatmul.mubr.f32.gmra.mrb[0].mxu0 %v1543
        %v1641 = vpop.f32.mrb[0].mxu0
        %v1642 = vadd.f32 0.0, %v1641
        %v1643 = vpop.f32.mrb[0].mxu0
        %v1644 = vadd.f32 0.0, %v1643
        %1645 = vmatprep.mubr.f32.mxu0 0.0
        %1646 = vmatmul.mubr.f32.gmra.mrb[0].mxu0 %v1546
        %v1647 = vpop.f32.mrb[0].mxu0
        %v1648 = vadd.f32 0.0, %v1647
        %v1649 = vpop.f32.mrb[0].mxu0
        %v1650 = vadd.f32 0.0, %v1649
        %1651 = vmatprep.mubr.f32.mxu0 0.0
        %1652 = vmatmul.mubr.f32.gmra.mrb[0].mxu0 %v1549
        %v1653 = vpop.f32.mrb[0].mxu0
        %v1654 = vadd.f32 0.0, %v1653
        %v1655 = vpop.f32.mrb[0].mxu0
        %v1656 = vadd.f32 0.0, %v1655
        %1657 = vmatprep.mubr.f32.mxu0 0.0
        %1658 = vmatmul.mubr.f32.gmra.mrb[0].mxu0 %v1552
        %v1659 = vpop.f32.mrb[0].mxu0
        %v1660 = vadd.f32 0.0, %v1659
        %v1661 = vpop.f32.mrb[0].mxu0
        %v1662 = vadd.f32 0.0, %v1661
        %1663 = vmatprep.mubr.f32.mxu0 0.0
        %1664 = vmatmul.mubr.f32.gmra.mrb[0].mxu0 %v1555
        %v1665 = vpop.f32.mrb[0].mxu0
        %v1666 = vadd.f32 0.0, %v1665
        %v1667 = vpop.f32.mrb[0].mxu0
        %v1668 = vadd.f32 0.0, %v1667
        %1669 = vdwg.mxu0
        %1670 = vmatprep.subr.mxu0 %v604
        %1671 = vmatpush1.msra.mxu0 %v603
        %1672 = vmatprep.subr.mxu0 %v612
        %1673 = vmatpush1.msra.mxu0 %v611
        %1674 = vmatprep.subr.mxu0 %v620
        %1675 = vmatpush1.msra.mxu0 %v619
        %1676 = vmatprep.subr.mxu0 %v628
        %1677 = vmatpush1.msra.mxu0 %v627
        %1678 = vmatprep.subr.mxu0 0.0
        %1679 = vmatpush1.msra.mxu0 0.0
        %1680 = vmatprep.subr.mxu0 0.0
        %1681 = vmatpush1.msra.mxu0 0.0
        %1682 = vmatprep.subr.mxu0 0.0
        %1683 = vmatpush1.msra.mxu0 0.0
        %1684 = vmatprep.subr.mxu0 0.0
        %1685 = vmatpush1.msra.mxu0 0.0
        %1686 = vmatprep.subr.mxu0 0.0
        %1687 = vmatpush1.msra.mxu0 0.0
        %1688 = vmatprep.subr.mxu0 0.0
        %1689 = vmatpush1.msra.mxu0 0.0
        %1690 = vmatprep.subr.mxu0 0.0
        %1691 = vmatpush1.msra.mxu0 0.0
        %1692 = vmatprep.subr.mxu0 0.0
        %1693 = vmatpush1.msra.mxu0 0.0
        %1694 = vmatprep.subr.mxu0 0.0
        %1695 = vmatpush1.msra.mxu0 0.0
        %1696 = vmatprep.subr.mxu0 0.0
        %1697 = vmatpush1.msra.mxu0 0.0
        %1698 = vmatprep.subr.mxu0 0.0
        %1699 = vmatpush1.msra.mxu0 0.0
        %1700 = vmatprep.subr.mxu0 0.0
        %1701 = vmatpush1.msra.mxu0 0.0
        %1702 = vmatprep.subr.mxu0 0.0
        %1703 = vmatpush1.msra.mxu0 0.0
        %1704 = vmatprep.subr.mxu0 0.0
        %1705 = vmatpush1.msra.mxu0 0.0
        %1706 = vmatprep.subr.mxu0 0.0
        %1707 = vmatpush1.msra.mxu0 0.0
        %1708 = vmatprep.subr.mxu0 0.0
        %1709 = vmatpush1.msra.mxu0 0.0
        %1710 = vmatprep.subr.mxu0 0.0
        %1711 = vmatpush1.msra.mxu0 0.0
        %1712 = vmatprep.subr.mxu0 0.0
        %1713 = vmatpush1.msra.mxu0 0.0
        %1714 = vmatprep.subr.mxu0 0.0
        %1715 = vmatpush1.msra.mxu0 0.0
        %1716 = vmatprep.subr.mxu0 0.0
        %1717 = vmatpush1.msra.mxu0 0.0
        %1718 = vmatprep.subr.mxu0 0.0
        %1719 = vmatpush1.msra.mxu0 0.0
        %1720 = vmatprep.subr.mxu0 0.0
        %1721 = vmatpush1.msra.mxu0 0.0
        %1722 = vmatprep.subr.mxu0 0.0
        %1723 = vmatpush1.msra.mxu0 0.0
        %1724 = vmatprep.subr.mxu0 0.0
        %1725 = vmatpush1.msra.mxu0 0.0
        %1726 = vmatprep.subr.mxu0 0.0
        %1727 = vmatpush1.msra.mxu0 0.0
        %1728 = vmatprep.subr.mxu0 0.0
        %1729 = vmatpush1.msra.mxu0 0.0
        %1730 = vmatprep.subr.mxu0 0.0
        %1731 = vmatpush1.msra.mxu0 0.0
        %1732 = vmatprep.subr.mxu0 0.0
        %1733 = vmatpush1.msra.mxu0 0.0
        %1734 = vmatprep.mubr.f32.mxu0 0.0
        %1735 = vmatmul.mubr.f32.gmra.mrb[0].mxu0 %v1534
        %v1736 = vpop.f32.mrb[0].mxu0
        %v1737 = vadd.f32 0.0, %v1736
        %v1738 = vpop.f32.mrb[0].mxu0
        %v1739 = vadd.f32 0.0, %v1738
        %1740 = vmatprep.mubr.f32.mxu0 0.0
        %1741 = vmatmul.mubr.f32.gmra.mrb[0].mxu0 %v1537
        %v1742 = vpop.f32.mrb[0].mxu0
        %v1743 = vadd.f32 0.0, %v1742
        %v1744 = vpop.f32.mrb[0].mxu0
        %v1745 = vadd.f32 0.0, %v1744
        %1746 = vmatprep.mubr.f32.mxu0 0.0
        %1747 = vmatmul.mubr.f32.gmra.mrb[0].mxu0 %v1540
        %v1748 = vpop.f32.mrb[0].mxu0
        %v1749 = vadd.f32 0.0, %v1748
        %v1750 = vpop.f32.mrb[0].mxu0
        %v1751 = vadd.f32 0.0, %v1750
        %1752 = vmatprep.mubr.f32.mxu0 0.0
        %1753 = vmatmul.mubr.f32.gmra.mrb[0].mxu0 %v1543
        %v1754 = vpop.f32.mrb[0].mxu0
        %v1755 = vadd.f32 0.0, %v1754
        %v1756 = vpop.f32.mrb[0].mxu0
        %v1757 = vadd.f32 0.0, %v1756
        %1758 = vmatprep.mubr.f32.mxu0 0.0
        %1759 = vmatmul.mubr.f32.gmra.mrb[0].mxu0 %v1546
        %v1760 = vpop.f32.mrb[0].mxu0
        %v1761 = vadd.f32 0.0, %v1760
        %v1762 = vpop.f32.mrb[0].mxu0
        %v1763 = vadd.f32 0.0, %v1762
        %1764 = vmatprep.mubr.f32.mxu0 0.0
        %1765 = vmatmul.mubr.f32.gmra.mrb[0].mxu0 %v1549
        %v1766 = vpop.f32.mrb[0].mxu0
        %v1767 = vadd.f32 0.0, %v1766
        %v1768 = vpop.f32.mrb[0].mxu0
        %v1769 = vadd.f32 0.0, %v1768
        %1770 = vmatprep.mubr.f32.mxu0 0.0
        %1771 = vmatmul.mubr.f32.gmra.mrb[0].mxu0 %v1552
        %v1772 = vpop.f32.mrb[0].mxu0
        %v1773 = vadd.f32 0.0, %v1772
        %v1774 = vpop.f32.mrb[0].mxu0
        %v1775 = vadd.f32 0.0, %v1774
        %1776 = vmatprep.mubr.f32.mxu0 0.0
        %1777 = vmatmul.mubr.f32.gmra.mrb[0].mxu0 %v1555
        %v1778 = vpop.f32.mrb[0].mxu0
        %v1779 = vadd.f32 0.0, %v1778
        %v1780 = vpop.f32.mrb[0].mxu0
        %v1781 = vadd.f32 0.0, %v1780
        %1782 = vdwg.mxu0
        %1783 = vmatprep.subr.mxu0 %v606
        %1784 = vmatpush1.msra.mxu0 %v605
        %1785 = vmatprep.subr.mxu0 %v614
        %1786 = vmatpush1.msra.mxu0 %v613
        %1787 = vmatprep.subr.mxu0 %v622
        %1788 = vmatpush1.msra.mxu0 %v621
        %1789 = vmatprep.subr.mxu0 %v630
        %1790 = vmatpush1.msra.mxu0 %v629
        %1791 = vmatprep.subr.mxu0 0.0
        %1792 = vmatpush1.msra.mxu0 0.0
        %1793 = vmatprep.subr.mxu0 0.0
        %1794 = vmatpush1.msra.mxu0 0.0
        %1795 = vmatprep.subr.mxu0 0.0
        %1796 = vmatpush1.msra.mxu0 0.0
        %1797 = vmatprep.subr.mxu0 0.0
        %1798 = vmatpush1.msra.mxu0 0.0
        %1799 = vmatprep.subr.mxu0 0.0
        %1800 = vmatpush1.msra.mxu0 0.0
        %1801 = vmatprep.subr.mxu0 0.0
        %1802 = vmatpush1.msra.mxu0 0.0
        %1803 = vmatprep.subr.mxu0 0.0
        %1804 = vmatpush1.msra.mxu0 0.0
        %1805 = vmatprep.subr.mxu0 0.0
        %1806 = vmatpush1.msra.mxu0 0.0
        %1807 = vmatprep.subr.mxu0 0.0
        %1808 = vmatpush1.msra.mxu0 0.0
        %1809 = vmatprep.subr.mxu0 0.0
        %1810 = vmatpush1.msra.mxu0 0.0
        %1811 = vmatprep.subr.mxu0 0.0
        %1812 = vmatpush1.msra.mxu0 0.0
        %1813 = vmatprep.subr.mxu0 0.0
        %1814 = vmatpush1.msra.mxu0 0.0
        %1815 = vmatprep.subr.mxu0 0.0
        %1816 = vmatpush1.msra.mxu0 0.0
        %1817 = vmatprep.subr.mxu0 0.0
        %1818 = vmatpush1.msra.mxu0 0.0
        %1819 = vmatprep.subr.mxu0 0.0
        %1820 = vmatpush1.msra.mxu0 0.0
        %1821 = vmatprep.subr.mxu0 0.0
        %1822 = vmatpush1.msra.mxu0 0.0
        %1823 = vmatprep.subr.mxu0 0.0
        %1824 = vmatpush1.msra.mxu0 0.0
        %1825 = vmatprep.subr.mxu0 0.0
        %1826 = vmatpush1.msra.mxu0 0.0
        %1827 = vmatprep.subr.mxu0 0.0
        %1828 = vmatpush1.msra.mxu0 0.0
        %1829 = vmatprep.subr.mxu0 0.0
        %1830 = vmatpush1.msra.mxu0 0.0
        %1831 = vmatprep.subr.mxu0 0.0
        %1832 = vmatpush1.msra.mxu0 0.0
        %1833 = vmatprep.subr.mxu0 0.0
        %1834 = vmatpush1.msra.mxu0 0.0
        %1835 = vmatprep.subr.mxu0 0.0
        %1836 = vmatpush1.msra.mxu0 0.0
        %1837 = vmatprep.subr.mxu0 0.0
        %1838 = vmatpush1.msra.mxu0 0.0
        %1839 = vmatprep.subr.mxu0 0.0
        %1840 = vmatpush1.msra.mxu0 0.0
        %1841 = vmatprep.subr.mxu0 0.0
        %1842 = vmatpush1.msra.mxu0 0.0
        %1843 = vmatprep.subr.mxu0 0.0
        %1844 = vmatpush1.msra.mxu0 0.0
        %1845 = vmatprep.subr.mxu0 0.0
        %1846 = vmatpush1.msra.mxu0 0.0
        %1847 = vmatprep.mubr.f32.mxu0 0.0
        %1848 = vmatmul.mubr.f32.gmra.mrb[0].mxu0 %v1534
        %v1849 = vpop.f32.mrb[0].mxu0
        %v1850 = vadd.f32 0.0, %v1849
        %v1851 = vpop.f32.mrb[0].mxu0
        %v1852 = vadd.f32 0.0, %v1851
        %1853 = vmatprep.mubr.f32.mxu0 0.0
        %1854 = vmatmul.mubr.f32.gmra.mrb[0].mxu0 %v1537
        %v1855 = vpop.f32.mrb[0].mxu0
        %v1856 = vadd.f32 0.0, %v1855
        %v1857 = vpop.f32.mrb[0].mxu0
        %v1858 = vadd.f32 0.0, %v1857
        %1859 = vmatprep.mubr.f32.mxu0 0.0
        %1860 = vmatmul.mubr.f32.gmra.mrb[0].mxu0 %v1540
        %v1861 = vpop.f32.mrb[0].mxu0
        %v1862 = vadd.f32 0.0, %v1861
        %v1863 = vpop.f32.mrb[0].mxu0
        %v1864 = vadd.f32 0.0, %v1863
        %1865 = vmatprep.mubr.f32.mxu0 0.0
        %1866 = vmatmul.mubr.f32.gmra.mrb[0].mxu0 %v1543
        %v1867 = vpop.f32.mrb[0].mxu0
        %v1868 = vadd.f32 0.0, %v1867
        %v1869 = vpop.f32.mrb[0].mxu0
        %v1870 = vadd.f32 0.0, %v1869
        %1871 = vmatprep.mubr.f32.mxu0 0.0
        %1872 = vmatmul.mubr.f32.gmra.mrb[0].mxu0 %v1546
        %v1873 = vpop.f32.mrb[0].mxu0
        %v1874 = vadd.f32 0.0, %v1873
        %v1875 = vpop.f32.mrb[0].mxu0
        %v1876 = vadd.f32 0.0, %v1875
        %1877 = vmatprep.mubr.f32.mxu0 0.0
        %1878 = vmatmul.mubr.f32.gmra.mrb[0].mxu0 %v1549
        %v1879 = vpop.f32.mrb[0].mxu0
        %v1880 = vadd.f32 0.0, %v1879
        %v1881 = vpop.f32.mrb[0].mxu0
        %v1882 = vadd.f32 0.0, %v1881
        %1883 = vmatprep.mubr.f32.mxu0 0.0
        %1884 = vmatmul.mubr.f32.gmra.mrb[0].mxu0 %v1552
        %v1885 = vpop.f32.mrb[0].mxu0
        %v1886 = vadd.f32 0.0, %v1885
        %v1887 = vpop.f32.mrb[0].mxu0
        %v1888 = vadd.f32 0.0, %v1887
        %1889 = vmatprep.mubr.f32.mxu0 0.0
        %1890 = vmatmul.mubr.f32.gmra.mrb[0].mxu0 %v1555
        %v1891 = vpop.f32.mrb[0].mxu0
        %v1892 = vadd.f32 0.0, %v1891
        %v1893 = vpop.f32.mrb[0].mxu0
        %v1894 = vadd.f32 0.0, %v1893
        %1895 = vdwg.mxu0
        %1896 = vmatprep.subr.mxu0 %v608
        %1897 = vmatpush1.msra.mxu0 %v607
        %1898 = vmatprep.subr.mxu0 %v616
        %1899 = vmatpush1.msra.mxu0 %v615
        %1900 = vmatprep.subr.mxu0 %v624
        %1901 = vmatpush1.msra.mxu0 %v623
        %1902 = vmatprep.subr.mxu0 %v632
        %1903 = vmatpush1.msra.mxu0 %v631
        %1904 = vmatprep.subr.mxu0 0.0
        %1905 = vmatpush1.msra.mxu0 0.0
        %1906 = vmatprep.subr.mxu0 0.0
        %1907 = vmatpush1.msra.mxu0 0.0
        %1908 = vmatprep.subr.mxu0 0.0
        %1909 = vmatpush1.msra.mxu0 0.0
        %1910 = vmatprep.subr.mxu0 0.0
        %1911 = vmatpush1.msra.mxu0 0.0
        %1912 = vmatprep.subr.mxu0 0.0
        %1913 = vmatpush1.msra.mxu0 0.0
        %1914 = vmatprep.subr.mxu0 0.0
        %1915 = vmatpush1.msra.mxu0 0.0
        %1916 = vmatprep.subr.mxu0 0.0
        %1917 = vmatpush1.msra.mxu0 0.0
        %1918 = vmatprep.subr.mxu0 0.0
        %1919 = vmatpush1.msra.mxu0 0.0
        %1920 = vmatprep.subr.mxu0 0.0
        %1921 = vmatpush1.msra.mxu0 0.0
        %1922 = vmatprep.subr.mxu0 0.0
        %1923 = vmatpush1.msra.mxu0 0.0
        %1924 = vmatprep.subr.mxu0 0.0
        %1925 = vmatpush1.msra.mxu0 0.0
        %1926 = vmatprep.subr.mxu0 0.0
        %1927 = vmatpush1.msra.mxu0 0.0
        %1928 = vmatprep.subr.mxu0 0.0
        %1929 = vmatpush1.msra.mxu0 0.0
        %1930 = vmatprep.subr.mxu0 0.0
        %1931 = vmatpush1.msra.mxu0 0.0
        %1932 = vmatprep.subr.mxu0 0.0
        %1933 = vmatpush1.msra.mxu0 0.0
        %1934 = vmatprep.subr.mxu0 0.0
        %1935 = vmatpush1.msra.mxu0 0.0
        %1936 = vmatprep.subr.mxu0 0.0
        %1937 = vmatpush1.msra.mxu0 0.0
        %1938 = vmatprep.subr.mxu0 0.0
        %1939 = vmatpush1.msra.mxu0 0.0
        %1940 = vmatprep.subr.mxu0 0.0
        %1941 = vmatpush1.msra.mxu0 0.0
        %1942 = vmatprep.subr.mxu0 0.0
        %1943 = vmatpush1.msra.mxu0 0.0
        %1944 = vmatprep.subr.mxu0 0.0
        %1945 = vmatpush1.msra.mxu0 0.0
        %1946 = vmatprep.subr.mxu0 0.0
        %1947 = vmatpush1.msra.mxu0 0.0
        %1948 = vmatprep.subr.mxu0 0.0
        %1949 = vmatpush1.msra.mxu0 0.0
        %1950 = vmatprep.subr.mxu0 0.0
        %1951 = vmatpush1.msra.mxu0 0.0
        %1952 = vmatprep.subr.mxu0 0.0
        %1953 = vmatpush1.msra.mxu0 0.0
        %1954 = vmatprep.subr.mxu0 0.0
        %1955 = vmatpush1.msra.mxu0 0.0
        %1956 = vmatprep.subr.mxu0 0.0
        %1957 = vmatpush1.msra.mxu0 0.0
        %1958 = vmatprep.subr.mxu0 0.0
        %1959 = vmatpush1.msra.mxu0 0.0
        %1960 = vmatprep.mubr.f32.mxu0 0.0
        %1961 = vmatmul.mubr.f32.gmra.mrb[0].mxu0 %v1534
        %v1962 = vpop.f32.mrb[0].mxu0
        %v1963 = vadd.f32 0.0, %v1962
        %v1964 = vpop.f32.mrb[0].mxu0
        %v1965 = vadd.f32 0.0, %v1964
        %1966 = vmatprep.mubr.f32.mxu0 0.0
        %1967 = vmatmul.mubr.f32.gmra.mrb[0].mxu0 %v1537
        %v1968 = vpop.f32.mrb[0].mxu0
        %v1969 = vadd.f32 0.0, %v1968
        %v1970 = vpop.f32.mrb[0].mxu0
        %v1971 = vadd.f32 0.0, %v1970
        %1972 = vmatprep.mubr.f32.mxu0 0.0
        %1973 = vmatmul.mubr.f32.gmra.mrb[0].mxu0 %v1540
        %v1974 = vpop.f32.mrb[0].mxu0
        %v1975 = vadd.f32 0.0, %v1974
        %v1976 = vpop.f32.mrb[0].mxu0
        %v1977 = vadd.f32 0.0, %v1976
        %1978 = vmatprep.mubr.f32.mxu0 0.0
        %1979 = vmatmul.mubr.f32.gmra.mrb[0].mxu0 %v1543
        %v1980 = vpop.f32.mrb[0].mxu0
        %v1981 = vadd.f32 0.0, %v1980
        %v1982 = vpop.f32.mrb[0].mxu0
        %v1983 = vadd.f32 0.0, %v1982
        %1984 = vmatprep.mubr.f32.mxu0 0.0
        %1985 = vmatmul.mubr.f32.gmra.mrb[0].mxu0 %v1546
        %v1986 = vpop.f32.mrb[0].mxu0
        %v1987 = vadd.f32 0.0, %v1986
        %v1988 = vpop.f32.mrb[0].mxu0
        %v1989 = vadd.f32 0.0, %v1988
        %1990 = vmatprep.mubr.f32.mxu0 0.0
        %1991 = vmatmul.mubr.f32.gmra.mrb[0].mxu0 %v1549
        %v1992 = vpop.f32.mrb[0].mxu0
        %v1993 = vadd.f32 0.0, %v1992
        %v1994 = vpop.f32.mrb[0].mxu0
        %v1995 = vadd.f32 0.0, %v1994
        %1996 = vmatprep.mubr.f32.mxu0 0.0
        %1997 = vmatmul.mubr.f32.gmra.mrb[0].mxu0 %v1552
        %v1998 = vpop.f32.mrb[0].mxu0
        %v1999 = vadd.f32 0.0, %v1998
        %v2000 = vpop.f32.mrb[0].mxu0
        %v2001 = vadd.f32 0.0, %v2000
        %2002 = vmatprep.mubr.f32.mxu0 0.0
        %2003 = vmatmul.mubr.f32.gmra.mrb[0].mxu0 %v1555
        %v2004 = vpop.f32.mrb[0].mxu0
        %v2005 = vadd.f32 0.0, %v2004
        %v2006 = vpop.f32.mrb[0].mxu0
        %v2007 = vadd.f32 0.0, %v2006
        %2008 = vdwg.mxu0
        %v2009 = vmul.f32 %v1148, %v1624
        %v2010 = vmul.f32 %v1150, %v1626
        %v2011 = vmul.f32 %v1261, %v1737
        %v2012 = vmul.f32 %v1263, %v1739
        %v2013 = vmul.f32 %v1374, %v1850
        %v2014 = vmul.f32 %v1376, %v1852
        %v2015 = vmul.f32 %v1487, %v1963
        %v2016 = vmul.f32 %v1489, %v1965
        %v2017 = vmul.f32 %v1154, %v1630
        %v2018 = vmul.f32 %v1156, %v1632
        %v2019 = vmul.f32 %v1267, %v1743
        %v2020 = vmul.f32 %v1269, %v1745
        %v2021 = vmul.f32 %v1380, %v1856
        %v2022 = vmul.f32 %v1382, %v1858
        %v2023 = vmul.f32 %v1493, %v1969
        %v2024 = vmul.f32 %v1495, %v1971
        %v2025 = vmul.f32 %v1160, %v1636
        %v2026 = vmul.f32 %v1162, %v1638
        %v2027 = vmul.f32 %v1273, %v1749
        %v2028 = vmul.f32 %v1275, %v1751
        %v2029 = vmul.f32 %v1386, %v1862
        %v2030 = vmul.f32 %v1388, %v1864
        %v2031 = vmul.f32 %v1499, %v1975
        %v2032 = vmul.f32 %v1501, %v1977
        %v2033 = vmul.f32 %v1166, %v1642
        %v2034 = vmul.f32 %v1168, %v1644
        %v2035 = vmul.f32 %v1279, %v1755
        %v2036 = vmul.f32 %v1281, %v1757
        %v2037 = vmul.f32 %v1392, %v1868
        %v2038 = vmul.f32 %v1394, %v1870
        %v2039 = vmul.f32 %v1505, %v1981
        %v2040 = vmul.f32 %v1507, %v1983
        %v2041 = vmul.f32 %v1172, %v1648
        %v2042 = vmul.f32 %v1174, %v1650
        %v2043 = vmul.f32 %v1285, %v1761
        %v2044 = vmul.f32 %v1287, %v1763
        %v2045 = vmul.f32 %v1398, %v1874
        %v2046 = vmul.f32 %v1400, %v1876
        %v2047 = vmul.f32 %v1511, %v1987
        %v2048 = vmul.f32 %v1513, %v1989
        %v2049 = vmul.f32 %v1178, %v1654
        %v2050 = vmul.f32 %v1180, %v1656
        %v2051 = vmul.f32 %v1291, %v1767
        %v2052 = vmul.f32 %v1293, %v1769
        %v2053 = vmul.f32 %v1404, %v1880
        %v2054 = vmul.f32 %v1406, %v1882
        %v2055 = vmul.f32 %v1517, %v1993
        %v2056 = vmul.f32 %v1519, %v1995
        %v2057 = vmul.f32 %v1184, %v1660
        %v2058 = vmul.f32 %v1186, %v1662
        %v2059 = vmul.f32 %v1297, %v1773
        %v2060 = vmul.f32 %v1299, %v1775
        %v2061 = vmul.f32 %v1410, %v1886
        %v2062 = vmul.f32 %v1412, %v1888
        %v2063 = vmul.f32 %v1523, %v1999
        %v2064 = vmul.f32 %v1525, %v2001
        %v2065 = vmul.f32 %v1190, %v1666
        %v2066 = vmul.f32 %v1192, %v1668
        %v2067 = vmul.f32 %v1303, %v1779
        %v2068 = vmul.f32 %v1305, %v1781
        %v2069 = vmul.f32 %v1416, %v1892
        %v2070 = vmul.f32 %v1418, %v1894
        %v2071 = vmul.f32 %v1529, %v2005
        %v2072 = vmul.f32 %v1531, %v2007
        %v2073 = vld [vmem:[%s8] sm:$0xff]
        %v2074 = vld [vmem:[%s8 + $0x8] sm:$0xff]
        %v2075 = vld [vmem:[%s8 + $0x10] sm:$0xff]
        %v2076 = vld [vmem:[%s8 + $0x18] sm:$0xff]
        %v2077 = vld [vmem:[%s8 + $0x20] sm:$0xff]
        %v2078 = vld [vmem:[%s8 + $0x28] sm:$0xff]
        %v2079 = vld [vmem:[%s8 + $0x30] sm:$0xff]
        %v2080 = vld [vmem:[%s8 + $0x38] sm:$0xff]
        %v2081 = vld [vmem:[%s8 + $0x40] sm:$0xff]
        %v2082 = vld [vmem:[%s8 + $0x48] sm:$0xff]
        %v2083 = vld [vmem:[%s8 + $0x50] sm:$0xff]
        %v2084 = vld [vmem:[%s8 + $0x58] sm:$0xff]
        %v2085 = vld [vmem:[%s8 + $0x60] sm:$0xff]
        %v2086 = vld [vmem:[%s8 + $0x68] sm:$0xff]
        %v2087 = vld [vmem:[%s8 + $0x70] sm:$0xff]
        %v2088 = vld [vmem:[%s8 + $0x78] sm:$0xff]
        %v2089 = vld [vmem:[%s8 + $0x80] sm:$0xff]
        %v2090 = vld [vmem:[%s8 + $0x88] sm:$0xff]
        %v2091 = vld [vmem:[%s8 + $0x90] sm:$0xff]
        %v2092 = vld [vmem:[%s8 + $0x98] sm:$0xff]
        %v2093 = vld [vmem:[%s8 + $0xa0] sm:$0xff]
        %v2094 = vld [vmem:[%s8 + $0xa8] sm:$0xff]
        %v2095 = vld [vmem:[%s8 + $0xb0] sm:$0xff]
        %v2096 = vld [vmem:[%s8 + $0xb8] sm:$0xff]
        %v2097 = vld [vmem:[%s8 + $0xc0] sm:$0xff]
        %v2098 = vld [vmem:[%s8 + $0xc8] sm:$0xff]
        %v2099 = vld [vmem:[%s8 + $0xd0] sm:$0xff]
        %v2100 = vld [vmem:[%s8 + $0xd8] sm:$0xff]
        %v2101 = vld [vmem:[%s8 + $0xe0] sm:$0xff]
        %v2102 = vld [vmem:[%s8 + $0xe8] sm:$0xff]
        %v2103 = vld [vmem:[%s8 + $0xf0] sm:$0xff]
        %v2104 = vld [vmem:[%s8 + $0xf8] sm:$0xff]
        %v2105 = vld [vmem:[%s8 + $0x100] sm:$0xff]
        %v2106 = vld [vmem:[%s8 + $0x108] sm:$0xff]
        %v2107 = vld [vmem:[%s8 + $0x110] sm:$0xff]
        %v2108 = vld [vmem:[%s8 + $0x118] sm:$0xff]
        %v2109 = vld [vmem:[%s8 + $0x120] sm:$0xff]
        %v2110 = vld [vmem:[%s8 + $0x128] sm:$0xff]
        %v2111 = vld [vmem:[%s8 + $0x130] sm:$0xff]
        %v2112 = vld [vmem:[%s8 + $0x138] sm:$0xff]
        %v2113 = vld [vmem:[%s8 + $0x140] sm:$0xff]
        %v2114 = vld [vmem:[%s8 + $0x148] sm:$0xff]
        %v2115 = vld [vmem:[%s8 + $0x150] sm:$0xff]
        %v2116 = vld [vmem:[%s8 + $0x158] sm:$0xff]
        %v2117 = vld [vmem:[%s8 + $0x160] sm:$0xff]
        %v2118 = vld [vmem:[%s8 + $0x168] sm:$0xff]
        %v2119 = vld [vmem:[%s8 + $0x170] sm:$0xff]
        %v2120 = vld [vmem:[%s8 + $0x178] sm:$0xff]
        %v2121 = vld [vmem:[%s8 + $0x180] sm:$0xff]
        %v2122 = vld [vmem:[%s8 + $0x188] sm:$0xff]
        %v2123 = vld [vmem:[%s8 + $0x190] sm:$0xff]
        %v2124 = vld [vmem:[%s8 + $0x198] sm:$0xff]
        %v2125 = vld [vmem:[%s8 + $0x1a0] sm:$0xff]
        %v2126 = vld [vmem:[%s8 + $0x1a8] sm:$0xff]
        %v2127 = vld [vmem:[%s8 + $0x1b0] sm:$0xff]
        %v2128 = vld [vmem:[%s8 + $0x1b8] sm:$0xff]
        %v2129 = vld [vmem:[%s8 + $0x1c0] sm:$0xff]
        %v2130 = vld [vmem:[%s8 + $0x1c8] sm:$0xff]
        %v2131 = vld [vmem:[%s8 + $0x1d0] sm:$0xff]
        %v2132 = vld [vmem:[%s8 + $0x1d8] sm:$0xff]
        %v2133 = vld [vmem:[%s8 + $0x1e0] sm:$0xff]
        %v2134 = vld [vmem:[%s8 + $0x1e8] sm:$0xff]
        %v2135 = vld [vmem:[%s8 + $0x1f0] sm:$0xff]
        %v2136 = vld [vmem:[%s8 + $0x1f8] sm:$0xff]
        %v2137 = vld [vmem:[%s8 + $0x200] sm:$0xff]
        %v2138 = vld [vmem:[%s8 + $0x208] sm:$0xff]
        %v2139 = vld [vmem:[%s8 + $0x210] sm:$0xff]
        %v2140 = vld [vmem:[%s8 + $0x218] sm:$0xff]
        %v2141 = vld [vmem:[%s8 + $0x220] sm:$0xff]
        %v2142 = vld [vmem:[%s8 + $0x228] sm:$0xff]
        %v2143 = vld [vmem:[%s8 + $0x230] sm:$0xff]
        %v2144 = vld [vmem:[%s8 + $0x238] sm:$0xff]
        %v2145 = vld [vmem:[%s8 + $0x240] sm:$0xff]
        %v2146 = vld [vmem:[%s8 + $0x248] sm:$0xff]
        %v2147 = vld [vmem:[%s8 + $0x250] sm:$0xff]
        %v2148 = vld [vmem:[%s8 + $0x258] sm:$0xff]
        %v2149 = vld [vmem:[%s8 + $0x260] sm:$0xff]
        %v2150 = vld [vmem:[%s8 + $0x268] sm:$0xff]
        %v2151 = vld [vmem:[%s8 + $0x270] sm:$0xff]
        %v2152 = vld [vmem:[%s8 + $0x278] sm:$0xff]
        %v2153 = vld [vmem:[%s8 + $0x280] sm:$0xff]
        %v2154 = vld [vmem:[%s8 + $0x288] sm:$0xff]
        %v2155 = vld [vmem:[%s8 + $0x290] sm:$0xff]
        %v2156 = vld [vmem:[%s8 + $0x298] sm:$0xff]
        %v2157 = vld [vmem:[%s8 + $0x2a0] sm:$0xff]
        %v2158 = vld [vmem:[%s8 + $0x2a8] sm:$0xff]
        %v2159 = vld [vmem:[%s8 + $0x2b0] sm:$0xff]
        %v2160 = vld [vmem:[%s8 + $0x2b8] sm:$0xff]
        %v2161 = vld [vmem:[%s8 + $0x2c0] sm:$0xff]
        %v2162 = vld [vmem:[%s8 + $0x2c8] sm:$0xff]
        %v2163 = vld [vmem:[%s8 + $0x2d0] sm:$0xff]
        %v2164 = vld [vmem:[%s8 + $0x2d8] sm:$0xff]
        %v2165 = vld [vmem:[%s8 + $0x2e0] sm:$0xff]
        %v2166 = vld [vmem:[%s8 + $0x2e8] sm:$0xff]
        %v2167 = vld [vmem:[%s8 + $0x2f0] sm:$0xff]
        %v2168 = vld [vmem:[%s8 + $0x2f8] sm:$0xff]
        %v2169 = vld [vmem:[%s8 + $0x300] sm:$0xff]
        %v2170 = vld [vmem:[%s8 + $0x308] sm:$0xff]
        %v2171 = vld [vmem:[%s8 + $0x310] sm:$0xff]
        %v2172 = vld [vmem:[%s8 + $0x318] sm:$0xff]
        %v2173 = vld [vmem:[%s8 + $0x320] sm:$0xff]
        %v2174 = vld [vmem:[%s8 + $0x328] sm:$0xff]
        %v2175 = vld [vmem:[%s8 + $0x330] sm:$0xff]
        %v2176 = vld [vmem:[%s8 + $0x338] sm:$0xff]
        %v2177 = vld [vmem:[%s8 + $0x340] sm:$0xff]
        %v2178 = vld [vmem:[%s8 + $0x348] sm:$0xff]
        %v2179 = vld [vmem:[%s8 + $0x350] sm:$0xff]
        %v2180 = vld [vmem:[%s8 + $0x358] sm:$0xff]
        %v2181 = vld [vmem:[%s8 + $0x360] sm:$0xff]
        %v2182 = vld [vmem:[%s8 + $0x368] sm:$0xff]
        %v2183 = vld [vmem:[%s8 + $0x370] sm:$0xff]
        %v2184 = vld [vmem:[%s8 + $0x378] sm:$0xff]
        %v2185 = vld [vmem:[%s8 + $0x380] sm:$0xff]
        %v2186 = vld [vmem:[%s8 + $0x388] sm:$0xff]
        %v2187 = vld [vmem:[%s8 + $0x390] sm:$0xff]
        %v2188 = vld [vmem:[%s8 + $0x398] sm:$0xff]
        %v2189 = vld [vmem:[%s8 + $0x3a0] sm:$0xff]
        %v2190 = vld [vmem:[%s8 + $0x3a8] sm:$0xff]
        %v2191 = vld [vmem:[%s8 + $0x3b0] sm:$0xff]
        %v2192 = vld [vmem:[%s8 + $0x3b8] sm:$0xff]
        %v2193 = vld [vmem:[%s8 + $0x3c0] sm:$0xff]
        %v2194 = vld [vmem:[%s8 + $0x3c8] sm:$0xff]
        %v2195 = vld [vmem:[%s8 + $0x3d0] sm:$0xff]
        %v2196 = vld [vmem:[%s8 + $0x3d8] sm:$0xff]
        %v2197 = vld [vmem:[%s8 + $0x3e0] sm:$0xff]
        %v2198 = vld [vmem:[%s8 + $0x3e8] sm:$0xff]
        %v2199 = vld [vmem:[%s8 + $0x3f0] sm:$0xff]
        %v2200 = vld [vmem:[%s8 + $0x3f8] sm:$0xff]
        %v2201 = vld [vmem:[%s9] sm:$0xff]
        %v2202 = vld [vmem:[%s9 + $0x8] sm:$0xff]
        %v2203 = vld [vmem:[%s9 + $0x10] sm:$0xff]
        %v2204 = vld [vmem:[%s9 + $0x18] sm:$0xff]
        %2205 = vmatprep.subr.mxu0 0.0
        %2206 = vmatpush1.msra.mxu0 %v2201
        %2207 = vmatprep.subr.mxu0 0.0
        %2208 = vmatpush1.msra.mxu0 %v2202
        %2209 = vmatprep.subr.mxu0 0.0
        %2210 = vmatpush1.msra.mxu0 %v2203
        %2211 = vmatprep.subr.mxu0 0.0
        %2212 = vmatpush1.msra.mxu0 %v2204
        %2213 = vmatprep.subr.mxu0 0.0
        %2214 = vmatpush1.msra.mxu0 0.0
        %2215 = vmatprep.subr.mxu0 0.0
        %2216 = vmatpush1.msra.mxu0 0.0
        %2217 = vmatprep.subr.mxu0 0.0
        %2218 = vmatpush1.msra.mxu0 0.0
        %2219 = vmatprep.subr.mxu0 0.0
        %2220 = vmatpush1.msra.mxu0 0.0
        %2221 = vmatprep.subr.mxu0 0.0
        %2222 = vmatpush1.msra.mxu0 0.0
        %2223 = vmatprep.subr.mxu0 0.0
        %2224 = vmatpush1.msra.mxu0 0.0
        %2225 = vmatprep.subr.mxu0 0.0
        %2226 = vmatpush1.msra.mxu0 0.0
        %2227 = vmatprep.subr.mxu0 0.0
        %2228 = vmatpush1.msra.mxu0 0.0
        %2229 = vmatprep.subr.mxu0 0.0
        %2230 = vmatpush1.msra.mxu0 0.0
        %2231 = vmatprep.subr.mxu0 0.0
        %2232 = vmatpush1.msra.mxu0 0.0
        %2233 = vmatprep.subr.mxu0 0.0
        %2234 = vmatpush1.msra.mxu0 0.0
        %2235 = vmatprep.subr.mxu0 0.0
        %2236 = vmatpush1.msra.mxu0 0.0
        %2237 = vmatprep.subr.mxu0 0.0
        %2238 = vmatpush1.msra.mxu0 0.0
        %2239 = vmatprep.subr.mxu0 0.0
        %2240 = vmatpush1.msra.mxu0 0.0
        %2241 = vmatprep.subr.mxu0 0.0
        %2242 = vmatpush1.msra.mxu0 0.0
        %2243 = vmatprep.subr.mxu0 0.0
        %2244 = vmatpush1.msra.mxu0 0.0
        %2245 = vmatprep.subr.mxu0 0.0
        %2246 = vmatpush1.msra.mxu0 0.0
        %2247 = vmatprep.subr.mxu0 0.0
        %2248 = vmatpush1.msra.mxu0 0.0
        %2249 = vmatprep.subr.mxu0 0.0
        %2250 = vmatpush1.msra.mxu0 0.0
        %2251 = vmatprep.subr.mxu0 0.0
        %2252 = vmatpush1.msra.mxu0 0.0
        %2253 = vmatprep.subr.mxu0 0.0
        %2254 = vmatpush1.msra.mxu0 0.0
        %2255 = vmatprep.subr.mxu0 0.0
        %2256 = vmatpush1.msra.mxu0 0.0
        %2257 = vmatprep.subr.mxu0 0.0
        %2258 = vmatpush1.msra.mxu0 0.0
        %2259 = vmatprep.subr.mxu0 0.0
        %2260 = vmatpush1.msra.mxu0 0.0
        %2261 = vmatprep.subr.mxu0 0.0
        %2262 = vmatpush1.msra.mxu0 0.0
        %2263 = vmatprep.subr.mxu0 0.0
        %2264 = vmatpush1.msra.mxu0 0.0
        %2265 = vmatprep.subr.mxu0 0.0
        %2266 = vmatpush1.msra.mxu0 0.0
        %2267 = vmatprep.subr.mxu0 0.0
        %2268 = vmatpush1.msra.mxu0 0.0
        %2269 = vmatprep.mubr.f32.mxu0 0.0
        %2270 = vmatmul.mubr.f32.gmra.mrb[0].mxu0 %v1058
        %v2271 = vpop.f32.mrb[0].mxu0
        %v2272 = vadd.f32 0.0, %v2271
        %v2273 = vpop.f32.mrb[0].mxu0
        %2274 = vmatprep.mubr.f32.mxu0 0.0
        %2275 = vmatmul.mubr.f32.gmra.mrb[0].mxu0 %v1061
        %v2276 = vpop.f32.mrb[0].mxu0
        %v2277 = vadd.f32 0.0, %v2276
        %v2278 = vpop.f32.mrb[0].mxu0
        %2279 = vmatprep.mubr.f32.mxu0 0.0
        %2280 = vmatmul.mubr.f32.gmra.mrb[0].mxu0 %v1064
        %v2281 = vpop.f32.mrb[0].mxu0
        %v2282 = vadd.f32 0.0, %v2281
        %v2283 = vpop.f32.mrb[0].mxu0
        %2284 = vmatprep.mubr.f32.mxu0 0.0
        %2285 = vmatmul.mubr.f32.gmra.mrb[0].mxu0 %v1067
        %v2286 = vpop.f32.mrb[0].mxu0
        %v2287 = vadd.f32 0.0, %v2286
        %v2288 = vpop.f32.mrb[0].mxu0
        %2289 = vmatprep.mubr.f32.mxu0 0.0
        %2290 = vmatmul.mubr.f32.gmra.mrb[0].mxu0 %v1070
        %v2291 = vpop.f32.mrb[0].mxu0
        %v2292 = vadd.f32 0.0, %v2291
        %v2293 = vpop.f32.mrb[0].mxu0
        %2294 = vmatprep.mubr.f32.mxu0 0.0
        %2295 = vmatmul.mubr.f32.gmra.mrb[0].mxu0 %v1073
        %v2296 = vpop.f32.mrb[0].mxu0
        %v2297 = vadd.f32 0.0, %v2296
        %v2298 = vpop.f32.mrb[0].mxu0
        %2299 = vmatprep.mubr.f32.mxu0 0.0
        %2300 = vmatmul.mubr.f32.gmra.mrb[0].mxu0 %v1076
        %v2301 = vpop.f32.mrb[0].mxu0
        %v2302 = vadd.f32 0.0, %v2301
        %v2303 = vpop.f32.mrb[0].mxu0
        %2304 = vmatprep.mubr.f32.mxu0 0.0
        %2305 = vmatmul.mubr.f32.gmra.mrb[0].mxu0 %v1079
        %v2306 = vpop.f32.mrb[0].mxu0
        %v2307 = vadd.f32 0.0, %v2306
        %v2308 = vpop.f32.mrb[0].mxu0
        %2309 = vdwg.mxu0
        %2310 = vmatprep.subr.mxu0 0.0
        %2311 = vmatpush1.msra.mxu0 %v2073
        %2312 = vmatprep.subr.mxu0 0.0
        %2313 = vmatpush1.msra.mxu0 %v2074
        %2314 = vmatprep.subr.mxu0 0.0
        %2315 = vmatpush1.msra.mxu0 %v2075
        %2316 = vmatprep.subr.mxu0 0.0
        %2317 = vmatpush1.msra.mxu0 %v2076
        %2318 = vmatprep.subr.mxu0 0.0
        %2319 = vmatpush1.msra.mxu0 %v2077
        %2320 = vmatprep.subr.mxu0 0.0
        %2321 = vmatpush1.msra.mxu0 %v2078
        %2322 = vmatprep.subr.mxu0 0.0
        %2323 = vmatpush1.msra.mxu0 %v2079
        %2324 = vmatprep.subr.mxu0 0.0
        %2325 = vmatpush1.msra.mxu0 %v2080
        %2326 = vmatprep.subr.mxu0 0.0
        %2327 = vmatpush1.msra.mxu0 %v2081
        %2328 = vmatprep.subr.mxu0 0.0
        %2329 = vmatpush1.msra.mxu0 %v2082
        %2330 = vmatprep.subr.mxu0 0.0
        %2331 = vmatpush1.msra.mxu0 %v2083
        %2332 = vmatprep.subr.mxu0 0.0
        %2333 = vmatpush1.msra.mxu0 %v2084
        %2334 = vmatprep.subr.mxu0 0.0
        %2335 = vmatpush1.msra.mxu0 %v2085
        %2336 = vmatprep.subr.mxu0 0.0
        %2337 = vmatpush1.msra.mxu0 %v2086
        %2338 = vmatprep.subr.mxu0 0.0
        %2339 = vmatpush1.msra.mxu0 %v2087
        %2340 = vmatprep.subr.mxu0 0.0
        %2341 = vmatpush1.msra.mxu0 %v2088
        %2342 = vmatprep.subr.mxu0 0.0
        %2343 = vmatpush1.msra.mxu0 %v2089
        %2344 = vmatprep.subr.mxu0 0.0
        %2345 = vmatpush1.msra.mxu0 %v2090
        %2346 = vmatprep.subr.mxu0 0.0
        %2347 = vmatpush1.msra.mxu0 %v2091
        %2348 = vmatprep.subr.mxu0 0.0
        %2349 = vmatpush1.msra.mxu0 %v2092
        %2350 = vmatprep.subr.mxu0 0.0
        %2351 = vmatpush1.msra.mxu0 %v2093
        %2352 = vmatprep.subr.mxu0 0.0
        %2353 = vmatpush1.msra.mxu0 %v2094
        %2354 = vmatprep.subr.mxu0 0.0
        %2355 = vmatpush1.msra.mxu0 %v2095
        %2356 = vmatprep.subr.mxu0 0.0
        %2357 = vmatpush1.msra.mxu0 %v2096
        %2358 = vmatprep.subr.mxu0 0.0
        %2359 = vmatpush1.msra.mxu0 %v2097
        %2360 = vmatprep.subr.mxu0 0.0
        %2361 = vmatpush1.msra.mxu0 %v2098
        %2362 = vmatprep.subr.mxu0 0.0
        %2363 = vmatpush1.msra.mxu0 %v2099
        %2364 = vmatprep.subr.mxu0 0.0
        %2365 = vmatpush1.msra.mxu0 %v2100
        %2366 = vmatprep.subr.mxu0 0.0
        %2367 = vmatpush1.msra.mxu0 %v2101
        %2368 = vmatprep.subr.mxu0 0.0
        %2369 = vmatpush1.msra.mxu0 %v2102
        %2370 = vmatprep.subr.mxu0 0.0
        %2371 = vmatpush1.msra.mxu0 %v2103
        %2372 = vmatprep.subr.mxu0 0.0
        %2373 = vmatpush1.msra.mxu0 %v2104
        %2374 = vmatprep.mubr.f32.mxu0 %v2010
        %2375 = vmatmul.mubr.f32.gmra.mrb[0].mxu0 %v2009
        %v2376 = vpop.f32.mrb[0].mxu0
        %v2377 = vadd.f32 %v2272, %v2376
        %v2378 = vpop.f32.mrb[0].mxu0
        %2379 = vmatprep.mubr.f32.mxu0 %v2018
        %2380 = vmatmul.mubr.f32.gmra.mrb[0].mxu0 %v2017
        %v2381 = vpop.f32.mrb[0].mxu0
        %v2382 = vadd.f32 %v2277, %v2381
        %v2383 = vpop.f32.mrb[0].mxu0
        %2384 = vmatprep.mubr.f32.mxu0 %v2026
        %2385 = vmatmul.mubr.f32.gmra.mrb[0].mxu0 %v2025
        %v2386 = vpop.f32.mrb[0].mxu0
        %v2387 = vadd.f32 %v2282, %v2386
        %v2388 = vpop.f32.mrb[0].mxu0
        %2389 = vmatprep.mubr.f32.mxu0 %v2034
        %2390 = vmatmul.mubr.f32.gmra.mrb[0].mxu0 %v2033
        %v2391 = vpop.f32.mrb[0].mxu0
        %v2392 = vadd.f32 %v2287, %v2391
        %v2393 = vpop.f32.mrb[0].mxu0
        %2394 = vmatprep.mubr.f32.mxu0 %v2042
        %2395 = vmatmul.mubr.f32.gmra.mrb[0].mxu0 %v2041
        %v2396 = vpop.f32.mrb[0].mxu0
        %v2397 = vadd.f32 %v2292, %v2396
        %v2398 = vpop.f32.mrb[0].mxu0
        %2399 = vmatprep.mubr.f32.mxu0 %v2050
        %2400 = vmatmul.mubr.f32.gmra.mrb[0].mxu0 %v2049
        %v2401 = vpop.f32.mrb[0].mxu0
        %v2402 = vadd.f32 %v2297, %v2401
        %v2403 = vpop.f32.mrb[0].mxu0
        %2404 = vmatprep.mubr.f32.mxu0 %v2058
        %2405 = vmatmul.mubr.f32.gmra.mrb[0].mxu0 %v2057
        %v2406 = vpop.f32.mrb[0].mxu0
        %v2407 = vadd.f32 %v2302, %v2406
        %v2408 = vpop.f32.mrb[0].mxu0
        %2409 = vmatprep.mubr.f32.mxu0 %v2066
        %2410 = vmatmul.mubr.f32.gmra.mrb[0].mxu0 %v2065
        %v2411 = vpop.f32.mrb[0].mxu0
        %v2412 = vadd.f32 %v2307, %v2411
        %v2413 = vpop.f32.mrb[0].mxu0
        %2414 = vdwg.mxu0
        %2415 = vmatprep.subr.mxu0 0.0
        %2416 = vmatpush1.msra.mxu0 %v2105
        %2417 = vmatprep.subr.mxu0 0.0
        %2418 = vmatpush1.msra.mxu0 %v2106
        %2419 = vmatprep.subr.mxu0 0.0
        %2420 = vmatpush1.msra.mxu0 %v2107
        %2421 = vmatprep.subr.mxu0 0.0
        %2422 = vmatpush1.msra.mxu0 %v2108
        %2423 = vmatprep.subr.mxu0 0.0
        %2424 = vmatpush1.msra.mxu0 %v2109
        %2425 = vmatprep.subr.mxu0 0.0
        %2426 = vmatpush1.msra.mxu0 %v2110
        %2427 = vmatprep.subr.mxu0 0.0
        %2428 = vmatpush1.msra.mxu0 %v2111
        %2429 = vmatprep.subr.mxu0 0.0
        %2430 = vmatpush1.msra.mxu0 %v2112
        %2431 = vmatprep.subr.mxu0 0.0
        %2432 = vmatpush1.msra.mxu0 %v2113
        %2433 = vmatprep.subr.mxu0 0.0
        %2434 = vmatpush1.msra.mxu0 %v2114
        %2435 = vmatprep.subr.mxu0 0.0
        %2436 = vmatpush1.msra.mxu0 %v2115
        %2437 = vmatprep.subr.mxu0 0.0
        %2438 = vmatpush1.msra.mxu0 %v2116
        %2439 = vmatprep.subr.mxu0 0.0
        %2440 = vmatpush1.msra.mxu0 %v2117
        %2441 = vmatprep.subr.mxu0 0.0
        %2442 = vmatpush1.msra.mxu0 %v2118
        %2443 = vmatprep.subr.mxu0 0.0
        %2444 = vmatpush1.msra.mxu0 %v2119
        %2445 = vmatprep.subr.mxu0 0.0
        %2446 = vmatpush1.msra.mxu0 %v2120
        %2447 = vmatprep.subr.mxu0 0.0
        %2448 = vmatpush1.msra.mxu0 %v2121
        %2449 = vmatprep.subr.mxu0 0.0
        %2450 = vmatpush1.msra.mxu0 %v2122
        %2451 = vmatprep.subr.mxu0 0.0
        %2452 = vmatpush1.msra.mxu0 %v2123
        %2453 = vmatprep.subr.mxu0 0.0
        %2454 = vmatpush1.msra.mxu0 %v2124
        %2455 = vmatprep.subr.mxu0 0.0
        %2456 = vmatpush1.msra.mxu0 %v2125
        %2457 = vmatprep.subr.mxu0 0.0
        %2458 = vmatpush1.msra.mxu0 %v2126
        %2459 = vmatprep.subr.mxu0 0.0
        %2460 = vmatpush1.msra.mxu0 %v2127
        %2461 = vmatprep.subr.mxu0 0.0
        %2462 = vmatpush1.msra.mxu0 %v2128
        %2463 = vmatprep.subr.mxu0 0.0
        %2464 = vmatpush1.msra.mxu0 %v2129
        %2465 = vmatprep.subr.mxu0 0.0
        %2466 = vmatpush1.msra.mxu0 %v2130
        %2467 = vmatprep.subr.mxu0 0.0
        %2468 = vmatpush1.msra.mxu0 %v2131
        %2469 = vmatprep.subr.mxu0 0.0
        %2470 = vmatpush1.msra.mxu0 %v2132
        %2471 = vmatprep.subr.mxu0 0.0
        %2472 = vmatpush1.msra.mxu0 %v2133
        %2473 = vmatprep.subr.mxu0 0.0
        %2474 = vmatpush1.msra.mxu0 %v2134
        %2475 = vmatprep.subr.mxu0 0.0
        %2476 = vmatpush1.msra.mxu0 %v2135
        %2477 = vmatprep.subr.mxu0 0.0
        %2478 = vmatpush1.msra.mxu0 %v2136
        %2479 = vmatprep.mubr.f32.mxu0 %v2012
        %2480 = vmatmul.mubr.f32.gmra.mrb[0].mxu0 %v2011
        %v2481 = vpop.f32.mrb[0].mxu0
        %v2482 = vadd.f32 %v2377, %v2481
        %v2483 = vpop.f32.mrb[0].mxu0
        %2484 = vmatprep.mubr.f32.mxu0 %v2020
        %2485 = vmatmul.mubr.f32.gmra.mrb[0].mxu0 %v2019
        %v2486 = vpop.f32.mrb[0].mxu0
        %v2487 = vadd.f32 %v2382, %v2486
        %v2488 = vpop.f32.mrb[0].mxu0
        %2489 = vmatprep.mubr.f32.mxu0 %v2028
        %2490 = vmatmul.mubr.f32.gmra.mrb[0].mxu0 %v2027
        %v2491 = vpop.f32.mrb[0].mxu0
        %v2492 = vadd.f32 %v2387, %v2491
        %v2493 = vpop.f32.mrb[0].mxu0
        %2494 = vmatprep.mubr.f32.mxu0 %v2036
        %2495 = vmatmul.mubr.f32.gmra.mrb[0].mxu0 %v2035
        %v2496 = vpop.f32.mrb[0].mxu0
        %v2497 = vadd.f32 %v2392, %v2496
        %v2498 = vpop.f32.mrb[0].mxu0
        %2499 = vmatprep.mubr.f32.mxu0 %v2044
        %2500 = vmatmul.mubr.f32.gmra.mrb[0].mxu0 %v2043
        %v2501 = vpop.f32.mrb[0].mxu0
        %v2502 = vadd.f32 %v2397, %v2501
        %v2503 = vpop.f32.mrb[0].mxu0
        %2504 = vmatprep.mubr.f32.mxu0 %v2052
        %2505 = vmatmul.mubr.f32.gmra.mrb[0].mxu0 %v2051
        %v2506 = vpop.f32.mrb[0].mxu0
        %v2507 = vadd.f32 %v2402, %v2506
        %v2508 = vpop.f32.mrb[0].mxu0
        %2509 = vmatprep.mubr.f32.mxu0 %v2060
        %2510 = vmatmul.mubr.f32.gmra.mrb[0].mxu0 %v2059
        %v2511 = vpop.f32.mrb[0].mxu0
        %v2512 = vadd.f32 %v2407, %v2511
        %v2513 = vpop.f32.mrb[0].mxu0
        %2514 = vmatprep.mubr.f32.mxu0 %v2068
        %2515 = vmatmul.mubr.f32.gmra.mrb[0].mxu0 %v2067
        %v2516 = vpop.f32.mrb[0].mxu0
        %v2517 = vadd.f32 %v2412, %v2516
        %v2518 = vpop.f32.mrb[0].mxu0
        %2519 = vdwg.mxu0
        %2520 = vmatprep.subr.mxu0 0.0
        %2521 = vmatpush1.msra.mxu0 %v2137
        %2522 = vmatprep.subr.mxu0 0.0
        %2523 = vmatpush1.msra.mxu0 %v2138
        %2524 = vmatprep.subr.mxu0 0.0
        %2525 = vmatpush1.msra.mxu0 %v2139
        %2526 = vmatprep.subr.mxu0 0.0
        %2527 = vmatpush1.msra.mxu0 %v2140
        %2528 = vmatprep.subr.mxu0 0.0
        %2529 = vmatpush1.msra.mxu0 %v2141
        %2530 = vmatprep.subr.mxu0 0.0
        %2531 = vmatpush1.msra.mxu0 %v2142
        %2532 = vmatprep.subr.mxu0 0.0
        %2533 = vmatpush1.msra.mxu0 %v2143
        %2534 = vmatprep.subr.mxu0 0.0
        %2535 = vmatpush1.msra.mxu0 %v2144
        %2536 = vmatprep.subr.mxu0 0.0
        %2537 = vmatpush1.msra.mxu0 %v2145
        %2538 = vmatprep.subr.mxu0 0.0
        %2539 = vmatpush1.msra.mxu0 %v2146
        %2540 = vmatprep.subr.mxu0 0.0
        %2541 = vmatpush1.msra.mxu0 %v2147
        %2542 = vmatprep.subr.mxu0 0.0
        %2543 = vmatpush1.msra.mxu0 %v2148
        %2544 = vmatprep.subr.mxu0 0.0
        %2545 = vmatpush1.msra.mxu0 %v2149
        %2546 = vmatprep.subr.mxu0 0.0
        %2547 = vmatpush1.msra.mxu0 %v2150
        %2548 = vmatprep.subr.mxu0 0.0
        %2549 = vmatpush1.msra.mxu0 %v2151
        %2550 = vmatprep.subr.mxu0 0.0
        %2551 = vmatpush1.msra.mxu0 %v2152
        %2552 = vmatprep.subr.mxu0 0.0
        %2553 = vmatpush1.msra.mxu0 %v2153
        %2554 = vmatprep.subr.mxu0 0.0
        %2555 = vmatpush1.msra.mxu0 %v2154
        %2556 = vmatprep.subr.mxu0 0.0
        %2557 = vmatpush1.msra.mxu0 %v2155
        %2558 = vmatprep.subr.mxu0 0.0
        %2559 = vmatpush1.msra.mxu0 %v2156
        %2560 = vmatprep.subr.mxu0 0.0
        %2561 = vmatpush1.msra.mxu0 %v2157
        %2562 = vmatprep.subr.mxu0 0.0
        %2563 = vmatpush1.msra.mxu0 %v2158
        %2564 = vmatprep.subr.mxu0 0.0
        %2565 = vmatpush1.msra.mxu0 %v2159
        %2566 = vmatprep.subr.mxu0 0.0
        %2567 = vmatpush1.msra.mxu0 %v2160
        %2568 = vmatprep.subr.mxu0 0.0
        %2569 = vmatpush1.msra.mxu0 %v2161
        %2570 = vmatprep.subr.mxu0 0.0
        %2571 = vmatpush1.msra.mxu0 %v2162
        %2572 = vmatprep.subr.mxu0 0.0
        %2573 = vmatpush1.msra.mxu0 %v2163
        %2574 = vmatprep.subr.mxu0 0.0
        %2575 = vmatpush1.msra.mxu0 %v2164
        %2576 = vmatprep.subr.mxu0 0.0
        %2577 = vmatpush1.msra.mxu0 %v2165
        %2578 = vmatprep.subr.mxu0 0.0
        %2579 = vmatpush1.msra.mxu0 %v2166
        %2580 = vmatprep.subr.mxu0 0.0
        %2581 = vmatpush1.msra.mxu0 %v2167
        %2582 = vmatprep.subr.mxu0 0.0
        %2583 = vmatpush1.msra.mxu0 %v2168
        %2584 = vmatprep.mubr.f32.mxu0 %v2014
        %2585 = vmatmul.mubr.f32.gmra.mrb[0].mxu0 %v2013
        %v2586 = vpop.f32.mrb[0].mxu0
        %v2587 = vadd.f32 %v2482, %v2586
        %v2588 = vpop.f32.mrb[0].mxu0
        %2589 = vmatprep.mubr.f32.mxu0 %v2022
        %2590 = vmatmul.mubr.f32.gmra.mrb[0].mxu0 %v2021
        %v2591 = vpop.f32.mrb[0].mxu0
        %v2592 = vadd.f32 %v2487, %v2591
        %v2593 = vpop.f32.mrb[0].mxu0
        %2594 = vmatprep.mubr.f32.mxu0 %v2030
        %2595 = vmatmul.mubr.f32.gmra.mrb[0].mxu0 %v2029
        %v2596 = vpop.f32.mrb[0].mxu0
        %v2597 = vadd.f32 %v2492, %v2596
        %v2598 = vpop.f32.mrb[0].mxu0
        %2599 = vmatprep.mubr.f32.mxu0 %v2038
        %2600 = vmatmul.mubr.f32.gmra.mrb[0].mxu0 %v2037
        %v2601 = vpop.f32.mrb[0].mxu0
        %v2602 = vadd.f32 %v2497, %v2601
        %v2603 = vpop.f32.mrb[0].mxu0
        %2604 = vmatprep.mubr.f32.mxu0 %v2046
        %2605 = vmatmul.mubr.f32.gmra.mrb[0].mxu0 %v2045
        %v2606 = vpop.f32.mrb[0].mxu0
        %v2607 = vadd.f32 %v2502, %v2606
        %v2608 = vpop.f32.mrb[0].mxu0
        %2609 = vmatprep.mubr.f32.mxu0 %v2054
        %2610 = vmatmul.mubr.f32.gmra.mrb[0].mxu0 %v2053
        %v2611 = vpop.f32.mrb[0].mxu0
        %v2612 = vadd.f32 %v2507, %v2611
        %v2613 = vpop.f32.mrb[0].mxu0
        %2614 = vmatprep.mubr.f32.mxu0 %v2062
        %2615 = vmatmul.mubr.f32.gmra.mrb[0].mxu0 %v2061
        %v2616 = vpop.f32.mrb[0].mxu0
        %v2617 = vadd.f32 %v2512, %v2616
        %v2618 = vpop.f32.mrb[0].mxu0
        %2619 = vmatprep.mubr.f32.mxu0 %v2070
        %2620 = vmatmul.mubr.f32.gmra.mrb[0].mxu0 %v2069
        %v2621 = vpop.f32.mrb[0].mxu0
        %v2622 = vadd.f32 %v2517, %v2621
        %v2623 = vpop.f32.mrb[0].mxu0
        %2624 = vdwg.mxu0
        %2625 = vmatprep.subr.mxu0 0.0
        %2626 = vmatpush1.msra.mxu0 %v2169
        %2627 = vmatprep.subr.mxu0 0.0
        %2628 = vmatpush1.msra.mxu0 %v2170
        %2629 = vmatprep.subr.mxu0 0.0
        %2630 = vmatpush1.msra.mxu0 %v2171
        %2631 = vmatprep.subr.mxu0 0.0
        %2632 = vmatpush1.msra.mxu0 %v2172
        %2633 = vmatprep.subr.mxu0 0.0
        %2634 = vmatpush1.msra.mxu0 %v2173
        %2635 = vmatprep.subr.mxu0 0.0
        %2636 = vmatpush1.msra.mxu0 %v2174
        %2637 = vmatprep.subr.mxu0 0.0
        %2638 = vmatpush1.msra.mxu0 %v2175
        %2639 = vmatprep.subr.mxu0 0.0
        %2640 = vmatpush1.msra.mxu0 %v2176
        %2641 = vmatprep.subr.mxu0 0.0
        %2642 = vmatpush1.msra.mxu0 %v2177
        %2643 = vmatprep.subr.mxu0 0.0
        %2644 = vmatpush1.msra.mxu0 %v2178
        %2645 = vmatprep.subr.mxu0 0.0
        %2646 = vmatpush1.msra.mxu0 %v2179
        %2647 = vmatprep.subr.mxu0 0.0
        %2648 = vmatpush1.msra.mxu0 %v2180
        %2649 = vmatprep.subr.mxu0 0.0
        %2650 = vmatpush1.msra.mxu0 %v2181
        %2651 = vmatprep.subr.mxu0 0.0
        %2652 = vmatpush1.msra.mxu0 %v2182
        %2653 = vmatprep.subr.mxu0 0.0
        %2654 = vmatpush1.msra.mxu0 %v2183
        %2655 = vmatprep.subr.mxu0 0.0
        %2656 = vmatpush1.msra.mxu0 %v2184
        %2657 = vmatprep.subr.mxu0 0.0
        %2658 = vmatpush1.msra.mxu0 %v2185
        %2659 = vmatprep.subr.mxu0 0.0
        %2660 = vmatpush1.msra.mxu0 %v2186
        %2661 = vmatprep.subr.mxu0 0.0
        %2662 = vmatpush1.msra.mxu0 %v2187
        %2663 = vmatprep.subr.mxu0 0.0
        %2664 = vmatpush1.msra.mxu0 %v2188
        %2665 = vmatprep.subr.mxu0 0.0
        %2666 = vmatpush1.msra.mxu0 %v2189
        %2667 = vmatprep.subr.mxu0 0.0
        %2668 = vmatpush1.msra.mxu0 %v2190
        %2669 = vmatprep.subr.mxu0 0.0
        %2670 = vmatpush1.msra.mxu0 %v2191
        %2671 = vmatprep.subr.mxu0 0.0
        %2672 = vmatpush1.msra.mxu0 %v2192
        %2673 = vmatprep.subr.mxu0 0.0
        %2674 = vmatpush1.msra.mxu0 %v2193
        %2675 = vmatprep.subr.mxu0 0.0
        %2676 = vmatpush1.msra.mxu0 %v2194
        %2677 = vmatprep.subr.mxu0 0.0
        %2678 = vmatpush1.msra.mxu0 %v2195
        %2679 = vmatprep.subr.mxu0 0.0
        %2680 = vmatpush1.msra.mxu0 %v2196
        %2681 = vmatprep.subr.mxu0 0.0
        %2682 = vmatpush1.msra.mxu0 %v2197
        %2683 = vmatprep.subr.mxu0 0.0
        %2684 = vmatpush1.msra.mxu0 %v2198
        %2685 = vmatprep.subr.mxu0 0.0
        %2686 = vmatpush1.msra.mxu0 %v2199
        %2687 = vmatprep.subr.mxu0 0.0
        %2688 = vmatpush1.msra.mxu0 %v2200
        %2689 = vmatprep.mubr.f32.mxu0 %v2016
        %2690 = vmatmul.mubr.f32.gmra.mrb[0].mxu0 %v2015
        %v2691 = vpop.f32.mrb[0].mxu0
        %v2692 = vadd.f32 %v2587, %v2691
        %v2693 = vpop.f32.mrb[0].mxu0
        %2694 = vmatprep.mubr.f32.mxu0 %v2024
        %2695 = vmatmul.mubr.f32.gmra.mrb[0].mxu0 %v2023
        %v2696 = vpop.f32.mrb[0].mxu0
        %v2697 = vadd.f32 %v2592, %v2696
        %v2698 = vpop.f32.mrb[0].mxu0
        %2699 = vmatprep.mubr.f32.mxu0 %v2032
        %2700 = vmatmul.mubr.f32.gmra.mrb[0].mxu0 %v2031
        %v2701 = vpop.f32.mrb[0].mxu0
        %v2702 = vadd.f32 %v2597, %v2701
        %v2703 = vpop.f32.mrb[0].mxu0
        %2704 = vmatprep.mubr.f32.mxu0 %v2040
        %2705 = vmatmul.mubr.f32.gmra.mrb[0].mxu0 %v2039
        %v2706 = vpop.f32.mrb[0].mxu0
        %v2707 = vadd.f32 %v2602, %v2706
        %v2708 = vpop.f32.mrb[0].mxu0
        %2709 = vmatprep.mubr.f32.mxu0 %v2048
        %2710 = vmatmul.mubr.f32.gmra.mrb[0].mxu0 %v2047
        %v2711 = vpop.f32.mrb[0].mxu0
        %v2712 = vadd.f32 %v2607, %v2711
        %v2713 = vpop.f32.mrb[0].mxu0
        %2714 = vmatprep.mubr.f32.mxu0 %v2056
        %2715 = vmatmul.mubr.f32.gmra.mrb[0].mxu0 %v2055
        %v2716 = vpop.f32.mrb[0].mxu0
        %v2717 = vadd.f32 %v2612, %v2716
        %v2718 = vpop.f32.mrb[0].mxu0
        %2719 = vmatprep.mubr.f32.mxu0 %v2064
        %2720 = vmatmul.mubr.f32.gmra.mrb[0].mxu0 %v2063
        %v2721 = vpop.f32.mrb[0].mxu0
        %v2722 = vadd.f32 %v2617, %v2721
        %v2723 = vpop.f32.mrb[0].mxu0
        %2724 = vmatprep.mubr.f32.mxu0 %v2072
        %2725 = vmatmul.mubr.f32.gmra.mrb[0].mxu0 %v2071
        %v2726 = vpop.f32.mrb[0].mxu0
        %v2727 = vadd.f32 %v2622, %v2726
        %v2728 = vpop.f32.mrb[0].mxu0
        %2729 = vdwg.mxu0
        %v2730 = vld [vmem:[%s10] sm:$0x1]
        %v2732 = vlaneseq
        %v2733 = vshrl.u32 %v2732, 7
        %v2734 = vsub.s32 0, %v2733
        %v2735 = vrot.slane %v2730, %v2734
        %vm2737 = vcmask 523264
        %v2739 = vsel %vm2737, %v565, 0
        %v2742 = vsel %vm2737, %v566, 0
        %v2745 = vsel %vm2737, %v567, 0
        %v2748 = vsel %vm2737, %v568, 0
        %2750 = vmatprep.subr.mxu0 0.0
        %2751 = vmatpush1.msra.mxu0 %v2692
        %2752 = vmatprep.subr.mxu0 0.0
        %2753 = vmatpush1.msra.mxu0 %v2697
        %2754 = vmatprep.subr.mxu0 0.0
        %2755 = vmatpush1.msra.mxu0 %v2702
        %2756 = vmatprep.subr.mxu0 0.0
        %2757 = vmatpush1.msra.mxu0 %v2707
        %2758 = vmatprep.subr.mxu0 0.0
        %2759 = vmatpush1.msra.mxu0 %v2712
        %2760 = vmatprep.subr.mxu0 0.0
        %2761 = vmatpush1.msra.mxu0 %v2717
        %2762 = vmatprep.subr.mxu0 0.0
        %2763 = vmatpush1.msra.mxu0 %v2722
        %2764 = vmatprep.subr.mxu0 0.0
        %2765 = vmatpush1.msra.mxu0 %v2727
        %2766 = vmatprep.subr.mxu0 0.0
        %2767 = vmatpush1.msra.mxu0 0.0
        %2768 = vmatprep.subr.mxu0 0.0
        %2769 = vmatpush1.msra.mxu0 0.0
        %2770 = vmatprep.subr.mxu0 0.0
        %2771 = vmatpush1.msra.mxu0 0.0
        %2772 = vmatprep.subr.mxu0 0.0
        %2773 = vmatpush1.msra.mxu0 0.0
        %2774 = vmatprep.subr.mxu0 0.0
        %2775 = vmatpush1.msra.mxu0 0.0
        %2776 = vmatprep.subr.mxu0 0.0
        %2777 = vmatpush1.msra.mxu0 0.0
        %2778 = vmatprep.subr.mxu0 0.0
        %2779 = vmatpush1.msra.mxu0 0.0
        %2780 = vmatprep.subr.mxu0 0.0
        %2781 = vmatpush1.msra.mxu0 0.0
        %2782 = vmatprep.subr.mxu0 0.0
        %2783 = vmatpush1.msra.mxu0 0.0
        %2784 = vmatprep.subr.mxu0 0.0
        %2785 = vmatpush1.msra.mxu0 0.0
        %2786 = vmatprep.subr.mxu0 0.0
        %2787 = vmatpush1.msra.mxu0 0.0
        %2788 = vmatprep.subr.mxu0 0.0
        %2789 = vmatpush1.msra.mxu0 0.0
        %2790 = vmatprep.subr.mxu0 0.0
        %2791 = vmatpush1.msra.mxu0 0.0
        %2792 = vmatprep.subr.mxu0 0.0
        %2793 = vmatpush1.msra.mxu0 0.0
        %2794 = vmatprep.subr.mxu0 0.0
        %2795 = vmatpush1.msra.mxu0 0.0
        %2796 = vmatprep.subr.mxu0 0.0
        %2797 = vmatpush1.msra.mxu0 0.0
        %2798 = vmatprep.subr.mxu0 0.0
        %2799 = vmatpush1.msra.mxu0 0.0
        %2800 = vmatprep.subr.mxu0 0.0
        %2801 = vmatpush1.msra.mxu0 0.0
        %2802 = vmatprep.subr.mxu0 0.0
        %2803 = vmatpush1.msra.mxu0 0.0
        %2804 = vmatprep.subr.mxu0 0.0
        %2805 = vmatpush1.msra.mxu0 0.0
        %2806 = vmatprep.subr.mxu0 0.0
        %2807 = vmatpush1.msra.mxu0 0.0
        %2808 = vmatprep.subr.mxu0 0.0
        %2809 = vmatpush1.msra.mxu0 0.0
        %2810 = vmatprep.subr.mxu0 0.0
        %2811 = vmatpush1.msra.mxu0 0.0
        %2812 = vmatprep.subr.mxu0 0.0
        %2813 = vmatpush1.msra.mxu0 0.0
        %2814 = vmatprep.mubr.f32.mxu0 0.0
        %2815 = vmatmul.mubr.f32.gmra.mrb[0].mxu0 %v2739
        %v2816 = vpop.f32.mrb[0].mxu0
        %v2817 = vadd.f32 %v2735, %v2816
        %v2818 = vpop.f32.mrb[0].mxu0
        %2819 = vmatprep.mubr.f32.mxu0 0.0
        %2820 = vmatmul.mubr.f32.gmra.mrb[0].mxu0 %v2742
        %v2821 = vpop.f32.mrb[0].mxu0
        %v2822 = vadd.f32 %v2735, %v2821
        %v2823 = vpop.f32.mrb[0].mxu0
        %2824 = vmatprep.mubr.f32.mxu0 0.0
        %2825 = vmatmul.mubr.f32.gmra.mrb[0].mxu0 %v2745
        %v2826 = vpop.f32.mrb[0].mxu0
        %v2827 = vadd.f32 %v2735, %v2826
        %v2828 = vpop.f32.mrb[0].mxu0
        %2829 = vmatprep.mubr.f32.mxu0 0.0
        %2830 = vmatmul.mubr.f32.gmra.mrb[0].mxu0 %v2748
        %v2831 = vpop.f32.mrb[0].mxu0
        %v2832 = vadd.f32 %v2735, %v2831
        %v2833 = vpop.f32.mrb[0].mxu0
        %2834 = vdwg.mxu0
        %v2835 = vsel %vm790, %v2817, 0.0
        %2836 = vadd.xlane.f32.xlu0 %v2835
        %v2837 = vpop.xlane.xlu0 %2836
        %v2838 = vsel %vm790, %v2822, 0.0
        %2839 = vadd.xlane.f32.xlu0 %v2838
        %v2840 = vpop.xlane.xlu0 %2839
        %v2841 = vsel %vm790, %v2827, 0.0
        %2842 = vadd.xlane.f32.xlu0 %v2841
        %v2843 = vpop.xlane.xlu0 %2842
        %v2844 = vsel %vm790, %v2832, 0.0
        %2845 = vadd.xlane.f32.xlu0 %v2844
        %v2846 = vpop.xlane.xlu0 %2845
        %v2847 = vrcp.pop 32.0
        %v2848 = vmul.f32 %v2837, %v2847
        %v2849 = vmul.f32 %v2840, %v2847
        %v2850 = vmul.f32 %v2843, %v2847
        %v2851 = vmul.f32 %v2846, %v2847
        %v2852 = vsub.f32 %v2817, %v2848
        %v2853 = vsub.f32 %v2822, %v2849
        %v2854 = vsub.f32 %v2827, %v2850
        %v2855 = vsub.f32 %v2832, %v2851
        %v2856 = vmul.f32 %v2852, %v2852
        %v2857 = vmul.f32 %v2853, %v2853
        %v2858 = vmul.f32 %v2854, %v2854
        %v2859 = vmul.f32 %v2855, %v2855
        %v2860 = vsel %vm790, %v2856, 0.0
        %2861 = vadd.xlane.f32.xlu0 %v2860
        %v2862 = vpop.xlane.xlu0 %2861
        %v2863 = vsel %vm790, %v2857, 0.0
        %2864 = vadd.xlane.f32.xlu0 %v2863
        %v2865 = vpop.xlane.xlu0 %2864
        %v2866 = vsel %vm790, %v2858, 0.0
        %2867 = vadd.xlane.f32.xlu0 %v2866
        %v2868 = vpop.xlane.xlu0 %2867
        %v2869 = vsel %vm790, %v2859, 0.0
        %2870 = vadd.xlane.f32.xlu0 %v2869
        %v2871 = vpop.xlane.xlu0 %2870
        %v2872 = vmul.f32 %v2862, %v2847
        %v2873 = vmul.f32 %v2865, %v2847
        %v2874 = vmul.f32 %v2868, %v2847
        %v2875 = vmul.f32 %v2871, %v2847
        %v2876 = vadd.f32 %v2872, 1e-05
        %v2877 = vadd.f32 %v2873, 1e-05
        %v2878 = vadd.f32 %v2874, 1e-05
        %v2879 = vadd.f32 %v2875, 1e-05
        %v2880 = vrsqrt.pop %v2876
        %v2881 = vrsqrt.pop %v2877
        %v2882 = vrsqrt.pop %v2878
        %v2883 = vrsqrt.pop %v2879
        %v2884 = vmul.f32 %v2852, %v2880
        %v2885 = vmul.f32 %v2853, %v2881
        %v2886 = vmul.f32 %v2854, %v2882
        %v2887 = vmul.f32 %v2855, %v2883
        %v2888 = vld [vmem:[%s11] sm:$0x1]
        %v2890 = vlaneseq
        %v2891 = vshrl.u32 %v2890, 7
        %v2892 = vsub.s32 0, %v2891
        %v2893 = vrot.slane %v2888, %v2892
        %v2895 = vmul.f32 %v2884, %v2893
        %v2896 = vmul.f32 %v2885, %v2893
        %v2897 = vmul.f32 %v2886, %v2893
        %v2898 = vmul.f32 %v2887, %v2893
        %v2899 = vld [vmem:[%s12] sm:$0x1]
        %v2901 = vlaneseq
        %v2902 = vshrl.u32 %v2901, 7
        %v2903 = vsub.s32 0, %v2902
        %v2904 = vrot.slane %v2899, %v2903
        %v2906 = vadd.f32 %v2895, %v2904
        %v2907 = vadd.f32 %v2896, %v2904
        %v2908 = vadd.f32 %v2897, %v2904
        %v2909 = vadd.f32 %v2898, %v2904
        %v2910 = vmax.f32 %v2906, 0.0
        %v2911 = vmax.f32 %v2907, 0.0
        %v2912 = vmax.f32 %v2908, 0.0
        %v2913 = vmax.f32 %v2909, 0.0
        %v2914 = vadd.f32 %v2910, %v553
        %v2915 = vadd.f32 %v2911, %v554
        %v2916 = vadd.f32 %v2912, %v555
        %v2917 = vadd.f32 %v2913, %v556
        %s2918 = scalar_lea.vmem %s6, 32
        %v2919 = vld [vmem:[%s2918] sm:$0xff]
        %v2920 = vld [vmem:[%s2918 + $0x8] sm:$0xff]
        %v2921 = vld [vmem:[%s2918 + $0x10] sm:$0xff]
        %v2922 = vld [vmem:[%s2918 + $0x18] sm:$0xff]
        %s2923 = scalar_lea.vmem %s7, 1
        %v2924 = vld [vmem:[%s2923] sm:$0x1]
        %v2926 = vlaneseq
        %v2927 = vshrl.u32 %v2926, 7
        %v2928 = vsub.s32 0, %v2927
        %v2929 = vrot.slane %v2924, %v2928
        %2931 = vmatprep.subr.mxu0 0.0
        %2932 = vmatpush1.msra.mxu0 %v2919
        %2933 = vmatprep.subr.mxu0 0.0
        %2934 = vmatpush1.msra.mxu0 %v2920
        %2935 = vmatprep.subr.mxu0 0.0
        %2936 = vmatpush1.msra.mxu0 %v2921
        %2937 = vmatprep.subr.mxu0 0.0
        %2938 = vmatpush1.msra.mxu0 %v2922
        %2939 = vmatprep.subr.mxu0 0.0
        %2940 = vmatpush1.msra.mxu0 0.0
        %2941 = vmatprep.subr.mxu0 0.0
        %2942 = vmatpush1.msra.mxu0 0.0
        %2943 = vmatprep.subr.mxu0 0.0
        %2944 = vmatpush1.msra.mxu0 0.0
        %2945 = vmatprep.subr.mxu0 0.0
        %2946 = vmatpush1.msra.mxu0 0.0
        %2947 = vmatprep.subr.mxu0 0.0
        %2948 = vmatpush1.msra.mxu0 0.0
        %2949 = vmatprep.subr.mxu0 0.0
        %2950 = vmatpush1.msra.mxu0 0.0
        %2951 = vmatprep.subr.mxu0 0.0
        %2952 = vmatpush1.msra.mxu0 0.0
        %2953 = vmatprep.subr.mxu0 0.0
        %2954 = vmatpush1.msra.mxu0 0.0
        %2955 = vmatprep.subr.mxu0 0.0
        %2956 = vmatpush1.msra.mxu0 0.0
        %2957 = vmatprep.subr.mxu0 0.0
        %2958 = vmatpush1.msra.mxu0 0.0
        %2959 = vmatprep.subr.mxu0 0.0
        %2960 = vmatpush1.msra.mxu0 0.0
        %2961 = vmatprep.subr.mxu0 0.0
        %2962 = vmatpush1.msra.mxu0 0.0
        %2963 = vmatprep.subr.mxu0 0.0
        %2964 = vmatpush1.msra.mxu0 0.0
        %2965 = vmatprep.subr.mxu0 0.0
        %2966 = vmatpush1.msra.mxu0 0.0
        %2967 = vmatprep.subr.mxu0 0.0
        %2968 = vmatpush1.msra.mxu0 0.0
        %2969 = vmatprep.subr.mxu0 0.0
        %2970 = vmatpush1.msra.mxu0 0.0
        %2971 = vmatprep.subr.mxu0 0.0
        %2972 = vmatpush1.msra.mxu0 0.0
        %2973 = vmatprep.subr.mxu0 0.0
        %2974 = vmatpush1.msra.mxu0 0.0
        %2975 = vmatprep.subr.mxu0 0.0
        %2976 = vmatpush1.msra.mxu0 0.0
        %2977 = vmatprep.subr.mxu0 0.0
        %2978 = vmatpush1.msra.mxu0 0.0
        %2979 = vmatprep.subr.mxu0 0.0
        %2980 = vmatpush1.msra.mxu0 0.0
        %2981 = vmatprep.subr.mxu0 0.0
        %2982 = vmatpush1.msra.mxu0 0.0
        %2983 = vmatprep.subr.mxu0 0.0
        %2984 = vmatpush1.msra.mxu0 0.0
        %2985 = vmatprep.subr.mxu0 0.0
        %2986 = vmatpush1.msra.mxu0 0.0
        %2987 = vmatprep.subr.mxu0 0.0
        %2988 = vmatpush1.msra.mxu0 0.0
        %2989 = vmatprep.subr.mxu0 0.0
        %2990 = vmatpush1.msra.mxu0 0.0
        %2991 = vmatprep.subr.mxu0 0.0
        %2992 = vmatpush1.msra.mxu0 0.0
        %2993 = vmatprep.subr.mxu0 0.0
        %2994 = vmatpush1.msra.mxu0 0.0
        %2995 = vmatprep.mubr.f32.mxu0 0.0
        %2996 = vmatmul.mubr.f32.gmra.mrb[0].mxu0 %v792
        %v2997 = vpop.f32.mrb[0].mxu0
        %v2998 = vadd.f32 %v2929, %v2997
        %v2999 = vpop.f32.mrb[0].mxu0
        %3000 = vmatprep.mubr.f32.mxu0 0.0
        %3001 = vmatmul.mubr.f32.gmra.mrb[0].mxu0 %v795
        %v3002 = vpop.f32.mrb[0].mxu0
        %v3003 = vadd.f32 %v2929, %v3002
        %v3004 = vpop.f32.mrb[0].mxu0
        %3005 = vmatprep.mubr.f32.mxu0 0.0
        %3006 = vmatmul.mubr.f32.gmra.mrb[0].mxu0 %v798
        %v3007 = vpop.f32.mrb[0].mxu0
        %v3008 = vadd.f32 %v2929, %v3007
        %v3009 = vpop.f32.mrb[0].mxu0
        %3010 = vmatprep.mubr.f32.mxu0 0.0
        %3011 = vmatmul.mubr.f32.gmra.mrb[0].mxu0 %v801
        %v3012 = vpop.f32.mrb[0].mxu0
        %v3013 = vadd.f32 %v2929, %v3012
        %v3014 = vpop.f32.mrb[0].mxu0
        %3015 = vmatprep.mubr.f32.mxu0 0.0
        %3016 = vmatmul.mubr.f32.gmra.mrb[0].mxu0 %v804
        %v3017 = vpop.f32.mrb[0].mxu0
        %v3018 = vadd.f32 %v2929, %v3017
        %v3019 = vpop.f32.mrb[0].mxu0
        %3020 = vmatprep.mubr.f32.mxu0 0.0
        %3021 = vmatmul.mubr.f32.gmra.mrb[0].mxu0 %v807
        %v3022 = vpop.f32.mrb[0].mxu0
        %v3023 = vadd.f32 %v2929, %v3022
        %v3024 = vpop.f32.mrb[0].mxu0
        %3025 = vmatprep.mubr.f32.mxu0 0.0
        %3026 = vmatmul.mubr.f32.gmra.mrb[0].mxu0 %v810
        %v3027 = vpop.f32.mrb[0].mxu0
        %v3028 = vadd.f32 %v2929, %v3027
        %v3029 = vpop.f32.mrb[0].mxu0
        %3030 = vmatprep.mubr.f32.mxu0 0.0
        %3031 = vmatmul.mubr.f32.gmra.mrb[0].mxu0 %v813
        %v3032 = vpop.f32.mrb[0].mxu0
        %v3033 = vadd.f32 %v2929, %v3032
        %v3034 = vpop.f32.mrb[0].mxu0
        %3035 = vdwg.mxu0
        %v3036 = vmax.f32 %v2998, 0.0
        %v3037 = vmax.f32 %v3003, 0.0
        %v3038 = vmax.f32 %v3008, 0.0
        %v3039 = vmax.f32 %v3013, 0.0
        %v3040 = vmax.f32 %v3018, 0.0
        %v3041 = vmax.f32 %v3023, 0.0
        %v3042 = vmax.f32 %v3028, 0.0
        %v3043 = vmax.f32 %v3033, 0.0
        %3044 = vmatprep.subr.mxu0 0.0
        %3045 = vmatpush1.msra.mxu0 %v2914
        %3046 = vmatprep.subr.mxu0 0.0
        %3047 = vmatpush1.msra.mxu0 %v2915
        %3048 = vmatprep.subr.mxu0 0.0
        %3049 = vmatpush1.msra.mxu0 %v2916
        %3050 = vmatprep.subr.mxu0 0.0
        %3051 = vmatpush1.msra.mxu0 %v2917
        %3052 = vmatprep.subr.mxu0 0.0
        %3053 = vmatpush1.msra.mxu0 0.0
        %3054 = vmatprep.subr.mxu0 0.0
        %3055 = vmatpush1.msra.mxu0 0.0
        %3056 = vmatprep.subr.mxu0 0.0
        %3057 = vmatpush1.msra.mxu0 0.0
        %3058 = vmatprep.subr.mxu0 0.0
        %3059 = vmatpush1.msra.mxu0 0.0
        %3060 = vmatprep.subr.mxu0 0.0
        %3061 = vmatpush1.msra.mxu0 0.0
        %3062 = vmatprep.subr.mxu0 0.0
        %3063 = vmatpush1.msra.mxu0 0.0
        %3064 = vmatprep.subr.mxu0 0.0
        %3065 = vmatpush1.msra.mxu0 0.0
        %3066 = vmatprep.subr.mxu0 0.0
        %3067 = vmatpush1.msra.mxu0 0.0
        %3068 = vmatprep.subr.mxu0 0.0
        %3069 = vmatpush1.msra.mxu0 0.0
        %3070 = vmatprep.subr.mxu0 0.0
        %3071 = vmatpush1.msra.mxu0 0.0
        %3072 = vmatprep.subr.mxu0 0.0
        %3073 = vmatpush1.msra.mxu0 0.0
        %3074 = vmatprep.subr.mxu0 0.0
        %3075 = vmatpush1.msra.mxu0 0.0
        %3076 = vmatprep.subr.mxu0 0.0
        %3077 = vmatpush1.msra.mxu0 0.0
        %3078 = vmatprep.subr.mxu0 0.0
        %3079 = vmatpush1.msra.mxu0 0.0
        %3080 = vmatprep.subr.mxu0 0.0
        %3081 = vmatpush1.msra.mxu0 0.0
        %3082 = vmatprep.subr.mxu0 0.0
        %3083 = vmatpush1.msra.mxu0 0.0
        %3084 = vmatprep.subr.mxu0 0.0
        %3085 = vmatpush1.msra.mxu0 0.0
        %3086 = vmatprep.subr.mxu0 0.0
        %3087 = vmatpush1.msra.mxu0 0.0
        %3088 = vmatprep.subr.mxu0 0.0
        %3089 = vmatpush1.msra.mxu0 0.0
        %3090 = vmatprep.subr.mxu0 0.0
        %3091 = vmatpush1.msra.mxu0 0.0
        %3092 = vmatprep.subr.mxu0 0.0
        %3093 = vmatpush1.msra.mxu0 0.0
        %3094 = vmatprep.subr.mxu0 0.0
        %3095 = vmatpush1.msra.mxu0 0.0
        %3096 = vmatprep.subr.mxu0 0.0
        %3097 = vmatpush1.msra.mxu0 0.0
        %3098 = vmatprep.subr.mxu0 0.0
        %3099 = vmatpush1.msra.mxu0 0.0
        %3100 = vmatprep.subr.mxu0 0.0
        %3101 = vmatpush1.msra.mxu0 0.0
        %3102 = vmatprep.subr.mxu0 0.0
        %3103 = vmatpush1.msra.mxu0 0.0
        %3104 = vmatprep.subr.mxu0 0.0
        %3105 = vmatpush1.msra.mxu0 0.0
        %3106 = vmatprep.subr.mxu0 0.0
        %3107 = vmatpush1.msra.mxu0 0.0
        %3108 = vmatprep.mubr.f32.mxu0 0.0
        %3109 = vmatmul.mubr.f32.gmra.mrb[0].mxu0 %v929
        %v3110 = vpop.f32.mrb[0].mxu0
        %v3111 = vadd.f32 0.0, %v3110
        %v3112 = vpop.f32.mrb[0].mxu0
        %3113 = vmatprep.mubr.f32.mxu0 0.0
        %3114 = vmatmul.mubr.f32.gmra.mrb[0].mxu0 %v932
        %v3115 = vpop.f32.mrb[0].mxu0
        %v3116 = vadd.f32 0.0, %v3115
        %v3117 = vpop.f32.mrb[0].mxu0
        %3118 = vmatprep.mubr.f32.mxu0 0.0
        %3119 = vmatmul.mubr.f32.gmra.mrb[0].mxu0 %v935
        %v3120 = vpop.f32.mrb[0].mxu0
        %v3121 = vadd.f32 0.0, %v3120
        %v3122 = vpop.f32.mrb[0].mxu0
        %3123 = vmatprep.mubr.f32.mxu0 0.0
        %3124 = vmatmul.mubr.f32.gmra.mrb[0].mxu0 %v938
        %v3125 = vpop.f32.mrb[0].mxu0
        %v3126 = vadd.f32 0.0, %v3125
        %v3127 = vpop.f32.mrb[0].mxu0
        %3128 = vmatprep.mubr.f32.mxu0 0.0
        %3129 = vmatmul.mubr.f32.gmra.mrb[0].mxu0 %v941
        %v3130 = vpop.f32.mrb[0].mxu0
        %v3131 = vadd.f32 0.0, %v3130
        %v3132 = vpop.f32.mrb[0].mxu0
        %3133 = vmatprep.mubr.f32.mxu0 0.0
        %3134 = vmatmul.mubr.f32.gmra.mrb[0].mxu0 %v944
        %v3135 = vpop.f32.mrb[0].mxu0
        %v3136 = vadd.f32 0.0, %v3135
        %v3137 = vpop.f32.mrb[0].mxu0
        %3138 = vmatprep.mubr.f32.mxu0 0.0
        %3139 = vmatmul.mubr.f32.gmra.mrb[0].mxu0 %v947
        %v3140 = vpop.f32.mrb[0].mxu0
        %v3141 = vadd.f32 0.0, %v3140
        %v3142 = vpop.f32.mrb[0].mxu0
        %3143 = vmatprep.mubr.f32.mxu0 0.0
        %3144 = vmatmul.mubr.f32.gmra.mrb[0].mxu0 %v950
        %v3145 = vpop.f32.mrb[0].mxu0
        %v3146 = vadd.f32 0.0, %v3145
        %v3147 = vpop.f32.mrb[0].mxu0
        %3148 = vdwg.mxu0
        %v3150 = vsel %vm790, %v3111, 0
        %v3153 = vsel %vm790, %v3116, 0
        %v3156 = vsel %vm790, %v3121, 0
        %v3159 = vsel %vm790, %v3126, 0
        %v3162 = vsel %vm790, %v3131, 0
        %v3165 = vsel %vm790, %v3136, 0
        %v3168 = vsel %vm790, %v3141, 0
        %v3171 = vsel %vm790, %v3146, 0
        %3173 = vmatprep.subr.mxu0 %v570
        %3174 = vmatpush1.msra.mxu0 %v569
        %3175 = vmatprep.subr.mxu0 %v578
        %3176 = vmatpush1.msra.mxu0 %v577
        %3177 = vmatprep.subr.mxu0 %v586
        %3178 = vmatpush1.msra.mxu0 %v585
        %3179 = vmatprep.subr.mxu0 %v594
        %3180 = vmatpush1.msra.mxu0 %v593
        %3181 = vmatprep.subr.mxu0 0.0
        %3182 = vmatpush1.msra.mxu0 0.0
        %3183 = vmatprep.subr.mxu0 0.0
        %3184 = vmatpush1.msra.mxu0 0.0
        %3185 = vmatprep.subr.mxu0 0.0
        %3186 = vmatpush1.msra.mxu0 0.0
        %3187 = vmatprep.subr.mxu0 0.0
        %3188 = vmatpush1.msra.mxu0 0.0
        %3189 = vmatprep.subr.mxu0 0.0
        %3190 = vmatpush1.msra.mxu0 0.0
        %3191 = vmatprep.subr.mxu0 0.0
        %3192 = vmatpush1.msra.mxu0 0.0
        %3193 = vmatprep.subr.mxu0 0.0
        %3194 = vmatpush1.msra.mxu0 0.0
        %3195 = vmatprep.subr.mxu0 0.0
        %3196 = vmatpush1.msra.mxu0 0.0
        %3197 = vmatprep.subr.mxu0 0.0
        %3198 = vmatpush1.msra.mxu0 0.0
        %3199 = vmatprep.subr.mxu0 0.0
        %3200 = vmatpush1.msra.mxu0 0.0
        %3201 = vmatprep.subr.mxu0 0.0
        %3202 = vmatpush1.msra.mxu0 0.0
        %3203 = vmatprep.subr.mxu0 0.0
        %3204 = vmatpush1.msra.mxu0 0.0
        %3205 = vmatprep.subr.mxu0 0.0
        %3206 = vmatpush1.msra.mxu0 0.0
        %3207 = vmatprep.subr.mxu0 0.0
        %3208 = vmatpush1.msra.mxu0 0.0
        %3209 = vmatprep.subr.mxu0 0.0
        %3210 = vmatpush1.msra.mxu0 0.0
        %3211 = vmatprep.subr.mxu0 0.0
        %3212 = vmatpush1.msra.mxu0 0.0
        %3213 = vmatprep.subr.mxu0 0.0
        %3214 = vmatpush1.msra.mxu0 0.0
        %3215 = vmatprep.subr.mxu0 0.0
        %3216 = vmatpush1.msra.mxu0 0.0
        %3217 = vmatprep.subr.mxu0 0.0
        %3218 = vmatpush1.msra.mxu0 0.0
        %3219 = vmatprep.subr.mxu0 0.0
        %3220 = vmatpush1.msra.mxu0 0.0
        %3221 = vmatprep.subr.mxu0 0.0
        %3222 = vmatpush1.msra.mxu0 0.0
        %3223 = vmatprep.subr.mxu0 0.0
        %3224 = vmatpush1.msra.mxu0 0.0
        %3225 = vmatprep.subr.mxu0 0.0
        %3226 = vmatpush1.msra.mxu0 0.0
        %3227 = vmatprep.subr.mxu0 0.0
        %3228 = vmatpush1.msra.mxu0 0.0
        %3229 = vmatprep.subr.mxu0 0.0
        %3230 = vmatpush1.msra.mxu0 0.0
        %3231 = vmatprep.subr.mxu0 0.0
        %3232 = vmatpush1.msra.mxu0 0.0
        %3233 = vmatprep.subr.mxu0 0.0
        %3234 = vmatpush1.msra.mxu0 0.0
        %3235 = vmatprep.subr.mxu0 0.0
        %3236 = vmatpush1.msra.mxu0 0.0
        %3237 = vmatprep.mubr.f32.mxu0 0.0
        %3238 = vmatmul.mubr.f32.gmra.mrb[0].mxu0 %v3150
        %v3239 = vpop.f32.mrb[0].mxu0
        %v3240 = vadd.f32 0.0, %v3239
        %v3241 = vpop.f32.mrb[0].mxu0
        %v3242 = vadd.f32 0.0, %v3241
        %3243 = vmatprep.mubr.f32.mxu0 0.0
        %3244 = vmatmul.mubr.f32.gmra.mrb[0].mxu0 %v3153
        %v3245 = vpop.f32.mrb[0].mxu0
        %v3246 = vadd.f32 0.0, %v3245
        %v3247 = vpop.f32.mrb[0].mxu0
        %v3248 = vadd.f32 0.0, %v3247
        %3249 = vmatprep.mubr.f32.mxu0 0.0
        %3250 = vmatmul.mubr.f32.gmra.mrb[0].mxu0 %v3156
        %v3251 = vpop.f32.mrb[0].mxu0
        %v3252 = vadd.f32 0.0, %v3251
        %v3253 = vpop.f32.mrb[0].mxu0
        %v3254 = vadd.f32 0.0, %v3253
        %3255 = vmatprep.mubr.f32.mxu0 0.0
        %3256 = vmatmul.mubr.f32.gmra.mrb[0].mxu0 %v3159
        %v3257 = vpop.f32.mrb[0].mxu0
        %v3258 = vadd.f32 0.0, %v3257
        %v3259 = vpop.f32.mrb[0].mxu0
        %v3260 = vadd.f32 0.0, %v3259
        %3261 = vmatprep.mubr.f32.mxu0 0.0
        %3262 = vmatmul.mubr.f32.gmra.mrb[0].mxu0 %v3162
        %v3263 = vpop.f32.mrb[0].mxu0
        %v3264 = vadd.f32 0.0, %v3263
        %v3265 = vpop.f32.mrb[0].mxu0
        %v3266 = vadd.f32 0.0, %v3265
        %3267 = vmatprep.mubr.f32.mxu0 0.0
        %3268 = vmatmul.mubr.f32.gmra.mrb[0].mxu0 %v3165
        %v3269 = vpop.f32.mrb[0].mxu0
        %v3270 = vadd.f32 0.0, %v3269
        %v3271 = vpop.f32.mrb[0].mxu0
        %v3272 = vadd.f32 0.0, %v3271
        %3273 = vmatprep.mubr.f32.mxu0 0.0
        %3274 = vmatmul.mubr.f32.gmra.mrb[0].mxu0 %v3168
        %v3275 = vpop.f32.mrb[0].mxu0
        %v3276 = vadd.f32 0.0, %v3275
        %v3277 = vpop.f32.mrb[0].mxu0
        %v3278 = vadd.f32 0.0, %v3277
        %3279 = vmatprep.mubr.f32.mxu0 0.0
        %3280 = vmatmul.mubr.f32.gmra.mrb[0].mxu0 %v3171
        %v3281 = vpop.f32.mrb[0].mxu0
        %v3282 = vadd.f32 0.0, %v3281
        %v3283 = vpop.f32.mrb[0].mxu0
        %v3284 = vadd.f32 0.0, %v3283
        %3285 = vdwg.mxu0
        %3286 = vmatprep.subr.mxu0 %v572
        %3287 = vmatpush1.msra.mxu0 %v571
        %3288 = vmatprep.subr.mxu0 %v580
        %3289 = vmatpush1.msra.mxu0 %v579
        %3290 = vmatprep.subr.mxu0 %v588
        %3291 = vmatpush1.msra.mxu0 %v587
        %3292 = vmatprep.subr.mxu0 %v596
        %3293 = vmatpush1.msra.mxu0 %v595
        %3294 = vmatprep.subr.mxu0 0.0
        %3295 = vmatpush1.msra.mxu0 0.0
        %3296 = vmatprep.subr.mxu0 0.0
        %3297 = vmatpush1.msra.mxu0 0.0
        %3298 = vmatprep.subr.mxu0 0.0
        %3299 = vmatpush1.msra.mxu0 0.0
        %3300 = vmatprep.subr.mxu0 0.0
        %3301 = vmatpush1.msra.mxu0 0.0
        %3302 = vmatprep.subr.mxu0 0.0
        %3303 = vmatpush1.msra.mxu0 0.0
        %3304 = vmatprep.subr.mxu0 0.0
        %3305 = vmatpush1.msra.mxu0 0.0
        %3306 = vmatprep.subr.mxu0 0.0
        %3307 = vmatpush1.msra.mxu0 0.0
        %3308 = vmatprep.subr.mxu0 0.0
        %3309 = vmatpush1.msra.mxu0 0.0
        %3310 = vmatprep.subr.mxu0 0.0
        %3311 = vmatpush1.msra.mxu0 0.0
        %3312 = vmatprep.subr.mxu0 0.0
        %3313 = vmatpush1.msra.mxu0 0.0
        %3314 = vmatprep.subr.mxu0 0.0
        %3315 = vmatpush1.msra.mxu0 0.0
        %3316 = vmatprep.subr.mxu0 0.0
        %3317 = vmatpush1.msra.mxu0 0.0
        %3318 = vmatprep.subr.mxu0 0.0
        %3319 = vmatpush1.msra.mxu0 0.0
        %3320 = vmatprep.subr.mxu0 0.0
        %3321 = vmatpush1.msra.mxu0 0.0
        %3322 = vmatprep.subr.mxu0 0.0
        %3323 = vmatpush1.msra.mxu0 0.0
        %3324 = vmatprep.subr.mxu0 0.0
        %3325 = vmatpush1.msra.mxu0 0.0
        %3326 = vmatprep.subr.mxu0 0.0
        %3327 = vmatpush1.msra.mxu0 0.0
        %3328 = vmatprep.subr.mxu0 0.0
        %3329 = vmatpush1.msra.mxu0 0.0
        %3330 = vmatprep.subr.mxu0 0.0
        %3331 = vmatpush1.msra.mxu0 0.0
        %3332 = vmatprep.subr.mxu0 0.0
        %3333 = vmatpush1.msra.mxu0 0.0
        %3334 = vmatprep.subr.mxu0 0.0
        %3335 = vmatpush1.msra.mxu0 0.0
        %3336 = vmatprep.subr.mxu0 0.0
        %3337 = vmatpush1.msra.mxu0 0.0
        %3338 = vmatprep.subr.mxu0 0.0
        %3339 = vmatpush1.msra.mxu0 0.0
        %3340 = vmatprep.subr.mxu0 0.0
        %3341 = vmatpush1.msra.mxu0 0.0
        %3342 = vmatprep.subr.mxu0 0.0
        %3343 = vmatpush1.msra.mxu0 0.0
        %3344 = vmatprep.subr.mxu0 0.0
        %3345 = vmatpush1.msra.mxu0 0.0
        %3346 = vmatprep.subr.mxu0 0.0
        %3347 = vmatpush1.msra.mxu0 0.0
        %3348 = vmatprep.subr.mxu0 0.0
        %3349 = vmatpush1.msra.mxu0 0.0
        %3350 = vmatprep.mubr.f32.mxu0 0.0
        %3351 = vmatmul.mubr.f32.gmra.mrb[0].mxu0 %v3150
        %v3352 = vpop.f32.mrb[0].mxu0
        %v3353 = vadd.f32 0.0, %v3352
        %v3354 = vpop.f32.mrb[0].mxu0
        %v3355 = vadd.f32 0.0, %v3354
        %3356 = vmatprep.mubr.f32.mxu0 0.0
        %3357 = vmatmul.mubr.f32.gmra.mrb[0].mxu0 %v3153
        %v3358 = vpop.f32.mrb[0].mxu0
        %v3359 = vadd.f32 0.0, %v3358
        %v3360 = vpop.f32.mrb[0].mxu0
        %v3361 = vadd.f32 0.0, %v3360
        %3362 = vmatprep.mubr.f32.mxu0 0.0
        %3363 = vmatmul.mubr.f32.gmra.mrb[0].mxu0 %v3156
        %v3364 = vpop.f32.mrb[0].mxu0
        %v3365 = vadd.f32 0.0, %v3364
        %v3366 = vpop.f32.mrb[0].mxu0
        %v3367 = vadd.f32 0.0, %v3366
        %3368 = vmatprep.mubr.f32.mxu0 0.0
        %3369 = vmatmul.mubr.f32.gmra.mrb[0].mxu0 %v3159
        %v3370 = vpop.f32.mrb[0].mxu0
        %v3371 = vadd.f32 0.0, %v3370
        %v3372 = vpop.f32.mrb[0].mxu0
        %v3373 = vadd.f32 0.0, %v3372
        %3374 = vmatprep.mubr.f32.mxu0 0.0
        %3375 = vmatmul.mubr.f32.gmra.mrb[0].mxu0 %v3162
        %v3376 = vpop.f32.mrb[0].mxu0
        %v3377 = vadd.f32 0.0, %v3376
        %v3378 = vpop.f32.mrb[0].mxu0
        %v3379 = vadd.f32 0.0, %v3378
        %3380 = vmatprep.mubr.f32.mxu0 0.0
        %3381 = vmatmul.mubr.f32.gmra.mrb[0].mxu0 %v3165
        %v3382 = vpop.f32.mrb[0].mxu0
        %v3383 = vadd.f32 0.0, %v3382
        %v3384 = vpop.f32.mrb[0].mxu0
        %v3385 = vadd.f32 0.0, %v3384
        %3386 = vmatprep.mubr.f32.mxu0 0.0
        %3387 = vmatmul.mubr.f32.gmra.mrb[0].mxu0 %v3168
        %v3388 = vpop.f32.mrb[0].mxu0
        %v3389 = vadd.f32 0.0, %v3388
        %v3390 = vpop.f32.mrb[0].mxu0
        %v3391 = vadd.f32 0.0, %v3390
        %3392 = vmatprep.mubr.f32.mxu0 0.0
        %3393 = vmatmul.mubr.f32.gmra.mrb[0].mxu0 %v3171
        %v3394 = vpop.f32.mrb[0].mxu0
        %v3395 = vadd.f32 0.0, %v3394
        %v3396 = vpop.f32.mrb[0].mxu0
        %v3397 = vadd.f32 0.0, %v3396
        %3398 = vdwg.mxu0
        %3399 = vmatprep.subr.mxu0 %v574
        %3400 = vmatpush1.msra.mxu0 %v573
        %3401 = vmatprep.subr.mxu0 %v582
        %3402 = vmatpush1.msra.mxu0 %v581
        %3403 = vmatprep.subr.mxu0 %v590
        %3404 = vmatpush1.msra.mxu0 %v589
        %3405 = vmatprep.subr.mxu0 %v598
        %3406 = vmatpush1.msra.mxu0 %v597
        %3407 = vmatprep.subr.mxu0 0.0
        %3408 = vmatpush1.msra.mxu0 0.0
        %3409 = vmatprep.subr.mxu0 0.0
        %3410 = vmatpush1.msra.mxu0 0.0
        %3411 = vmatprep.subr.mxu0 0.0
        %3412 = vmatpush1.msra.mxu0 0.0
        %3413 = vmatprep.subr.mxu0 0.0
        %3414 = vmatpush1.msra.mxu0 0.0
        %3415 = vmatprep.subr.mxu0 0.0
        %3416 = vmatpush1.msra.mxu0 0.0
        %3417 = vmatprep.subr.mxu0 0.0
        %3418 = vmatpush1.msra.mxu0 0.0
        %3419 = vmatprep.subr.mxu0 0.0
        %3420 = vmatpush1.msra.mxu0 0.0
        %3421 = vmatprep.subr.mxu0 0.0
        %3422 = vmatpush1.msra.mxu0 0.0
        %3423 = vmatprep.subr.mxu0 0.0
        %3424 = vmatpush1.msra.mxu0 0.0
        %3425 = vmatprep.subr.mxu0 0.0
        %3426 = vmatpush1.msra.mxu0 0.0
        %3427 = vmatprep.subr.mxu0 0.0
        %3428 = vmatpush1.msra.mxu0 0.0
        %3429 = vmatprep.subr.mxu0 0.0
        %3430 = vmatpush1.msra.mxu0 0.0
        %3431 = vmatprep.subr.mxu0 0.0
        %3432 = vmatpush1.msra.mxu0 0.0
        %3433 = vmatprep.subr.mxu0 0.0
        %3434 = vmatpush1.msra.mxu0 0.0
        %3435 = vmatprep.subr.mxu0 0.0
        %3436 = vmatpush1.msra.mxu0 0.0
        %3437 = vmatprep.subr.mxu0 0.0
        %3438 = vmatpush1.msra.mxu0 0.0
        %3439 = vmatprep.subr.mxu0 0.0
        %3440 = vmatpush1.msra.mxu0 0.0
        %3441 = vmatprep.subr.mxu0 0.0
        %3442 = vmatpush1.msra.mxu0 0.0
        %3443 = vmatprep.subr.mxu0 0.0
        %3444 = vmatpush1.msra.mxu0 0.0
        %3445 = vmatprep.subr.mxu0 0.0
        %3446 = vmatpush1.msra.mxu0 0.0
        %3447 = vmatprep.subr.mxu0 0.0
        %3448 = vmatpush1.msra.mxu0 0.0
        %3449 = vmatprep.subr.mxu0 0.0
        %3450 = vmatpush1.msra.mxu0 0.0
        %3451 = vmatprep.subr.mxu0 0.0
        %3452 = vmatpush1.msra.mxu0 0.0
        %3453 = vmatprep.subr.mxu0 0.0
        %3454 = vmatpush1.msra.mxu0 0.0
        %3455 = vmatprep.subr.mxu0 0.0
        %3456 = vmatpush1.msra.mxu0 0.0
        %3457 = vmatprep.subr.mxu0 0.0
        %3458 = vmatpush1.msra.mxu0 0.0
        %3459 = vmatprep.subr.mxu0 0.0
        %3460 = vmatpush1.msra.mxu0 0.0
        %3461 = vmatprep.subr.mxu0 0.0
        %3462 = vmatpush1.msra.mxu0 0.0
        %3463 = vmatprep.mubr.f32.mxu0 0.0
        %3464 = vmatmul.mubr.f32.gmra.mrb[0].mxu0 %v3150
        %v3465 = vpop.f32.mrb[0].mxu0
        %v3466 = vadd.f32 0.0, %v3465
        %v3467 = vpop.f32.mrb[0].mxu0
        %v3468 = vadd.f32 0.0, %v3467
        %3469 = vmatprep.mubr.f32.mxu0 0.0
        %3470 = vmatmul.mubr.f32.gmra.mrb[0].mxu0 %v3153
        %v3471 = vpop.f32.mrb[0].mxu0
        %v3472 = vadd.f32 0.0, %v3471
        %v3473 = vpop.f32.mrb[0].mxu0
        %v3474 = vadd.f32 0.0, %v3473
        %3475 = vmatprep.mubr.f32.mxu0 0.0
        %3476 = vmatmul.mubr.f32.gmra.mrb[0].mxu0 %v3156
        %v3477 = vpop.f32.mrb[0].mxu0
        %v3478 = vadd.f32 0.0, %v3477
        %v3479 = vpop.f32.mrb[0].mxu0
        %v3480 = vadd.f32 0.0, %v3479
        %3481 = vmatprep.mubr.f32.mxu0 0.0
        %3482 = vmatmul.mubr.f32.gmra.mrb[0].mxu0 %v3159
        %v3483 = vpop.f32.mrb[0].mxu0
        %v3484 = vadd.f32 0.0, %v3483
        %v3485 = vpop.f32.mrb[0].mxu0
        %v3486 = vadd.f32 0.0, %v3485
        %3487 = vmatprep.mubr.f32.mxu0 0.0
        %3488 = vmatmul.mubr.f32.gmra.mrb[0].mxu0 %v3162
        %v3489 = vpop.f32.mrb[0].mxu0
        %v3490 = vadd.f32 0.0, %v3489
        %v3491 = vpop.f32.mrb[0].mxu0
        %v3492 = vadd.f32 0.0, %v3491
        %3493 = vmatprep.mubr.f32.mxu0 0.0
        %3494 = vmatmul.mubr.f32.gmra.mrb[0].mxu0 %v3165
        %v3495 = vpop.f32.mrb[0].mxu0
        %v3496 = vadd.f32 0.0, %v3495
        %v3497 = vpop.f32.mrb[0].mxu0
        %v3498 = vadd.f32 0.0, %v3497
        %3499 = vmatprep.mubr.f32.mxu0 0.0
        %3500 = vmatmul.mubr.f32.gmra.mrb[0].mxu0 %v3168
        %v3501 = vpop.f32.mrb[0].mxu0
        %v3502 = vadd.f32 0.0, %v3501
        %v3503 = vpop.f32.mrb[0].mxu0
        %v3504 = vadd.f32 0.0, %v3503
        %3505 = vmatprep.mubr.f32.mxu0 0.0
        %3506 = vmatmul.mubr.f32.gmra.mrb[0].mxu0 %v3171
        %v3507 = vpop.f32.mrb[0].mxu0
        %v3508 = vadd.f32 0.0, %v3507
        %v3509 = vpop.f32.mrb[0].mxu0
        %v3510 = vadd.f32 0.0, %v3509
        %3511 = vdwg.mxu0
        %3512 = vmatprep.subr.mxu0 %v576
        %3513 = vmatpush1.msra.mxu0 %v575
        %3514 = vmatprep.subr.mxu0 %v584
        %3515 = vmatpush1.msra.mxu0 %v583
        %3516 = vmatprep.subr.mxu0 %v592
        %3517 = vmatpush1.msra.mxu0 %v591
        %3518 = vmatprep.subr.mxu0 %v600
        %3519 = vmatpush1.msra.mxu0 %v599
        %3520 = vmatprep.subr.mxu0 0.0
        %3521 = vmatpush1.msra.mxu0 0.0
        %3522 = vmatprep.subr.mxu0 0.0
        %3523 = vmatpush1.msra.mxu0 0.0
        %3524 = vmatprep.subr.mxu0 0.0
        %3525 = vmatpush1.msra.mxu0 0.0
        %3526 = vmatprep.subr.mxu0 0.0
        %3527 = vmatpush1.msra.mxu0 0.0
        %3528 = vmatprep.subr.mxu0 0.0
        %3529 = vmatpush1.msra.mxu0 0.0
        %3530 = vmatprep.subr.mxu0 0.0
        %3531 = vmatpush1.msra.mxu0 0.0
        %3532 = vmatprep.subr.mxu0 0.0
        %3533 = vmatpush1.msra.mxu0 0.0
        %3534 = vmatprep.subr.mxu0 0.0
        %3535 = vmatpush1.msra.mxu0 0.0
        %3536 = vmatprep.subr.mxu0 0.0
        %3537 = vmatpush1.msra.mxu0 0.0
        %3538 = vmatprep.subr.mxu0 0.0
        %3539 = vmatpush1.msra.mxu0 0.0
        %3540 = vmatprep.subr.mxu0 0.0
        %3541 = vmatpush1.msra.mxu0 0.0
        %3542 = vmatprep.subr.mxu0 0.0
        %3543 = vmatpush1.msra.mxu0 0.0
        %3544 = vmatprep.subr.mxu0 0.0
        %3545 = vmatpush1.msra.mxu0 0.0
        %3546 = vmatprep.subr.mxu0 0.0
        %3547 = vmatpush1.msra.mxu0 0.0
        %3548 = vmatprep.subr.mxu0 0.0
        %3549 = vmatpush1.msra.mxu0 0.0
        %3550 = vmatprep.subr.mxu0 0.0
        %3551 = vmatpush1.msra.mxu0 0.0
        %3552 = vmatprep.subr.mxu0 0.0
        %3553 = vmatpush1.msra.mxu0 0.0
        %3554 = vmatprep.subr.mxu0 0.0
        %3555 = vmatpush1.msra.mxu0 0.0
        %3556 = vmatprep.subr.mxu0 0.0
        %3557 = vmatpush1.msra.mxu0 0.0
        %3558 = vmatprep.subr.mxu0 0.0
        %3559 = vmatpush1.msra.mxu0 0.0
        %3560 = vmatprep.subr.mxu0 0.0
        %3561 = vmatpush1.msra.mxu0 0.0
        %3562 = vmatprep.subr.mxu0 0.0
        %3563 = vmatpush1.msra.mxu0 0.0
        %3564 = vmatprep.subr.mxu0 0.0
        %3565 = vmatpush1.msra.mxu0 0.0
        %3566 = vmatprep.subr.mxu0 0.0
        %3567 = vmatpush1.msra.mxu0 0.0
        %3568 = vmatprep.subr.mxu0 0.0
        %3569 = vmatpush1.msra.mxu0 0.0
        %3570 = vmatprep.subr.mxu0 0.0
        %3571 = vmatpush1.msra.mxu0 0.0
        %3572 = vmatprep.subr.mxu0 0.0
        %3573 = vmatpush1.msra.mxu0 0.0
        %3574 = vmatprep.subr.mxu0 0.0
        %3575 = vmatpush1.msra.mxu0 0.0
        %3576 = vmatprep.mubr.f32.mxu0 0.0
        %3577 = vmatmul.mubr.f32.gmra.mrb[0].mxu0 %v3150
        %v3578 = vpop.f32.mrb[0].mxu0
        %v3579 = vadd.f32 0.0, %v3578
        %v3580 = vpop.f32.mrb[0].mxu0
        %v3581 = vadd.f32 0.0, %v3580
        %3582 = vmatprep.mubr.f32.mxu0 0.0
        %3583 = vmatmul.mubr.f32.gmra.mrb[0].mxu0 %v3153
        %v3584 = vpop.f32.mrb[0].mxu0
        %v3585 = vadd.f32 0.0, %v3584
        %v3586 = vpop.f32.mrb[0].mxu0
        %v3587 = vadd.f32 0.0, %v3586
        %3588 = vmatprep.mubr.f32.mxu0 0.0
        %3589 = vmatmul.mubr.f32.gmra.mrb[0].mxu0 %v3156
        %v3590 = vpop.f32.mrb[0].mxu0
        %v3591 = vadd.f32 0.0, %v3590
        %v3592 = vpop.f32.mrb[0].mxu0
        %v3593 = vadd.f32 0.0, %v3592
        %3594 = vmatprep.mubr.f32.mxu0 0.0
        %3595 = vmatmul.mubr.f32.gmra.mrb[0].mxu0 %v3159
        %v3596 = vpop.f32.mrb[0].mxu0
        %v3597 = vadd.f32 0.0, %v3596
        %v3598 = vpop.f32.mrb[0].mxu0
        %v3599 = vadd.f32 0.0, %v3598
        %3600 = vmatprep.mubr.f32.mxu0 0.0
        %3601 = vmatmul.mubr.f32.gmra.mrb[0].mxu0 %v3162
        %v3602 = vpop.f32.mrb[0].mxu0
        %v3603 = vadd.f32 0.0, %v3602
        %v3604 = vpop.f32.mrb[0].mxu0
        %v3605 = vadd.f32 0.0, %v3604
        %3606 = vmatprep.mubr.f32.mxu0 0.0
        %3607 = vmatmul.mubr.f32.gmra.mrb[0].mxu0 %v3165
        %v3608 = vpop.f32.mrb[0].mxu0
        %v3609 = vadd.f32 0.0, %v3608
        %v3610 = vpop.f32.mrb[0].mxu0
        %v3611 = vadd.f32 0.0, %v3610
        %3612 = vmatprep.mubr.f32.mxu0 0.0
        %3613 = vmatmul.mubr.f32.gmra.mrb[0].mxu0 %v3168
        %v3614 = vpop.f32.mrb[0].mxu0
        %v3615 = vadd.f32 0.0, %v3614
        %v3616 = vpop.f32.mrb[0].mxu0
        %v3617 = vadd.f32 0.0, %v3616
        %3618 = vmatprep.mubr.f32.mxu0 0.0
        %3619 = vmatmul.mubr.f32.gmra.mrb[0].mxu0 %v3171
        %v3620 = vpop.f32.mrb[0].mxu0
        %v3621 = vadd.f32 0.0, %v3620
        %v3622 = vpop.f32.mrb[0].mxu0
        %v3623 = vadd.f32 0.0, %v3622
        %3624 = vdwg.mxu0
        %v3626 = vsel %vm790, %v3036, 0
        %v3629 = vsel %vm790, %v3037, 0
        %v3632 = vsel %vm790, %v3038, 0
        %v3635 = vsel %vm790, %v3039, 0
        %v3638 = vsel %vm790, %v3040, 0
        %v3641 = vsel %vm790, %v3041, 0
        %v3644 = vsel %vm790, %v3042, 0
        %v3647 = vsel %vm790, %v3043, 0
        %3649 = vmatprep.subr.mxu0 %v602
        %3650 = vmatpush1.msra.mxu0 %v601
        %3651 = vmatprep.subr.mxu0 %v610
        %3652 = vmatpush1.msra.mxu0 %v609
        %3653 = vmatprep.subr.mxu0 %v618
        %3654 = vmatpush1.msra.mxu0 %v617
        %3655 = vmatprep.subr.mxu0 %v626
        %3656 = vmatpush1.msra.mxu0 %v625
        %3657 = vmatprep.subr.mxu0 0.0
        %3658 = vmatpush1.msra.mxu0 0.0
        %3659 = vmatprep.subr.mxu0 0.0
        %3660 = vmatpush1.msra.mxu0 0.0
        %3661 = vmatprep.subr.mxu0 0.0
        %3662 = vmatpush1.msra.mxu0 0.0
        %3663 = vmatprep.subr.mxu0 0.0
        %3664 = vmatpush1.msra.mxu0 0.0
        %3665 = vmatprep.subr.mxu0 0.0
        %3666 = vmatpush1.msra.mxu0 0.0
        %3667 = vmatprep.subr.mxu0 0.0
        %3668 = vmatpush1.msra.mxu0 0.0
        %3669 = vmatprep.subr.mxu0 0.0
        %3670 = vmatpush1.msra.mxu0 0.0
        %3671 = vmatprep.subr.mxu0 0.0
        %3672 = vmatpush1.msra.mxu0 0.0
        %3673 = vmatprep.subr.mxu0 0.0
        %3674 = vmatpush1.msra.mxu0 0.0
        %3675 = vmatprep.subr.mxu0 0.0
        %3676 = vmatpush1.msra.mxu0 0.0
        %3677 = vmatprep.subr.mxu0 0.0
        %3678 = vmatpush1.msra.mxu0 0.0
        %3679 = vmatprep.subr.mxu0 0.0
        %3680 = vmatpush1.msra.mxu0 0.0
        %3681 = vmatprep.subr.mxu0 0.0
        %3682 = vmatpush1.msra.mxu0 0.0
        %3683 = vmatprep.subr.mxu0 0.0
        %3684 = vmatpush1.msra.mxu0 0.0
        %3685 = vmatprep.subr.mxu0 0.0
        %3686 = vmatpush1.msra.mxu0 0.0
        %3687 = vmatprep.subr.mxu0 0.0
        %3688 = vmatpush1.msra.mxu0 0.0
        %3689 = vmatprep.subr.mxu0 0.0
        %3690 = vmatpush1.msra.mxu0 0.0
        %3691 = vmatprep.subr.mxu0 0.0
        %3692 = vmatpush1.msra.mxu0 0.0
        %3693 = vmatprep.subr.mxu0 0.0
        %3694 = vmatpush1.msra.mxu0 0.0
        %3695 = vmatprep.subr.mxu0 0.0
        %3696 = vmatpush1.msra.mxu0 0.0
        %3697 = vmatprep.subr.mxu0 0.0
        %3698 = vmatpush1.msra.mxu0 0.0
        %3699 = vmatprep.subr.mxu0 0.0
        %3700 = vmatpush1.msra.mxu0 0.0
        %3701 = vmatprep.subr.mxu0 0.0
        %3702 = vmatpush1.msra.mxu0 0.0
        %3703 = vmatprep.subr.mxu0 0.0
        %3704 = vmatpush1.msra.mxu0 0.0
        %3705 = vmatprep.subr.mxu0 0.0
        %3706 = vmatpush1.msra.mxu0 0.0
        %3707 = vmatprep.subr.mxu0 0.0
        %3708 = vmatpush1.msra.mxu0 0.0
        %3709 = vmatprep.subr.mxu0 0.0
        %3710 = vmatpush1.msra.mxu0 0.0
        %3711 = vmatprep.subr.mxu0 0.0
        %3712 = vmatpush1.msra.mxu0 0.0
        %3713 = vmatprep.mubr.f32.mxu0 0.0
        %3714 = vmatmul.mubr.f32.gmra.mrb[0].mxu0 %v3626
        %v3715 = vpop.f32.mrb[0].mxu0
        %v3716 = vadd.f32 0.0, %v3715
        %v3717 = vpop.f32.mrb[0].mxu0
        %v3718 = vadd.f32 0.0, %v3717
        %3719 = vmatprep.mubr.f32.mxu0 0.0
        %3720 = vmatmul.mubr.f32.gmra.mrb[0].mxu0 %v3629
        %v3721 = vpop.f32.mrb[0].mxu0
        %v3722 = vadd.f32 0.0, %v3721
        %v3723 = vpop.f32.mrb[0].mxu0
        %v3724 = vadd.f32 0.0, %v3723
        %3725 = vmatprep.mubr.f32.mxu0 0.0
        %3726 = vmatmul.mubr.f32.gmra.mrb[0].mxu0 %v3632
        %v3727 = vpop.f32.mrb[0].mxu0
        %v3728 = vadd.f32 0.0, %v3727
        %v3729 = vpop.f32.mrb[0].mxu0
        %v3730 = vadd.f32 0.0, %v3729
        %3731 = vmatprep.mubr.f32.mxu0 0.0
        %3732 = vmatmul.mubr.f32.gmra.mrb[0].mxu0 %v3635
        %v3733 = vpop.f32.mrb[0].mxu0
        %v3734 = vadd.f32 0.0, %v3733
        %v3735 = vpop.f32.mrb[0].mxu0
        %v3736 = vadd.f32 0.0, %v3735
        %3737 = vmatprep.mubr.f32.mxu0 0.0
        %3738 = vmatmul.mubr.f32.gmra.mrb[0].mxu0 %v3638
        %v3739 = vpop.f32.mrb[0].mxu0
        %v3740 = vadd.f32 0.0, %v3739
        %v3741 = vpop.f32.mrb[0].mxu0
        %v3742 = vadd.f32 0.0, %v3741
        %3743 = vmatprep.mubr.f32.mxu0 0.0
        %3744 = vmatmul.mubr.f32.gmra.mrb[0].mxu0 %v3641
        %v3745 = vpop.f32.mrb[0].mxu0
        %v3746 = vadd.f32 0.0, %v3745
        %v3747 = vpop.f32.mrb[0].mxu0
        %v3748 = vadd.f32 0.0, %v3747
        %3749 = vmatprep.mubr.f32.mxu0 0.0
        %3750 = vmatmul.mubr.f32.gmra.mrb[0].mxu0 %v3644
        %v3751 = vpop.f32.mrb[0].mxu0
        %v3752 = vadd.f32 0.0, %v3751
        %v3753 = vpop.f32.mrb[0].mxu0
        %v3754 = vadd.f32 0.0, %v3753
        %3755 = vmatprep.mubr.f32.mxu0 0.0
        %3756 = vmatmul.mubr.f32.gmra.mrb[0].mxu0 %v3647
        %v3757 = vpop.f32.mrb[0].mxu0
        %v3758 = vadd.f32 0.0, %v3757
        %v3759 = vpop.f32.mrb[0].mxu0
        %v3760 = vadd.f32 0.0, %v3759
        %3761 = vdwg.mxu0
        %3762 = vmatprep.subr.mxu0 %v604
        %3763 = vmatpush1.msra.mxu0 %v603
        %3764 = vmatprep.subr.mxu0 %v612
        %3765 = vmatpush1.msra.mxu0 %v611
        %3766 = vmatprep.subr.mxu0 %v620
        %3767 = vmatpush1.msra.mxu0 %v619
        %3768 = vmatprep.subr.mxu0 %v628
        %3769 = vmatpush1.msra.mxu0 %v627
        %3770 = vmatprep.subr.mxu0 0.0
        %3771 = vmatpush1.msra.mxu0 0.0
        %3772 = vmatprep.subr.mxu0 0.0
        %3773 = vmatpush1.msra.mxu0 0.0
        %3774 = vmatprep.subr.mxu0 0.0
        %3775 = vmatpush1.msra.mxu0 0.0
        %3776 = vmatprep.subr.mxu0 0.0
        %3777 = vmatpush1.msra.mxu0 0.0
        %3778 = vmatprep.subr.mxu0 0.0
        %3779 = vmatpush1.msra.mxu0 0.0
        %3780 = vmatprep.subr.mxu0 0.0
        %3781 = vmatpush1.msra.mxu0 0.0
        %3782 = vmatprep.subr.mxu0 0.0
        %3783 = vmatpush1.msra.mxu0 0.0
        %3784 = vmatprep.subr.mxu0 0.0
        %3785 = vmatpush1.msra.mxu0 0.0
        %3786 = vmatprep.subr.mxu0 0.0
        %3787 = vmatpush1.msra.mxu0 0.0
        %3788 = vmatprep.subr.mxu0 0.0
        %3789 = vmatpush1.msra.mxu0 0.0
        %3790 = vmatprep.subr.mxu0 0.0
        %3791 = vmatpush1.msra.mxu0 0.0
        %3792 = vmatprep.subr.mxu0 0.0
        %3793 = vmatpush1.msra.mxu0 0.0
        %3794 = vmatprep.subr.mxu0 0.0
        %3795 = vmatpush1.msra.mxu0 0.0
        %3796 = vmatprep.subr.mxu0 0.0
        %3797 = vmatpush1.msra.mxu0 0.0
        %3798 = vmatprep.subr.mxu0 0.0
        %3799 = vmatpush1.msra.mxu0 0.0
        %3800 = vmatprep.subr.mxu0 0.0
        %3801 = vmatpush1.msra.mxu0 0.0
        %3802 = vmatprep.subr.mxu0 0.0
        %3803 = vmatpush1.msra.mxu0 0.0
        %3804 = vmatprep.subr.mxu0 0.0
        %3805 = vmatpush1.msra.mxu0 0.0
        %3806 = vmatprep.subr.mxu0 0.0
        %3807 = vmatpush1.msra.mxu0 0.0
        %3808 = vmatprep.subr.mxu0 0.0
        %3809 = vmatpush1.msra.mxu0 0.0
        %3810 = vmatprep.subr.mxu0 0.0
        %3811 = vmatpush1.msra.mxu0 0.0
        %3812 = vmatprep.subr.mxu0 0.0
        %3813 = vmatpush1.msra.mxu0 0.0
        %3814 = vmatprep.subr.mxu0 0.0
        %3815 = vmatpush1.msra.mxu0 0.0
        %3816 = vmatprep.subr.mxu0 0.0
        %3817 = vmatpush1.msra.mxu0 0.0
        %3818 = vmatprep.subr.mxu0 0.0
        %3819 = vmatpush1.msra.mxu0 0.0
        %3820 = vmatprep.subr.mxu0 0.0
        %3821 = vmatpush1.msra.mxu0 0.0
        %3822 = vmatprep.subr.mxu0 0.0
        %3823 = vmatpush1.msra.mxu0 0.0
        %3824 = vmatprep.subr.mxu0 0.0
        %3825 = vmatpush1.msra.mxu0 0.0
        %3826 = vmatprep.mubr.f32.mxu0 0.0
        %3827 = vmatmul.mubr.f32.gmra.mrb[0].mxu0 %v3626
        %v3828 = vpop.f32.mrb[0].mxu0
        %v3829 = vadd.f32 0.0, %v3828
        %v3830 = vpop.f32.mrb[0].mxu0
        %v3831 = vadd.f32 0.0, %v3830
        %3832 = vmatprep.mubr.f32.mxu0 0.0
        %3833 = vmatmul.mubr.f32.gmra.mrb[0].mxu0 %v3629
        %v3834 = vpop.f32.mrb[0].mxu0
        %v3835 = vadd.f32 0.0, %v3834
        %v3836 = vpop.f32.mrb[0].mxu0
        %v3837 = vadd.f32 0.0, %v3836
        %3838 = vmatprep.mubr.f32.mxu0 0.0
        %3839 = vmatmul.mubr.f32.gmra.mrb[0].mxu0 %v3632
        %v3840 = vpop.f32.mrb[0].mxu0
        %v3841 = vadd.f32 0.0, %v3840
        %v3842 = vpop.f32.mrb[0].mxu0
        %v3843 = vadd.f32 0.0, %v3842
        %3844 = vmatprep.mubr.f32.mxu0 0.0
        %3845 = vmatmul.mubr.f32.gmra.mrb[0].mxu0 %v3635
        %v3846 = vpop.f32.mrb[0].mxu0
        %v3847 = vadd.f32 0.0, %v3846
        %v3848 = vpop.f32.mrb[0].mxu0
        %v3849 = vadd.f32 0.0, %v3848
        %3850 = vmatprep.mubr.f32.mxu0 0.0
        %3851 = vmatmul.mubr.f32.gmra.mrb[0].mxu0 %v3638
        %v3852 = vpop.f32.mrb[0].mxu0
        %v3853 = vadd.f32 0.0, %v3852
        %v3854 = vpop.f32.mrb[0].mxu0
        %v3855 = vadd.f32 0.0, %v3854
        %3856 = vmatprep.mubr.f32.mxu0 0.0
        %3857 = vmatmul.mubr.f32.gmra.mrb[0].mxu0 %v3641
        %v3858 = vpop.f32.mrb[0].mxu0
        %v3859 = vadd.f32 0.0, %v3858
        %v3860 = vpop.f32.mrb[0].mxu0
        %v3861 = vadd.f32 0.0, %v3860
        %3862 = vmatprep.mubr.f32.mxu0 0.0
        %3863 = vmatmul.mubr.f32.gmra.mrb[0].mxu0 %v3644
        %v3864 = vpop.f32.mrb[0].mxu0
        %v3865 = vadd.f32 0.0, %v3864
        %v3866 = vpop.f32.mrb[0].mxu0
        %v3867 = vadd.f32 0.0, %v3866
        %3868 = vmatprep.mubr.f32.mxu0 0.0
        %3869 = vmatmul.mubr.f32.gmra.mrb[0].mxu0 %v3647
        %v3870 = vpop.f32.mrb[0].mxu0
        %v3871 = vadd.f32 0.0, %v3870
        %v3872 = vpop.f32.mrb[0].mxu0
        %v3873 = vadd.f32 0.0, %v3872
        %3874 = vdwg.mxu0
        %3875 = vmatprep.subr.mxu0 %v606
        %3876 = vmatpush1.msra.mxu0 %v605
        %3877 = vmatprep.subr.mxu0 %v614
        %3878 = vmatpush1.msra.mxu0 %v613
        %3879 = vmatprep.subr.mxu0 %v622
        %3880 = vmatpush1.msra.mxu0 %v621
        %3881 = vmatprep.subr.mxu0 %v630
        %3882 = vmatpush1.msra.mxu0 %v629
        %3883 = vmatprep.subr.mxu0 0.0
        %3884 = vmatpush1.msra.mxu0 0.0
        %3885 = vmatprep.subr.mxu0 0.0
        %3886 = vmatpush1.msra.mxu0 0.0
        %3887 = vmatprep.subr.mxu0 0.0
        %3888 = vmatpush1.msra.mxu0 0.0
        %3889 = vmatprep.subr.mxu0 0.0
        %3890 = vmatpush1.msra.mxu0 0.0
        %3891 = vmatprep.subr.mxu0 0.0
        %3892 = vmatpush1.msra.mxu0 0.0
        %3893 = vmatprep.subr.mxu0 0.0
        %3894 = vmatpush1.msra.mxu0 0.0
        %3895 = vmatprep.subr.mxu0 0.0
        %3896 = vmatpush1.msra.mxu0 0.0
        %3897 = vmatprep.subr.mxu0 0.0
        %3898 = vmatpush1.msra.mxu0 0.0
        %3899 = vmatprep.subr.mxu0 0.0
        %3900 = vmatpush1.msra.mxu0 0.0
        %3901 = vmatprep.subr.mxu0 0.0
        %3902 = vmatpush1.msra.mxu0 0.0
        %3903 = vmatprep.subr.mxu0 0.0
        %3904 = vmatpush1.msra.mxu0 0.0
        %3905 = vmatprep.subr.mxu0 0.0
        %3906 = vmatpush1.msra.mxu0 0.0
        %3907 = vmatprep.subr.mxu0 0.0
        %3908 = vmatpush1.msra.mxu0 0.0
        %3909 = vmatprep.subr.mxu0 0.0
        %3910 = vmatpush1.msra.mxu0 0.0
        %3911 = vmatprep.subr.mxu0 0.0
        %3912 = vmatpush1.msra.mxu0 0.0
        %3913 = vmatprep.subr.mxu0 0.0
        %3914 = vmatpush1.msra.mxu0 0.0
        %3915 = vmatprep.subr.mxu0 0.0
        %3916 = vmatpush1.msra.mxu0 0.0
        %3917 = vmatprep.subr.mxu0 0.0
        %3918 = vmatpush1.msra.mxu0 0.0
        %3919 = vmatprep.subr.mxu0 0.0
        %3920 = vmatpush1.msra.mxu0 0.0
        %3921 = vmatprep.subr.mxu0 0.0
        %3922 = vmatpush1.msra.mxu0 0.0
        %3923 = vmatprep.subr.mxu0 0.0
        %3924 = vmatpush1.msra.mxu0 0.0
        %3925 = vmatprep.subr.mxu0 0.0
        %3926 = vmatpush1.msra.mxu0 0.0
        %3927 = vmatprep.subr.mxu0 0.0
        %3928 = vmatpush1.msra.mxu0 0.0
        %3929 = vmatprep.subr.mxu0 0.0
        %3930 = vmatpush1.msra.mxu0 0.0
        %3931 = vmatprep.subr.mxu0 0.0
        %3932 = vmatpush1.msra.mxu0 0.0
        %3933 = vmatprep.subr.mxu0 0.0
        %3934 = vmatpush1.msra.mxu0 0.0
        %3935 = vmatprep.subr.mxu0 0.0
        %3936 = vmatpush1.msra.mxu0 0.0
        %3937 = vmatprep.subr.mxu0 0.0
        %3938 = vmatpush1.msra.mxu0 0.0
        %3939 = vmatprep.mubr.f32.mxu0 0.0
        %3940 = vmatmul.mubr.f32.gmra.mrb[0].mxu0 %v3626
        %v3941 = vpop.f32.mrb[0].mxu0
        %v3942 = vadd.f32 0.0, %v3941
        %v3943 = vpop.f32.mrb[0].mxu0
        %v3944 = vadd.f32 0.0, %v3943
        %3945 = vmatprep.mubr.f32.mxu0 0.0
        %3946 = vmatmul.mubr.f32.gmra.mrb[0].mxu0 %v3629
        %v3947 = vpop.f32.mrb[0].mxu0
        %v3948 = vadd.f32 0.0, %v3947
        %v3949 = vpop.f32.mrb[0].mxu0
        %v3950 = vadd.f32 0.0, %v3949
        %3951 = vmatprep.mubr.f32.mxu0 0.0
        %3952 = vmatmul.mubr.f32.gmra.mrb[0].mxu0 %v3632
        %v3953 = vpop.f32.mrb[0].mxu0
        %v3954 = vadd.f32 0.0, %v3953
        %v3955 = vpop.f32.mrb[0].mxu0
        %v3956 = vadd.f32 0.0, %v3955
        %3957 = vmatprep.mubr.f32.mxu0 0.0
        %3958 = vmatmul.mubr.f32.gmra.mrb[0].mxu0 %v3635
        %v3959 = vpop.f32.mrb[0].mxu0
        %v3960 = vadd.f32 0.0, %v3959
        %v3961 = vpop.f32.mrb[0].mxu0
        %v3962 = vadd.f32 0.0, %v3961
        %3963 = vmatprep.mubr.f32.mxu0 0.0
        %3964 = vmatmul.mubr.f32.gmra.mrb[0].mxu0 %v3638
        %v3965 = vpop.f32.mrb[0].mxu0
        %v3966 = vadd.f32 0.0, %v3965
        %v3967 = vpop.f32.mrb[0].mxu0
        %v3968 = vadd.f32 0.0, %v3967
        %3969 = vmatprep.mubr.f32.mxu0 0.0
        %3970 = vmatmul.mubr.f32.gmra.mrb[0].mxu0 %v3641
        %v3971 = vpop.f32.mrb[0].mxu0
        %v3972 = vadd.f32 0.0, %v3971
        %v3973 = vpop.f32.mrb[0].mxu0
        %v3974 = vadd.f32 0.0, %v3973
        %3975 = vmatprep.mubr.f32.mxu0 0.0
        %3976 = vmatmul.mubr.f32.gmra.mrb[0].mxu0 %v3644
        %v3977 = vpop.f32.mrb[0].mxu0
        %v3978 = vadd.f32 0.0, %v3977
        %v3979 = vpop.f32.mrb[0].mxu0
        %v3980 = vadd.f32 0.0, %v3979
        %3981 = vmatprep.mubr.f32.mxu0 0.0
        %3982 = vmatmul.mubr.f32.gmra.mrb[0].mxu0 %v3647
        %v3983 = vpop.f32.mrb[0].mxu0
        %v3984 = vadd.f32 0.0, %v3983
        %v3985 = vpop.f32.mrb[0].mxu0
        %v3986 = vadd.f32 0.0, %v3985
        %3987 = vdwg.mxu0
        %3988 = vmatprep.subr.mxu0 %v608
        %3989 = vmatpush1.msra.mxu0 %v607
        %3990 = vmatprep.subr.mxu0 %v616
        %3991 = vmatpush1.msra.mxu0 %v615
        %3992 = vmatprep.subr.mxu0 %v624
        %3993 = vmatpush1.msra.mxu0 %v623
        %3994 = vmatprep.subr.mxu0 %v632
        %3995 = vmatpush1.msra.mxu0 %v631
        %3996 = vmatprep.subr.mxu0 0.0
        %3997 = vmatpush1.msra.mxu0 0.0
        %3998 = vmatprep.subr.mxu0 0.0
        %3999 = vmatpush1.msra.mxu0 0.0
        %4000 = vmatprep.subr.mxu0 0.0
        %4001 = vmatpush1.msra.mxu0 0.0
        %4002 = vmatprep.subr.mxu0 0.0
        %4003 = vmatpush1.msra.mxu0 0.0
        %4004 = vmatprep.subr.mxu0 0.0
        %4005 = vmatpush1.msra.mxu0 0.0
        %4006 = vmatprep.subr.mxu0 0.0
        %4007 = vmatpush1.msra.mxu0 0.0
        %4008 = vmatprep.subr.mxu0 0.0
        %4009 = vmatpush1.msra.mxu0 0.0
        %4010 = vmatprep.subr.mxu0 0.0
        %4011 = vmatpush1.msra.mxu0 0.0
        %4012 = vmatprep.subr.mxu0 0.0
        %4013 = vmatpush1.msra.mxu0 0.0
        %4014 = vmatprep.subr.mxu0 0.0
        %4015 = vmatpush1.msra.mxu0 0.0
        %4016 = vmatprep.subr.mxu0 0.0
        %4017 = vmatpush1.msra.mxu0 0.0
        %4018 = vmatprep.subr.mxu0 0.0
        %4019 = vmatpush1.msra.mxu0 0.0
        %4020 = vmatprep.subr.mxu0 0.0
        %4021 = vmatpush1.msra.mxu0 0.0
        %4022 = vmatprep.subr.mxu0 0.0
        %4023 = vmatpush1.msra.mxu0 0.0
        %4024 = vmatprep.subr.mxu0 0.0
        %4025 = vmatpush1.msra.mxu0 0.0
        %4026 = vmatprep.subr.mxu0 0.0
        %4027 = vmatpush1.msra.mxu0 0.0
        %4028 = vmatprep.subr.mxu0 0.0
        %4029 = vmatpush1.msra.mxu0 0.0
        %4030 = vmatprep.subr.mxu0 0.0
        %4031 = vmatpush1.msra.mxu0 0.0
        %4032 = vmatprep.subr.mxu0 0.0
        %4033 = vmatpush1.msra.mxu0 0.0
        %4034 = vmatprep.subr.mxu0 0.0
        %4035 = vmatpush1.msra.mxu0 0.0
        %4036 = vmatprep.subr.mxu0 0.0
        %4037 = vmatpush1.msra.mxu0 0.0
        %4038 = vmatprep.subr.mxu0 0.0
        %4039 = vmatpush1.msra.mxu0 0.0
        %4040 = vmatprep.subr.mxu0 0.0
        %4041 = vmatpush1.msra.mxu0 0.0
        %4042 = vmatprep.subr.mxu0 0.0
        %4043 = vmatpush1.msra.mxu0 0.0
        %4044 = vmatprep.subr.mxu0 0.0
        %4045 = vmatpush1.msra.mxu0 0.0
        %4046 = vmatprep.subr.mxu0 0.0
        %4047 = vmatpush1.msra.mxu0 0.0
        %4048 = vmatprep.subr.mxu0 0.0
        %4049 = vmatpush1.msra.mxu0 0.0
        %4050 = vmatprep.subr.mxu0 0.0
        %4051 = vmatpush1.msra.mxu0 0.0
        %4052 = vmatprep.mubr.f32.mxu0 0.0
        %4053 = vmatmul.mubr.f32.gmra.mrb[0].mxu0 %v3626
        %v4054 = vpop.f32.mrb[0].mxu0
        %v4055 = vadd.f32 0.0, %v4054
        %v4056 = vpop.f32.mrb[0].mxu0
        %v4057 = vadd.f32 0.0, %v4056
        %4058 = vmatprep.mubr.f32.mxu0 0.0
        %4059 = vmatmul.mubr.f32.gmra.mrb[0].mxu0 %v3629
        %v4060 = vpop.f32.mrb[0].mxu0
        %v4061 = vadd.f32 0.0, %v4060
        %v4062 = vpop.f32.mrb[0].mxu0
        %v4063 = vadd.f32 0.0, %v4062
        %4064 = vmatprep.mubr.f32.mxu0 0.0
        %4065 = vmatmul.mubr.f32.gmra.mrb[0].mxu0 %v3632
        %v4066 = vpop.f32.mrb[0].mxu0
        %v4067 = vadd.f32 0.0, %v4066
        %v4068 = vpop.f32.mrb[0].mxu0
        %v4069 = vadd.f32 0.0, %v4068
        %4070 = vmatprep.mubr.f32.mxu0 0.0
        %4071 = vmatmul.mubr.f32.gmra.mrb[0].mxu0 %v3635
        %v4072 = vpop.f32.mrb[0].mxu0
        %v4073 = vadd.f32 0.0, %v4072
        %v4074 = vpop.f32.mrb[0].mxu0
        %v4075 = vadd.f32 0.0, %v4074
        %4076 = vmatprep.mubr.f32.mxu0 0.0
        %4077 = vmatmul.mubr.f32.gmra.mrb[0].mxu0 %v3638
        %v4078 = vpop.f32.mrb[0].mxu0
        %v4079 = vadd.f32 0.0, %v4078
        %v4080 = vpop.f32.mrb[0].mxu0
        %v4081 = vadd.f32 0.0, %v4080
        %4082 = vmatprep.mubr.f32.mxu0 0.0
        %4083 = vmatmul.mubr.f32.gmra.mrb[0].mxu0 %v3641
        %v4084 = vpop.f32.mrb[0].mxu0
        %v4085 = vadd.f32 0.0, %v4084
        %v4086 = vpop.f32.mrb[0].mxu0
        %v4087 = vadd.f32 0.0, %v4086
        %4088 = vmatprep.mubr.f32.mxu0 0.0
        %4089 = vmatmul.mubr.f32.gmra.mrb[0].mxu0 %v3644
        %v4090 = vpop.f32.mrb[0].mxu0
        %v4091 = vadd.f32 0.0, %v4090
        %v4092 = vpop.f32.mrb[0].mxu0
        %v4093 = vadd.f32 0.0, %v4092
        %4094 = vmatprep.mubr.f32.mxu0 0.0
        %4095 = vmatmul.mubr.f32.gmra.mrb[0].mxu0 %v3647
        %v4096 = vpop.f32.mrb[0].mxu0
        %v4097 = vadd.f32 0.0, %v4096
        %v4098 = vpop.f32.mrb[0].mxu0
        %v4099 = vadd.f32 0.0, %v4098
        %4100 = vdwg.mxu0
        %v4101 = vmul.f32 %v3240, %v3716
        %v4102 = vmul.f32 %v3242, %v3718
        %v4103 = vmul.f32 %v3353, %v3829
        %v4104 = vmul.f32 %v3355, %v3831
        %v4105 = vmul.f32 %v3466, %v3942
        %v4106 = vmul.f32 %v3468, %v3944
        %v4107 = vmul.f32 %v3579, %v4055
        %v4108 = vmul.f32 %v3581, %v4057
        %v4109 = vmul.f32 %v3246, %v3722
        %v4110 = vmul.f32 %v3248, %v3724
        %v4111 = vmul.f32 %v3359, %v3835
        %v4112 = vmul.f32 %v3361, %v3837
        %v4113 = vmul.f32 %v3472, %v3948
        %v4114 = vmul.f32 %v3474, %v3950
        %v4115 = vmul.f32 %v3585, %v4061
        %v4116 = vmul.f32 %v3587, %v4063
        %v4117 = vmul.f32 %v3252, %v3728
        %v4118 = vmul.f32 %v3254, %v3730
        %v4119 = vmul.f32 %v3365, %v3841
        %v4120 = vmul.f32 %v3367, %v3843
        %v4121 = vmul.f32 %v3478, %v3954
        %v4122 = vmul.f32 %v3480, %v3956
        %v4123 = vmul.f32 %v3591, %v4067
        %v4124 = vmul.f32 %v3593, %v4069
        %v4125 = vmul.f32 %v3258, %v3734
        %v4126 = vmul.f32 %v3260, %v3736
        %v4127 = vmul.f32 %v3371, %v3847
        %v4128 = vmul.f32 %v3373, %v3849
        %v4129 = vmul.f32 %v3484, %v3960
        %v4130 = vmul.f32 %v3486, %v3962
        %v4131 = vmul.f32 %v3597, %v4073
        %v4132 = vmul.f32 %v3599, %v4075
        %v4133 = vmul.f32 %v3264, %v3740
        %v4134 = vmul.f32 %v3266, %v3742
        %v4135 = vmul.f32 %v3377, %v3853
        %v4136 = vmul.f32 %v3379, %v3855
        %v4137 = vmul.f32 %v3490, %v3966
        %v4138 = vmul.f32 %v3492, %v3968
        %v4139 = vmul.f32 %v3603, %v4079
        %v4140 = vmul.f32 %v3605, %v4081
        %v4141 = vmul.f32 %v3270, %v3746
        %v4142 = vmul.f32 %v3272, %v3748
        %v4143 = vmul.f32 %v3383, %v3859
        %v4144 = vmul.f32 %v3385, %v3861
        %v4145 = vmul.f32 %v3496, %v3972
        %v4146 = vmul.f32 %v3498, %v3974
        %v4147 = vmul.f32 %v3609, %v4085
        %v4148 = vmul.f32 %v3611, %v4087
        %v4149 = vmul.f32 %v3276, %v3752
        %v4150 = vmul.f32 %v3278, %v3754
        %v4151 = vmul.f32 %v3389, %v3865
        %v4152 = vmul.f32 %v3391, %v3867
        %v4153 = vmul.f32 %v3502, %v3978
        %v4154 = vmul.f32 %v3504, %v3980
        %v4155 = vmul.f32 %v3615, %v4091
        %v4156 = vmul.f32 %v3617, %v4093
        %v4157 = vmul.f32 %v3282, %v3758
        %v4158 = vmul.f32 %v3284, %v3760
        %v4159 = vmul.f32 %v3395, %v3871
        %v4160 = vmul.f32 %v3397, %v3873
        %v4161 = vmul.f32 %v3508, %v3984
        %v4162 = vmul.f32 %v3510, %v3986
        %v4163 = vmul.f32 %v3621, %v4097
        %v4164 = vmul.f32 %v3623, %v4099
        %s4165 = scalar_lea.vmem %s8, 1024
        %v4166 = vld [vmem:[%s4165] sm:$0xff]
        %v4167 = vld [vmem:[%s4165 + $0x8] sm:$0xff]
        %v4168 = vld [vmem:[%s4165 + $0x10] sm:$0xff]
        %v4169 = vld [vmem:[%s4165 + $0x18] sm:$0xff]
        %v4170 = vld [vmem:[%s4165 + $0x20] sm:$0xff]
        %v4171 = vld [vmem:[%s4165 + $0x28] sm:$0xff]
        %v4172 = vld [vmem:[%s4165 + $0x30] sm:$0xff]
        %v4173 = vld [vmem:[%s4165 + $0x38] sm:$0xff]
        %v4174 = vld [vmem:[%s4165 + $0x40] sm:$0xff]
        %v4175 = vld [vmem:[%s4165 + $0x48] sm:$0xff]
        %v4176 = vld [vmem:[%s4165 + $0x50] sm:$0xff]
        %v4177 = vld [vmem:[%s4165 + $0x58] sm:$0xff]
        %v4178 = vld [vmem:[%s4165 + $0x60] sm:$0xff]
        %v4179 = vld [vmem:[%s4165 + $0x68] sm:$0xff]
        %v4180 = vld [vmem:[%s4165 + $0x70] sm:$0xff]
        %v4181 = vld [vmem:[%s4165 + $0x78] sm:$0xff]
        %v4182 = vld [vmem:[%s4165 + $0x80] sm:$0xff]
        %v4183 = vld [vmem:[%s4165 + $0x88] sm:$0xff]
        %v4184 = vld [vmem:[%s4165 + $0x90] sm:$0xff]
        %v4185 = vld [vmem:[%s4165 + $0x98] sm:$0xff]
        %v4186 = vld [vmem:[%s4165 + $0xa0] sm:$0xff]
        %v4187 = vld [vmem:[%s4165 + $0xa8] sm:$0xff]
        %v4188 = vld [vmem:[%s4165 + $0xb0] sm:$0xff]
        %v4189 = vld [vmem:[%s4165 + $0xb8] sm:$0xff]
        %v4190 = vld [vmem:[%s4165 + $0xc0] sm:$0xff]
        %v4191 = vld [vmem:[%s4165 + $0xc8] sm:$0xff]
        %v4192 = vld [vmem:[%s4165 + $0xd0] sm:$0xff]
        %v4193 = vld [vmem:[%s4165 + $0xd8] sm:$0xff]
        %v4194 = vld [vmem:[%s4165 + $0xe0] sm:$0xff]
        %v4195 = vld [vmem:[%s4165 + $0xe8] sm:$0xff]
        %v4196 = vld [vmem:[%s4165 + $0xf0] sm:$0xff]
        %v4197 = vld [vmem:[%s4165 + $0xf8] sm:$0xff]
        %v4198 = vld [vmem:[%s4165 + $0x100] sm:$0xff]
        %v4199 = vld [vmem:[%s4165 + $0x108] sm:$0xff]
        %v4200 = vld [vmem:[%s4165 + $0x110] sm:$0xff]
        %v4201 = vld [vmem:[%s4165 + $0x118] sm:$0xff]
        %v4202 = vld [vmem:[%s4165 + $0x120] sm:$0xff]
        %v4203 = vld [vmem:[%s4165 + $0x128] sm:$0xff]
        %v4204 = vld [vmem:[%s4165 + $0x130] sm:$0xff]
        %v4205 = vld [vmem:[%s4165 + $0x138] sm:$0xff]
        %v4206 = vld [vmem:[%s4165 + $0x140] sm:$0xff]
        %v4207 = vld [vmem:[%s4165 + $0x148] sm:$0xff]
        %v4208 = vld [vmem:[%s4165 + $0x150] sm:$0xff]
        %v4209 = vld [vmem:[%s4165 + $0x158] sm:$0xff]
        %v4210 = vld [vmem:[%s4165 + $0x160] sm:$0xff]
        %v4211 = vld [vmem:[%s4165 + $0x168] sm:$0xff]
        %v4212 = vld [vmem:[%s4165 + $0x170] sm:$0xff]
        %v4213 = vld [vmem:[%s4165 + $0x178] sm:$0xff]
        %v4214 = vld [vmem:[%s4165 + $0x180] sm:$0xff]
        %v4215 = vld [vmem:[%s4165 + $0x188] sm:$0xff]
        %v4216 = vld [vmem:[%s4165 + $0x190] sm:$0xff]
        %v4217 = vld [vmem:[%s4165 + $0x198] sm:$0xff]
        %v4218 = vld [vmem:[%s4165 + $0x1a0] sm:$0xff]
        %v4219 = vld [vmem:[%s4165 + $0x1a8] sm:$0xff]
        %v4220 = vld [vmem:[%s4165 + $0x1b0] sm:$0xff]
        %v4221 = vld [vmem:[%s4165 + $0x1b8] sm:$0xff]
        %v4222 = vld [vmem:[%s4165 + $0x1c0] sm:$0xff]
        %v4223 = vld [vmem:[%s4165 + $0x1c8] sm:$0xff]
        %v4224 = vld [vmem:[%s4165 + $0x1d0] sm:$0xff]
        %v4225 = vld [vmem:[%s4165 + $0x1d8] sm:$0xff]
        %v4226 = vld [vmem:[%s4165 + $0x1e0] sm:$0xff]
        %v4227 = vld [vmem:[%s4165 + $0x1e8] sm:$0xff]
        %v4228 = vld [vmem:[%s4165 + $0x1f0] sm:$0xff]
        %v4229 = vld [vmem:[%s4165 + $0x1f8] sm:$0xff]
        %v4230 = vld [vmem:[%s4165 + $0x200] sm:$0xff]
        %v4231 = vld [vmem:[%s4165 + $0x208] sm:$0xff]
        %v4232 = vld [vmem:[%s4165 + $0x210] sm:$0xff]
        %v4233 = vld [vmem:[%s4165 + $0x218] sm:$0xff]
        %v4234 = vld [vmem:[%s4165 + $0x220] sm:$0xff]
        %v4235 = vld [vmem:[%s4165 + $0x228] sm:$0xff]
        %v4236 = vld [vmem:[%s4165 + $0x230] sm:$0xff]
        %v4237 = vld [vmem:[%s4165 + $0x238] sm:$0xff]
        %v4238 = vld [vmem:[%s4165 + $0x240] sm:$0xff]
        %v4239 = vld [vmem:[%s4165 + $0x248] sm:$0xff]
        %v4240 = vld [vmem:[%s4165 + $0x250] sm:$0xff]
        %v4241 = vld [vmem:[%s4165 + $0x258] sm:$0xff]
        %v4242 = vld [vmem:[%s4165 + $0x260] sm:$0xff]
        %v4243 = vld [vmem:[%s4165 + $0x268] sm:$0xff]
        %v4244 = vld [vmem:[%s4165 + $0x270] sm:$0xff]
        %v4245 = vld [vmem:[%s4165 + $0x278] sm:$0xff]
        %v4246 = vld [vmem:[%s4165 + $0x280] sm:$0xff]
        %v4247 = vld [vmem:[%s4165 + $0x288] sm:$0xff]
        %v4248 = vld [vmem:[%s4165 + $0x290] sm:$0xff]
        %v4249 = vld [vmem:[%s4165 + $0x298] sm:$0xff]
        %v4250 = vld [vmem:[%s4165 + $0x2a0] sm:$0xff]
        %v4251 = vld [vmem:[%s4165 + $0x2a8] sm:$0xff]
        %v4252 = vld [vmem:[%s4165 + $0x2b0] sm:$0xff]
        %v4253 = vld [vmem:[%s4165 + $0x2b8] sm:$0xff]
        %v4254 = vld [vmem:[%s4165 + $0x2c0] sm:$0xff]
        %v4255 = vld [vmem:[%s4165 + $0x2c8] sm:$0xff]
        %v4256 = vld [vmem:[%s4165 + $0x2d0] sm:$0xff]
        %v4257 = vld [vmem:[%s4165 + $0x2d8] sm:$0xff]
        %v4258 = vld [vmem:[%s4165 + $0x2e0] sm:$0xff]
        %v4259 = vld [vmem:[%s4165 + $0x2e8] sm:$0xff]
        %v4260 = vld [vmem:[%s4165 + $0x2f0] sm:$0xff]
        %v4261 = vld [vmem:[%s4165 + $0x2f8] sm:$0xff]
        %v4262 = vld [vmem:[%s4165 + $0x300] sm:$0xff]
        %v4263 = vld [vmem:[%s4165 + $0x308] sm:$0xff]
        %v4264 = vld [vmem:[%s4165 + $0x310] sm:$0xff]
        %v4265 = vld [vmem:[%s4165 + $0x318] sm:$0xff]
        %v4266 = vld [vmem:[%s4165 + $0x320] sm:$0xff]
        %v4267 = vld [vmem:[%s4165 + $0x328] sm:$0xff]
        %v4268 = vld [vmem:[%s4165 + $0x330] sm:$0xff]
        %v4269 = vld [vmem:[%s4165 + $0x338] sm:$0xff]
        %v4270 = vld [vmem:[%s4165 + $0x340] sm:$0xff]
        %v4271 = vld [vmem:[%s4165 + $0x348] sm:$0xff]
        %v4272 = vld [vmem:[%s4165 + $0x350] sm:$0xff]
        %v4273 = vld [vmem:[%s4165 + $0x358] sm:$0xff]
        %v4274 = vld [vmem:[%s4165 + $0x360] sm:$0xff]
        %v4275 = vld [vmem:[%s4165 + $0x368] sm:$0xff]
        %v4276 = vld [vmem:[%s4165 + $0x370] sm:$0xff]
        %v4277 = vld [vmem:[%s4165 + $0x378] sm:$0xff]
        %v4278 = vld [vmem:[%s4165 + $0x380] sm:$0xff]
        %v4279 = vld [vmem:[%s4165 + $0x388] sm:$0xff]
        %v4280 = vld [vmem:[%s4165 + $0x390] sm:$0xff]
        %v4281 = vld [vmem:[%s4165 + $0x398] sm:$0xff]
        %v4282 = vld [vmem:[%s4165 + $0x3a0] sm:$0xff]
        %v4283 = vld [vmem:[%s4165 + $0x3a8] sm:$0xff]
        %v4284 = vld [vmem:[%s4165 + $0x3b0] sm:$0xff]
        %v4285 = vld [vmem:[%s4165 + $0x3b8] sm:$0xff]
        %v4286 = vld [vmem:[%s4165 + $0x3c0] sm:$0xff]
        %v4287 = vld [vmem:[%s4165 + $0x3c8] sm:$0xff]
        %v4288 = vld [vmem:[%s4165 + $0x3d0] sm:$0xff]
        %v4289 = vld [vmem:[%s4165 + $0x3d8] sm:$0xff]
        %v4290 = vld [vmem:[%s4165 + $0x3e0] sm:$0xff]
        %v4291 = vld [vmem:[%s4165 + $0x3e8] sm:$0xff]
        %v4292 = vld [vmem:[%s4165 + $0x3f0] sm:$0xff]
        %v4293 = vld [vmem:[%s4165 + $0x3f8] sm:$0xff]
        %s4294 = scalar_lea.vmem %s9, 32
        %v4295 = vld [vmem:[%s4294] sm:$0xff]
        %v4296 = vld [vmem:[%s4294 + $0x8] sm:$0xff]
        %v4297 = vld [vmem:[%s4294 + $0x10] sm:$0xff]
        %v4298 = vld [vmem:[%s4294 + $0x18] sm:$0xff]
        %4299 = vmatprep.subr.mxu0 0.0
        %4300 = vmatpush1.msra.mxu0 %v4295
        %4301 = vmatprep.subr.mxu0 0.0
        %4302 = vmatpush1.msra.mxu0 %v4296
        %4303 = vmatprep.subr.mxu0 0.0
        %4304 = vmatpush1.msra.mxu0 %v4297
        %4305 = vmatprep.subr.mxu0 0.0
        %4306 = vmatpush1.msra.mxu0 %v4298
        %4307 = vmatprep.subr.mxu0 0.0
        %4308 = vmatpush1.msra.mxu0 0.0
        %4309 = vmatprep.subr.mxu0 0.0
        %4310 = vmatpush1.msra.mxu0 0.0
        %4311 = vmatprep.subr.mxu0 0.0
        %4312 = vmatpush1.msra.mxu0 0.0
        %4313 = vmatprep.subr.mxu0 0.0
        %4314 = vmatpush1.msra.mxu0 0.0
        %4315 = vmatprep.subr.mxu0 0.0
        %4316 = vmatpush1.msra.mxu0 0.0
        %4317 = vmatprep.subr.mxu0 0.0
        %4318 = vmatpush1.msra.mxu0 0.0
        %4319 = vmatprep.subr.mxu0 0.0
        %4320 = vmatpush1.msra.mxu0 0.0
        %4321 = vmatprep.subr.mxu0 0.0
        %4322 = vmatpush1.msra.mxu0 0.0
        %4323 = vmatprep.subr.mxu0 0.0
        %4324 = vmatpush1.msra.mxu0 0.0
        %4325 = vmatprep.subr.mxu0 0.0
        %4326 = vmatpush1.msra.mxu0 0.0
        %4327 = vmatprep.subr.mxu0 0.0
        %4328 = vmatpush1.msra.mxu0 0.0
        %4329 = vmatprep.subr.mxu0 0.0
        %4330 = vmatpush1.msra.mxu0 0.0
        %4331 = vmatprep.subr.mxu0 0.0
        %4332 = vmatpush1.msra.mxu0 0.0
        %4333 = vmatprep.subr.mxu0 0.0
        %4334 = vmatpush1.msra.mxu0 0.0
        %4335 = vmatprep.subr.mxu0 0.0
        %4336 = vmatpush1.msra.mxu0 0.0
        %4337 = vmatprep.subr.mxu0 0.0
        %4338 = vmatpush1.msra.mxu0 0.0
        %4339 = vmatprep.subr.mxu0 0.0
        %4340 = vmatpush1.msra.mxu0 0.0
        %4341 = vmatprep.subr.mxu0 0.0
        %4342 = vmatpush1.msra.mxu0 0.0
        %4343 = vmatprep.subr.mxu0 0.0
        %4344 = vmatpush1.msra.mxu0 0.0
        %4345 = vmatprep.subr.mxu0 0.0
        %4346 = vmatpush1.msra.mxu0 0.0
        %4347 = vmatprep.subr.mxu0 0.0
        %4348 = vmatpush1.msra.mxu0 0.0
        %4349 = vmatprep.subr.mxu0 0.0
        %4350 = vmatpush1.msra.mxu0 0.0
        %4351 = vmatprep.subr.mxu0 0.0
        %4352 = vmatpush1.msra.mxu0 0.0
        %4353 = vmatprep.subr.mxu0 0.0
        %4354 = vmatpush1.msra.mxu0 0.0
        %4355 = vmatprep.subr.mxu0 0.0
        %4356 = vmatpush1.msra.mxu0 0.0
        %4357 = vmatprep.subr.mxu0 0.0
        %4358 = vmatpush1.msra.mxu0 0.0
        %4359 = vmatprep.subr.mxu0 0.0
        %4360 = vmatpush1.msra.mxu0 0.0
        %4361 = vmatprep.subr.mxu0 0.0
        %4362 = vmatpush1.msra.mxu0 0.0
        %4363 = vmatprep.mubr.f32.mxu0 0.0
        %4364 = vmatmul.mubr.f32.gmra.mrb[0].mxu0 %v3150
        %v4365 = vpop.f32.mrb[0].mxu0
        %v4366 = vadd.f32 0.0, %v4365
        %v4367 = vpop.f32.mrb[0].mxu0
        %4368 = vmatprep.mubr.f32.mxu0 0.0
        %4369 = vmatmul.mubr.f32.gmra.mrb[0].mxu0 %v3153
        %v4370 = vpop.f32.mrb[0].mxu0
        %v4371 = vadd.f32 0.0, %v4370
        %v4372 = vpop.f32.mrb[0].mxu0
        %4373 = vmatprep.mubr.f32.mxu0 0.0
        %4374 = vmatmul.mubr.f32.gmra.mrb[0].mxu0 %v3156
        %v4375 = vpop.f32.mrb[0].mxu0
        %v4376 = vadd.f32 0.0, %v4375
        %v4377 = vpop.f32.mrb[0].mxu0
        %4378 = vmatprep.mubr.f32.mxu0 0.0
        %4379 = vmatmul.mubr.f32.gmra.mrb[0].mxu0 %v3159
        %v4380 = vpop.f32.mrb[0].mxu0
        %v4381 = vadd.f32 0.0, %v4380
        %v4382 = vpop.f32.mrb[0].mxu0
        %4383 = vmatprep.mubr.f32.mxu0 0.0
        %4384 = vmatmul.mubr.f32.gmra.mrb[0].mxu0 %v3162
        %v4385 = vpop.f32.mrb[0].mxu0
        %v4386 = vadd.f32 0.0, %v4385
        %v4387 = vpop.f32.mrb[0].mxu0
        %4388 = vmatprep.mubr.f32.mxu0 0.0
        %4389 = vmatmul.mubr.f32.gmra.mrb[0].mxu0 %v3165
        %v4390 = vpop.f32.mrb[0].mxu0
        %v4391 = vadd.f32 0.0, %v4390
        %v4392 = vpop.f32.mrb[0].mxu0
        %4393 = vmatprep.mubr.f32.mxu0 0.0
        %4394 = vmatmul.mubr.f32.gmra.mrb[0].mxu0 %v3168
        %v4395 = vpop.f32.mrb[0].mxu0
        %v4396 = vadd.f32 0.0, %v4395
        %v4397 = vpop.f32.mrb[0].mxu0
        %4398 = vmatprep.mubr.f32.mxu0 0.0
        %4399 = vmatmul.mubr.f32.gmra.mrb[0].mxu0 %v3171
        %v4400 = vpop.f32.mrb[0].mxu0
        %v4401 = vadd.f32 0.0, %v4400
        %v4402 = vpop.f32.mrb[0].mxu0
        %4403 = vdwg.mxu0
        %4404 = vmatprep.subr.mxu0 0.0
        %4405 = vmatpush1.msra.mxu0 %v4166
        %4406 = vmatprep.subr.mxu0 0.0
        %4407 = vmatpush1.msra.mxu0 %v4167
        %4408 = vmatprep.subr.mxu0 0.0
        %4409 = vmatpush1.msra.mxu0 %v4168
        %4410 = vmatprep.subr.mxu0 0.0
        %4411 = vmatpush1.msra.mxu0 %v4169
        %4412 = vmatprep.subr.mxu0 0.0
        %4413 = vmatpush1.msra.mxu0 %v4170
        %4414 = vmatprep.subr.mxu0 0.0
        %4415 = vmatpush1.msra.mxu0 %v4171
        %4416 = vmatprep.subr.mxu0 0.0
        %4417 = vmatpush1.msra.mxu0 %v4172
        %4418 = vmatprep.subr.mxu0 0.0
        %4419 = vmatpush1.msra.mxu0 %v4173
        %4420 = vmatprep.subr.mxu0 0.0
        %4421 = vmatpush1.msra.mxu0 %v4174
        %4422 = vmatprep.subr.mxu0 0.0
        %4423 = vmatpush1.msra.mxu0 %v4175
        %4424 = vmatprep.subr.mxu0 0.0
        %4425 = vmatpush1.msra.mxu0 %v4176
        %4426 = vmatprep.subr.mxu0 0.0
        %4427 = vmatpush1.msra.mxu0 %v4177
        %4428 = vmatprep.subr.mxu0 0.0
        %4429 = vmatpush1.msra.mxu0 %v4178
        %4430 = vmatprep.subr.mxu0 0.0
        %4431 = vmatpush1.msra.mxu0 %v4179
        %4432 = vmatprep.subr.mxu0 0.0
        %4433 = vmatpush1.msra.mxu0 %v4180
        %4434 = vmatprep.subr.mxu0 0.0
        %4435 = vmatpush1.msra.mxu0 %v4181
        %4436 = vmatprep.subr.mxu0 0.0
        %4437 = vmatpush1.msra.mxu0 %v4182
        %4438 = vmatprep.subr.mxu0 0.0
        %4439 = vmatpush1.msra.mxu0 %v4183
        %4440 = vmatprep.subr.mxu0 0.0
        %4441 = vmatpush1.msra.mxu0 %v4184
        %4442 = vmatprep.subr.mxu0 0.0
        %4443 = vmatpush1.msra.mxu0 %v4185
        %4444 = vmatprep.subr.mxu0 0.0
        %4445 = vmatpush1.msra.mxu0 %v4186
        %4446 = vmatprep.subr.mxu0 0.0
        %4447 = vmatpush1.msra.mxu0 %v4187
        %4448 = vmatprep.subr.mxu0 0.0
        %4449 = vmatpush1.msra.mxu0 %v4188
        %4450 = vmatprep.subr.mxu0 0.0
        %4451 = vmatpush1.msra.mxu0 %v4189
        %4452 = vmatprep.subr.mxu0 0.0
        %4453 = vmatpush1.msra.mxu0 %v4190
        %4454 = vmatprep.subr.mxu0 0.0
        %4455 = vmatpush1.msra.mxu0 %v4191
        %4456 = vmatprep.subr.mxu0 0.0
        %4457 = vmatpush1.msra.mxu0 %v4192
        %4458 = vmatprep.subr.mxu0 0.0
        %4459 = vmatpush1.msra.mxu0 %v4193
        %4460 = vmatprep.subr.mxu0 0.0
        %4461 = vmatpush1.msra.mxu0 %v4194
        %4462 = vmatprep.subr.mxu0 0.0
        %4463 = vmatpush1.msra.mxu0 %v4195
        %4464 = vmatprep.subr.mxu0 0.0
        %4465 = vmatpush1.msra.mxu0 %v4196
        %4466 = vmatprep.subr.mxu0 0.0
        %4467 = vmatpush1.msra.mxu0 %v4197
        %4468 = vmatprep.mubr.f32.mxu0 %v4102
        %4469 = vmatmul.mubr.f32.gmra.mrb[0].mxu0 %v4101
        %v4470 = vpop.f32.mrb[0].mxu0
        %v4471 = vadd.f32 %v4366, %v4470
        %v4472 = vpop.f32.mrb[0].mxu0
        %4473 = vmatprep.mubr.f32.mxu0 %v4110
        %4474 = vmatmul.mubr.f32.gmra.mrb[0].mxu0 %v4109
        %v4475 = vpop.f32.mrb[0].mxu0
        %v4476 = vadd.f32 %v4371, %v4475
        %v4477 = vpop.f32.mrb[0].mxu0
        %4478 = vmatprep.mubr.f32.mxu0 %v4118
        %4479 = vmatmul.mubr.f32.gmra.mrb[0].mxu0 %v4117
        %v4480 = vpop.f32.mrb[0].mxu0
        %v4481 = vadd.f32 %v4376, %v4480
        %v4482 = vpop.f32.mrb[0].mxu0
        %4483 = vmatprep.mubr.f32.mxu0 %v4126
        %4484 = vmatmul.mubr.f32.gmra.mrb[0].mxu0 %v4125
        %v4485 = vpop.f32.mrb[0].mxu0
        %v4486 = vadd.f32 %v4381, %v4485
        %v4487 = vpop.f32.mrb[0].mxu0
        %4488 = vmatprep.mubr.f32.mxu0 %v4134
        %4489 = vmatmul.mubr.f32.gmra.mrb[0].mxu0 %v4133
        %v4490 = vpop.f32.mrb[0].mxu0
        %v4491 = vadd.f32 %v4386, %v4490
        %v4492 = vpop.f32.mrb[0].mxu0
        %4493 = vmatprep.mubr.f32.mxu0 %v4142
        %4494 = vmatmul.mubr.f32.gmra.mrb[0].mxu0 %v4141
        %v4495 = vpop.f32.mrb[0].mxu0
        %v4496 = vadd.f32 %v4391, %v4495
        %v4497 = vpop.f32.mrb[0].mxu0
        %4498 = vmatprep.mubr.f32.mxu0 %v4150
        %4499 = vmatmul.mubr.f32.gmra.mrb[0].mxu0 %v4149
        %v4500 = vpop.f32.mrb[0].mxu0
        %v4501 = vadd.f32 %v4396, %v4500
        %v4502 = vpop.f32.mrb[0].mxu0
        %4503 = vmatprep.mubr.f32.mxu0 %v4158
        %4504 = vmatmul.mubr.f32.gmra.mrb[0].mxu0 %v4157
        %v4505 = vpop.f32.mrb[0].mxu0
        %v4506 = vadd.f32 %v4401, %v4505
        %v4507 = vpop.f32.mrb[0].mxu0
        %4508 = vdwg.mxu0
        %4509 = vmatprep.subr.mxu0 0.0
        %4510 = vmatpush1.msra.mxu0 %v4198
        %4511 = vmatprep.subr.mxu0 0.0
        %4512 = vmatpush1.msra.mxu0 %v4199
        %4513 = vmatprep.subr.mxu0 0.0
        %4514 = vmatpush1.msra.mxu0 %v4200
        %4515 = vmatprep.subr.mxu0 0.0
        %4516 = vmatpush1.msra.mxu0 %v4201
        %4517 = vmatprep.subr.mxu0 0.0
        %4518 = vmatpush1.msra.mxu0 %v4202
        %4519 = vmatprep.subr.mxu0 0.0
        %4520 = vmatpush1.msra.mxu0 %v4203
        %4521 = vmatprep.subr.mxu0 0.0
        %4522 = vmatpush1.msra.mxu0 %v4204
        %4523 = vmatprep.subr.mxu0 0.0
        %4524 = vmatpush1.msra.mxu0 %v4205
        %4525 = vmatprep.subr.mxu0 0.0
        %4526 = vmatpush1.msra.mxu0 %v4206
        %4527 = vmatprep.subr.mxu0 0.0
        %4528 = vmatpush1.msra.mxu0 %v4207
        %4529 = vmatprep.subr.mxu0 0.0
        %4530 = vmatpush1.msra.mxu0 %v4208
        %4531 = vmatprep.subr.mxu0 0.0
        %4532 = vmatpush1.msra.mxu0 %v4209
        %4533 = vmatprep.subr.mxu0 0.0
        %4534 = vmatpush1.msra.mxu0 %v4210
        %4535 = vmatprep.subr.mxu0 0.0
        %4536 = vmatpush1.msra.mxu0 %v4211
        %4537 = vmatprep.subr.mxu0 0.0
        %4538 = vmatpush1.msra.mxu0 %v4212
        %4539 = vmatprep.subr.mxu0 0.0
        %4540 = vmatpush1.msra.mxu0 %v4213
        %4541 = vmatprep.subr.mxu0 0.0
        %4542 = vmatpush1.msra.mxu0 %v4214
        %4543 = vmatprep.subr.mxu0 0.0
        %4544 = vmatpush1.msra.mxu0 %v4215
        %4545 = vmatprep.subr.mxu0 0.0
        %4546 = vmatpush1.msra.mxu0 %v4216
        %4547 = vmatprep.subr.mxu0 0.0
        %4548 = vmatpush1.msra.mxu0 %v4217
        %4549 = vmatprep.subr.mxu0 0.0
        %4550 = vmatpush1.msra.mxu0 %v4218
        %4551 = vmatprep.subr.mxu0 0.0
        %4552 = vmatpush1.msra.mxu0 %v4219
        %4553 = vmatprep.subr.mxu0 0.0
        %4554 = vmatpush1.msra.mxu0 %v4220
        %4555 = vmatprep.subr.mxu0 0.0
        %4556 = vmatpush1.msra.mxu0 %v4221
        %4557 = vmatprep.subr.mxu0 0.0
        %4558 = vmatpush1.msra.mxu0 %v4222
        %4559 = vmatprep.subr.mxu0 0.0
        %4560 = vmatpush1.msra.mxu0 %v4223
        %4561 = vmatprep.subr.mxu0 0.0
        %4562 = vmatpush1.msra.mxu0 %v4224
        %4563 = vmatprep.subr.mxu0 0.0
        %4564 = vmatpush1.msra.mxu0 %v4225
        %4565 = vmatprep.subr.mxu0 0.0
        %4566 = vmatpush1.msra.mxu0 %v4226
        %4567 = vmatprep.subr.mxu0 0.0
        %4568 = vmatpush1.msra.mxu0 %v4227
        %4569 = vmatprep.subr.mxu0 0.0
        %4570 = vmatpush1.msra.mxu0 %v4228
        %4571 = vmatprep.subr.mxu0 0.0
        %4572 = vmatpush1.msra.mxu0 %v4229
        %4573 = vmatprep.mubr.f32.mxu0 %v4104
        %4574 = vmatmul.mubr.f32.gmra.mrb[0].mxu0 %v4103
        %v4575 = vpop.f32.mrb[0].mxu0
        %v4576 = vadd.f32 %v4471, %v4575
        %v4577 = vpop.f32.mrb[0].mxu0
        %4578 = vmatprep.mubr.f32.mxu0 %v4112
        %4579 = vmatmul.mubr.f32.gmra.mrb[0].mxu0 %v4111
        %v4580 = vpop.f32.mrb[0].mxu0
        %v4581 = vadd.f32 %v4476, %v4580
        %v4582 = vpop.f32.mrb[0].mxu0
        %4583 = vmatprep.mubr.f32.mxu0 %v4120
        %4584 = vmatmul.mubr.f32.gmra.mrb[0].mxu0 %v4119
        %v4585 = vpop.f32.mrb[0].mxu0
        %v4586 = vadd.f32 %v4481, %v4585
        %v4587 = vpop.f32.mrb[0].mxu0
        %4588 = vmatprep.mubr.f32.mxu0 %v4128
        %4589 = vmatmul.mubr.f32.gmra.mrb[0].mxu0 %v4127
        %v4590 = vpop.f32.mrb[0].mxu0
        %v4591 = vadd.f32 %v4486, %v4590
        %v4592 = vpop.f32.mrb[0].mxu0
        %4593 = vmatprep.mubr.f32.mxu0 %v4136
        %4594 = vmatmul.mubr.f32.gmra.mrb[0].mxu0 %v4135
        %v4595 = vpop.f32.mrb[0].mxu0
        %v4596 = vadd.f32 %v4491, %v4595
        %v4597 = vpop.f32.mrb[0].mxu0
        %4598 = vmatprep.mubr.f32.mxu0 %v4144
        %4599 = vmatmul.mubr.f32.gmra.mrb[0].mxu0 %v4143
        %v4600 = vpop.f32.mrb[0].mxu0
        %v4601 = vadd.f32 %v4496, %v4600
        %v4602 = vpop.f32.mrb[0].mxu0
        %4603 = vmatprep.mubr.f32.mxu0 %v4152
        %4604 = vmatmul.mubr.f32.gmra.mrb[0].mxu0 %v4151
        %v4605 = vpop.f32.mrb[0].mxu0
        %v4606 = vadd.f32 %v4501, %v4605
        %v4607 = vpop.f32.mrb[0].mxu0
        %4608 = vmatprep.mubr.f32.mxu0 %v4160
        %4609 = vmatmul.mubr.f32.gmra.mrb[0].mxu0 %v4159
        %v4610 = vpop.f32.mrb[0].mxu0
        %v4611 = vadd.f32 %v4506, %v4610
        %v4612 = vpop.f32.mrb[0].mxu0
        %4613 = vdwg.mxu0
        %4614 = vmatprep.subr.mxu0 0.0
        %4615 = vmatpush1.msra.mxu0 %v4230
        %4616 = vmatprep.subr.mxu0 0.0
        %4617 = vmatpush1.msra.mxu0 %v4231
        %4618 = vmatprep.subr.mxu0 0.0
        %4619 = vmatpush1.msra.mxu0 %v4232
        %4620 = vmatprep.subr.mxu0 0.0
        %4621 = vmatpush1.msra.mxu0 %v4233
        %4622 = vmatprep.subr.mxu0 0.0
        %4623 = vmatpush1.msra.mxu0 %v4234
        %4624 = vmatprep.subr.mxu0 0.0
        %4625 = vmatpush1.msra.mxu0 %v4235
        %4626 = vmatprep.subr.mxu0 0.0
        %4627 = vmatpush1.msra.mxu0 %v4236
        %4628 = vmatprep.subr.mxu0 0.0
        %4629 = vmatpush1.msra.mxu0 %v4237
        %4630 = vmatprep.subr.mxu0 0.0
        %4631 = vmatpush1.msra.mxu0 %v4238
        %4632 = vmatprep.subr.mxu0 0.0
        %4633 = vmatpush1.msra.mxu0 %v4239
        %4634 = vmatprep.subr.mxu0 0.0
        %4635 = vmatpush1.msra.mxu0 %v4240
        %4636 = vmatprep.subr.mxu0 0.0
        %4637 = vmatpush1.msra.mxu0 %v4241
        %4638 = vmatprep.subr.mxu0 0.0
        %4639 = vmatpush1.msra.mxu0 %v4242
        %4640 = vmatprep.subr.mxu0 0.0
        %4641 = vmatpush1.msra.mxu0 %v4243
        %4642 = vmatprep.subr.mxu0 0.0
        %4643 = vmatpush1.msra.mxu0 %v4244
        %4644 = vmatprep.subr.mxu0 0.0
        %4645 = vmatpush1.msra.mxu0 %v4245
        %4646 = vmatprep.subr.mxu0 0.0
        %4647 = vmatpush1.msra.mxu0 %v4246
        %4648 = vmatprep.subr.mxu0 0.0
        %4649 = vmatpush1.msra.mxu0 %v4247
        %4650 = vmatprep.subr.mxu0 0.0
        %4651 = vmatpush1.msra.mxu0 %v4248
        %4652 = vmatprep.subr.mxu0 0.0
        %4653 = vmatpush1.msra.mxu0 %v4249
        %4654 = vmatprep.subr.mxu0 0.0
        %4655 = vmatpush1.msra.mxu0 %v4250
        %4656 = vmatprep.subr.mxu0 0.0
        %4657 = vmatpush1.msra.mxu0 %v4251
        %4658 = vmatprep.subr.mxu0 0.0
        %4659 = vmatpush1.msra.mxu0 %v4252
        %4660 = vmatprep.subr.mxu0 0.0
        %4661 = vmatpush1.msra.mxu0 %v4253
        %4662 = vmatprep.subr.mxu0 0.0
        %4663 = vmatpush1.msra.mxu0 %v4254
        %4664 = vmatprep.subr.mxu0 0.0
        %4665 = vmatpush1.msra.mxu0 %v4255
        %4666 = vmatprep.subr.mxu0 0.0
        %4667 = vmatpush1.msra.mxu0 %v4256
        %4668 = vmatprep.subr.mxu0 0.0
        %4669 = vmatpush1.msra.mxu0 %v4257
        %4670 = vmatprep.subr.mxu0 0.0
        %4671 = vmatpush1.msra.mxu0 %v4258
        %4672 = vmatprep.subr.mxu0 0.0
        %4673 = vmatpush1.msra.mxu0 %v4259
        %4674 = vmatprep.subr.mxu0 0.0
        %4675 = vmatpush1.msra.mxu0 %v4260
        %4676 = vmatprep.subr.mxu0 0.0
        %4677 = vmatpush1.msra.mxu0 %v4261
        %4678 = vmatprep.mubr.f32.mxu0 %v4106
        %4679 = vmatmul.mubr.f32.gmra.mrb[0].mxu0 %v4105
        %v4680 = vpop.f32.mrb[0].mxu0
        %v4681 = vadd.f32 %v4576, %v4680
        %v4682 = vpop.f32.mrb[0].mxu0
        %4683 = vmatprep.mubr.f32.mxu0 %v4114
        %4684 = vmatmul.mubr.f32.gmra.mrb[0].mxu0 %v4113
        %v4685 = vpop.f32.mrb[0].mxu0
        %v4686 = vadd.f32 %v4581, %v4685
        %v4687 = vpop.f32.mrb[0].mxu0
        %4688 = vmatprep.mubr.f32.mxu0 %v4122
        %4689 = vmatmul.mubr.f32.gmra.mrb[0].mxu0 %v4121
        %v4690 = vpop.f32.mrb[0].mxu0
        %v4691 = vadd.f32 %v4586, %v4690
        %v4692 = vpop.f32.mrb[0].mxu0
        %4693 = vmatprep.mubr.f32.mxu0 %v4130
        %4694 = vmatmul.mubr.f32.gmra.mrb[0].mxu0 %v4129
        %v4695 = vpop.f32.mrb[0].mxu0
        %v4696 = vadd.f32 %v4591, %v4695
        %v4697 = vpop.f32.mrb[0].mxu0
        %4698 = vmatprep.mubr.f32.mxu0 %v4138
        %4699 = vmatmul.mubr.f32.gmra.mrb[0].mxu0 %v4137
        %v4700 = vpop.f32.mrb[0].mxu0
        %v4701 = vadd.f32 %v4596, %v4700
        %v4702 = vpop.f32.mrb[0].mxu0
        %4703 = vmatprep.mubr.f32.mxu0 %v4146
        %4704 = vmatmul.mubr.f32.gmra.mrb[0].mxu0 %v4145
        %v4705 = vpop.f32.mrb[0].mxu0
        %v4706 = vadd.f32 %v4601, %v4705
        %v4707 = vpop.f32.mrb[0].mxu0
        %4708 = vmatprep.mubr.f32.mxu0 %v4154
        %4709 = vmatmul.mubr.f32.gmra.mrb[0].mxu0 %v4153
        %v4710 = vpop.f32.mrb[0].mxu0
        %v4711 = vadd.f32 %v4606, %v4710
        %v4712 = vpop.f32.mrb[0].mxu0
        %4713 = vmatprep.mubr.f32.mxu0 %v4162
        %4714 = vmatmul.mubr.f32.gmra.mrb[0].mxu0 %v4161
        %v4715 = vpop.f32.mrb[0].mxu0
        %v4716 = vadd.f32 %v4611, %v4715
        %v4717 = vpop.f32.mrb[0].mxu0
        %4718 = vdwg.mxu0
        %4719 = vmatprep.subr.mxu0 0.0
        %4720 = vmatpush1.msra.mxu0 %v4262
        %4721 = vmatprep.subr.mxu0 0.0
        %4722 = vmatpush1.msra.mxu0 %v4263
        %4723 = vmatprep.subr.mxu0 0.0
        %4724 = vmatpush1.msra.mxu0 %v4264
        %4725 = vmatprep.subr.mxu0 0.0
        %4726 = vmatpush1.msra.mxu0 %v4265
        %4727 = vmatprep.subr.mxu0 0.0
        %4728 = vmatpush1.msra.mxu0 %v4266
        %4729 = vmatprep.subr.mxu0 0.0
        %4730 = vmatpush1.msra.mxu0 %v4267
        %4731 = vmatprep.subr.mxu0 0.0
        %4732 = vmatpush1.msra.mxu0 %v4268
        %4733 = vmatprep.subr.mxu0 0.0
        %4734 = vmatpush1.msra.mxu0 %v4269
        %4735 = vmatprep.subr.mxu0 0.0
        %4736 = vmatpush1.msra.mxu0 %v4270
        %4737 = vmatprep.subr.mxu0 0.0
        %4738 = vmatpush1.msra.mxu0 %v4271
        %4739 = vmatprep.subr.mxu0 0.0
        %4740 = vmatpush1.msra.mxu0 %v4272
        %4741 = vmatprep.subr.mxu0 0.0
        %4742 = vmatpush1.msra.mxu0 %v4273
        %4743 = vmatprep.subr.mxu0 0.0
        %4744 = vmatpush1.msra.mxu0 %v4274
        %4745 = vmatprep.subr.mxu0 0.0
        %4746 = vmatpush1.msra.mxu0 %v4275
        %4747 = vmatprep.subr.mxu0 0.0
        %4748 = vmatpush1.msra.mxu0 %v4276
        %4749 = vmatprep.subr.mxu0 0.0
        %4750 = vmatpush1.msra.mxu0 %v4277
        %4751 = vmatprep.subr.mxu0 0.0
        %4752 = vmatpush1.msra.mxu0 %v4278
        %4753 = vmatprep.subr.mxu0 0.0
        %4754 = vmatpush1.msra.mxu0 %v4279
        %4755 = vmatprep.subr.mxu0 0.0
        %4756 = vmatpush1.msra.mxu0 %v4280
        %4757 = vmatprep.subr.mxu0 0.0
        %4758 = vmatpush1.msra.mxu0 %v4281
        %4759 = vmatprep.subr.mxu0 0.0
        %4760 = vmatpush1.msra.mxu0 %v4282
        %4761 = vmatprep.subr.mxu0 0.0
        %4762 = vmatpush1.msra.mxu0 %v4283
        %4763 = vmatprep.subr.mxu0 0.0
        %4764 = vmatpush1.msra.mxu0 %v4284
        %4765 = vmatprep.subr.mxu0 0.0
        %4766 = vmatpush1.msra.mxu0 %v4285
        %4767 = vmatprep.subr.mxu0 0.0
        %4768 = vmatpush1.msra.mxu0 %v4286
        %4769 = vmatprep.subr.mxu0 0.0
        %4770 = vmatpush1.msra.mxu0 %v4287
        %4771 = vmatprep.subr.mxu0 0.0
        %4772 = vmatpush1.msra.mxu0 %v4288
        %4773 = vmatprep.subr.mxu0 0.0
        %4774 = vmatpush1.msra.mxu0 %v4289
        %4775 = vmatprep.subr.mxu0 0.0
        %4776 = vmatpush1.msra.mxu0 %v4290
        %4777 = vmatprep.subr.mxu0 0.0
        %4778 = vmatpush1.msra.mxu0 %v4291
        %4779 = vmatprep.subr.mxu0 0.0
        %4780 = vmatpush1.msra.mxu0 %v4292
        %4781 = vmatprep.subr.mxu0 0.0
        %4782 = vmatpush1.msra.mxu0 %v4293
        %4783 = vmatprep.mubr.f32.mxu0 %v4108
        %4784 = vmatmul.mubr.f32.gmra.mrb[0].mxu0 %v4107
        %v4785 = vpop.f32.mrb[0].mxu0
        %v4786 = vadd.f32 %v4681, %v4785
        %v4787 = vpop.f32.mrb[0].mxu0
        %4788 = vmatprep.mubr.f32.mxu0 %v4116
        %4789 = vmatmul.mubr.f32.gmra.mrb[0].mxu0 %v4115
        %v4790 = vpop.f32.mrb[0].mxu0
        %v4791 = vadd.f32 %v4686, %v4790
        %v4792 = vpop.f32.mrb[0].mxu0
        %4793 = vmatprep.mubr.f32.mxu0 %v4124
        %4794 = vmatmul.mubr.f32.gmra.mrb[0].mxu0 %v4123
        %v4795 = vpop.f32.mrb[0].mxu0
        %v4796 = vadd.f32 %v4691, %v4795
        %v4797 = vpop.f32.mrb[0].mxu0
        %4798 = vmatprep.mubr.f32.mxu0 %v4132
        %4799 = vmatmul.mubr.f32.gmra.mrb[0].mxu0 %v4131
        %v4800 = vpop.f32.mrb[0].mxu0
        %v4801 = vadd.f32 %v4696, %v4800
        %v4802 = vpop.f32.mrb[0].mxu0
        %4803 = vmatprep.mubr.f32.mxu0 %v4140
        %4804 = vmatmul.mubr.f32.gmra.mrb[0].mxu0 %v4139
        %v4805 = vpop.f32.mrb[0].mxu0
        %v4806 = vadd.f32 %v4701, %v4805
        %v4807 = vpop.f32.mrb[0].mxu0
        %4808 = vmatprep.mubr.f32.mxu0 %v4148
        %4809 = vmatmul.mubr.f32.gmra.mrb[0].mxu0 %v4147
        %v4810 = vpop.f32.mrb[0].mxu0
        %v4811 = vadd.f32 %v4706, %v4810
        %v4812 = vpop.f32.mrb[0].mxu0
        %4813 = vmatprep.mubr.f32.mxu0 %v4156
        %4814 = vmatmul.mubr.f32.gmra.mrb[0].mxu0 %v4155
        %v4815 = vpop.f32.mrb[0].mxu0
        %v4816 = vadd.f32 %v4711, %v4815
        %v4817 = vpop.f32.mrb[0].mxu0
        %4818 = vmatprep.mubr.f32.mxu0 %v4164
        %4819 = vmatmul.mubr.f32.gmra.mrb[0].mxu0 %v4163
        %v4820 = vpop.f32.mrb[0].mxu0
        %v4821 = vadd.f32 %v4716, %v4820
        %v4822 = vpop.f32.mrb[0].mxu0
        %4823 = vdwg.mxu0
        %s4824 = scalar_lea.vmem %s10, 1
        %v4825 = vld [vmem:[%s4824] sm:$0x1]
        %v4827 = vlaneseq
        %v4828 = vshrl.u32 %v4827, 7
        %v4829 = vsub.s32 0, %v4828
        %v4830 = vrot.slane %v4825, %v4829
        %4832 = vmatprep.subr.mxu0 0.0
        %4833 = vmatpush1.msra.mxu0 %v4786
        %4834 = vmatprep.subr.mxu0 0.0
        %4835 = vmatpush1.msra.mxu0 %v4791
        %4836 = vmatprep.subr.mxu0 0.0
        %4837 = vmatpush1.msra.mxu0 %v4796
        %4838 = vmatprep.subr.mxu0 0.0
        %4839 = vmatpush1.msra.mxu0 %v4801
        %4840 = vmatprep.subr.mxu0 0.0
        %4841 = vmatpush1.msra.mxu0 %v4806
        %4842 = vmatprep.subr.mxu0 0.0
        %4843 = vmatpush1.msra.mxu0 %v4811
        %4844 = vmatprep.subr.mxu0 0.0
        %4845 = vmatpush1.msra.mxu0 %v4816
        %4846 = vmatprep.subr.mxu0 0.0
        %4847 = vmatpush1.msra.mxu0 %v4821
        %4848 = vmatprep.subr.mxu0 0.0
        %4849 = vmatpush1.msra.mxu0 0.0
        %4850 = vmatprep.subr.mxu0 0.0
        %4851 = vmatpush1.msra.mxu0 0.0
        %4852 = vmatprep.subr.mxu0 0.0
        %4853 = vmatpush1.msra.mxu0 0.0
        %4854 = vmatprep.subr.mxu0 0.0
        %4855 = vmatpush1.msra.mxu0 0.0
        %4856 = vmatprep.subr.mxu0 0.0
        %4857 = vmatpush1.msra.mxu0 0.0
        %4858 = vmatprep.subr.mxu0 0.0
        %4859 = vmatpush1.msra.mxu0 0.0
        %4860 = vmatprep.subr.mxu0 0.0
        %4861 = vmatpush1.msra.mxu0 0.0
        %4862 = vmatprep.subr.mxu0 0.0
        %4863 = vmatpush1.msra.mxu0 0.0
        %4864 = vmatprep.subr.mxu0 0.0
        %4865 = vmatpush1.msra.mxu0 0.0
        %4866 = vmatprep.subr.mxu0 0.0
        %4867 = vmatpush1.msra.mxu0 0.0
        %4868 = vmatprep.subr.mxu0 0.0
        %4869 = vmatpush1.msra.mxu0 0.0
        %4870 = vmatprep.subr.mxu0 0.0
        %4871 = vmatpush1.msra.mxu0 0.0
        %4872 = vmatprep.subr.mxu0 0.0
        %4873 = vmatpush1.msra.mxu0 0.0
        %4874 = vmatprep.subr.mxu0 0.0
        %4875 = vmatpush1.msra.mxu0 0.0
        %4876 = vmatprep.subr.mxu0 0.0
        %4877 = vmatpush1.msra.mxu0 0.0
        %4878 = vmatprep.subr.mxu0 0.0
        %4879 = vmatpush1.msra.mxu0 0.0
        %4880 = vmatprep.subr.mxu0 0.0
        %4881 = vmatpush1.msra.mxu0 0.0
        %4882 = vmatprep.subr.mxu0 0.0
        %4883 = vmatpush1.msra.mxu0 0.0
        %4884 = vmatprep.subr.mxu0 0.0
        %4885 = vmatpush1.msra.mxu0 0.0
        %4886 = vmatprep.subr.mxu0 0.0
        %4887 = vmatpush1.msra.mxu0 0.0
        %4888 = vmatprep.subr.mxu0 0.0
        %4889 = vmatpush1.msra.mxu0 0.0
        %4890 = vmatprep.subr.mxu0 0.0
        %4891 = vmatpush1.msra.mxu0 0.0
        %4892 = vmatprep.subr.mxu0 0.0
        %4893 = vmatpush1.msra.mxu0 0.0
        %4894 = vmatprep.subr.mxu0 0.0
        %4895 = vmatpush1.msra.mxu0 0.0
        %4896 = vmatprep.mubr.f32.mxu0 0.0
        %4897 = vmatmul.mubr.f32.gmra.mrb[0].mxu0 %v2739
        %v4898 = vpop.f32.mrb[0].mxu0
        %v4899 = vadd.f32 %v4830, %v4898
        %v4900 = vpop.f32.mrb[0].mxu0
        %4901 = vmatprep.mubr.f32.mxu0 0.0
        %4902 = vmatmul.mubr.f32.gmra.mrb[0].mxu0 %v2742
        %v4903 = vpop.f32.mrb[0].mxu0
        %v4904 = vadd.f32 %v4830, %v4903
        %v4905 = vpop.f32.mrb[0].mxu0
        %4906 = vmatprep.mubr.f32.mxu0 0.0
        %4907 = vmatmul.mubr.f32.gmra.mrb[0].mxu0 %v2745
        %v4908 = vpop.f32.mrb[0].mxu0
        %v4909 = vadd.f32 %v4830, %v4908
        %v4910 = vpop.f32.mrb[0].mxu0
        %4911 = vmatprep.mubr.f32.mxu0 0.0
        %4912 = vmatmul.mubr.f32.gmra.mrb[0].mxu0 %v2748
        %v4913 = vpop.f32.mrb[0].mxu0
        %v4914 = vadd.f32 %v4830, %v4913
        %v4915 = vpop.f32.mrb[0].mxu0
        %4916 = vdwg.mxu0
        %v4917 = vsel %vm790, %v4899, 0.0
        %4918 = vadd.xlane.f32.xlu0 %v4917
        %v4919 = vpop.xlane.xlu0 %4918
        %v4920 = vsel %vm790, %v4904, 0.0
        %4921 = vadd.xlane.f32.xlu0 %v4920
        %v4922 = vpop.xlane.xlu0 %4921
        %v4923 = vsel %vm790, %v4909, 0.0
        %4924 = vadd.xlane.f32.xlu0 %v4923
        %v4925 = vpop.xlane.xlu0 %4924
        %v4926 = vsel %vm790, %v4914, 0.0
        %4927 = vadd.xlane.f32.xlu0 %v4926
        %v4928 = vpop.xlane.xlu0 %4927
        %v4929 = vmul.f32 %v4919, %v2847
        %v4930 = vmul.f32 %v4922, %v2847
        %v4931 = vmul.f32 %v4925, %v2847
        %v4932 = vmul.f32 %v4928, %v2847
        %v4933 = vsub.f32 %v4899, %v4929
        %v4934 = vsub.f32 %v4904, %v4930
        %v4935 = vsub.f32 %v4909, %v4931
        %v4936 = vsub.f32 %v4914, %v4932
        %v4937 = vmul.f32 %v4933, %v4933
        %v4938 = vmul.f32 %v4934, %v4934
        %v4939 = vmul.f32 %v4935, %v4935
        %v4940 = vmul.f32 %v4936, %v4936
        %v4941 = vsel %vm790, %v4937, 0.0
        %4942 = vadd.xlane.f32.xlu0 %v4941
        %v4943 = vpop.xlane.xlu0 %4942
        %v4944 = vsel %vm790, %v4938, 0.0
        %4945 = vadd.xlane.f32.xlu0 %v4944
        %v4946 = vpop.xlane.xlu0 %4945
        %v4947 = vsel %vm790, %v4939, 0.0
        %4948 = vadd.xlane.f32.xlu0 %v4947
        %v4949 = vpop.xlane.xlu0 %4948
        %v4950 = vsel %vm790, %v4940, 0.0
        %4951 = vadd.xlane.f32.xlu0 %v4950
        %v4952 = vpop.xlane.xlu0 %4951
        %v4953 = vmul.f32 %v4943, %v2847
        %v4954 = vmul.f32 %v4946, %v2847
        %v4955 = vmul.f32 %v4949, %v2847
        %v4956 = vmul.f32 %v4952, %v2847
        %v4957 = vadd.f32 %v4953, 1e-05
        %v4958 = vadd.f32 %v4954, 1e-05
        %v4959 = vadd.f32 %v4955, 1e-05
        %v4960 = vadd.f32 %v4956, 1e-05
        %v4961 = vrsqrt.pop %v4957
        %v4962 = vrsqrt.pop %v4958
        %v4963 = vrsqrt.pop %v4959
        %v4964 = vrsqrt.pop %v4960
        %v4965 = vmul.f32 %v4933, %v4961
        %v4966 = vmul.f32 %v4934, %v4962
        %v4967 = vmul.f32 %v4935, %v4963
        %v4968 = vmul.f32 %v4936, %v4964
        %s4969 = scalar_lea.vmem %s11, 1
        %v4970 = vld [vmem:[%s4969] sm:$0x1]
        %v4972 = vlaneseq
        %v4973 = vshrl.u32 %v4972, 7
        %v4974 = vsub.s32 0, %v4973
        %v4975 = vrot.slane %v4970, %v4974
        %v4977 = vmul.f32 %v4965, %v4975
        %v4978 = vmul.f32 %v4966, %v4975
        %v4979 = vmul.f32 %v4967, %v4975
        %v4980 = vmul.f32 %v4968, %v4975
        %s4981 = scalar_lea.vmem %s12, 1
        %v4982 = vld [vmem:[%s4981] sm:$0x1]
        %v4984 = vlaneseq
        %v4985 = vshrl.u32 %v4984, 7
        %v4986 = vsub.s32 0, %v4985
        %v4987 = vrot.slane %v4982, %v4986
        %v4989 = vadd.f32 %v4977, %v4987
        %v4990 = vadd.f32 %v4978, %v4987
        %v4991 = vadd.f32 %v4979, %v4987
        %v4992 = vadd.f32 %v4980, %v4987
        %v4993 = vmax.f32 %v4989, 0.0
        %v4994 = vmax.f32 %v4990, 0.0
        %v4995 = vmax.f32 %v4991, 0.0
        %v4996 = vmax.f32 %v4992, 0.0
        %v4997 = vadd.f32 %v4993, %v2914
        %v4998 = vadd.f32 %v4994, %v2915
        %v4999 = vadd.f32 %v4995, %v2916
        %v5000 = vadd.f32 %v4996, %v2917
        %5001 = vst.msk [vmem:[%s532] sm:$0xff] %vm790, %v4997
        %5002 = vst.msk [vmem:[%s532 + $0x8] sm:$0xff] %vm790, %v4998
        %5003 = vst.msk [vmem:[%s532 + $0x10] sm:$0xff] %vm790, %v4999
        %5004 = vst.msk [vmem:[%s532 + $0x18] sm:$0xff] %vm790, %v5000
        %s5005 = sand.u32 %s372, 1
        %s5006 = scalar_lea.sflag [#allocation3], %s5005
        %s5007 = sand.u32 %s372, 1
        %s5008 = smul.addr %s5007, 32
        %s5009 = scalar_lea.vmem [#allocation2], %s5008
        // Predicated region
        $region81: #{tpu_custom_call.1} parent=79 // pred_check
          %p5010 = pneg %p382
        $region82: #{tpu_custom_call.1} parent=79 // pred_check_branch
          %5012 = sbr.rel (%p5010) target = $region84
        $region83: #{tpu_custom_call.1} parent=79 // pred_region
          %s5014 = ssub.s32 512, 512
          %5015 = vsyncadd %s5006, %s5014
          %s5016 = smul.addr %s29, 4
          %s5017 = smul.addr %s5016, 128
          %s5018 = scalar_lea.hbm %s15, %s5017
          %s5019 = sshll.u32 %s5009, 4
          %s5020 = int_to_ptr.vmem [resolvable:$true] %s5019
          %5025 = dma.vmem_to_hbm [thread:$0]  %s5020, 512, %s5018, %s5006, 128, 128, 8
        $region84: #{tpu_custom_call.1} parent=79 // pred_fallthru
          _
      $region80: #{tpu_custom_call.1} parent=5 // pred_fallthru
        _
      %p5026 = scmp.le.s32.totalorder 2, %s24
      // Predicated region
      $region85: #{tpu_custom_call.1} parent=5 // pred_check
        %p5027 = pneg %p5026
      $region86: #{tpu_custom_call.1} parent=5 // pred_check_branch
        %5029 = sbr.rel (%p5027) target = $region88
      $region87: #{tpu_custom_call.1} parent=5 // pred_region
        %s5030 = ssub.s32 %s24, 2
        // Predicated region
        $region89: #{tpu_custom_call.1} parent=87 // pred_check
          %p5031 = pneg %p388
        $region90: #{tpu_custom_call.1} parent=87 // pred_check_branch
          %5033 = sbr.rel (%p5031) target = $region92
        $region91: #{tpu_custom_call.1} parent=87 // pred_region
          %s5034 = sand.u32 %s373, 1
          %s5035 = scalar_lea.sflag [#allocation3], %s5034
          %s5036 = sand.u32 %s373, 1
          %s5037 = smul.addr %s5036, 32
          %s5038 = scalar_lea.vmem [#allocation2], %s5037
          %5039 = dma.done %s5035, 512
        $region92: #{tpu_custom_call.1} parent=87 // pred_fallthru
          _
      $region88: #{tpu_custom_call.1} parent=5 // pred_fallthru
        _
    $region6: #{tpu_custom_call.1} parent=1 // loop_footer
      %s28 = sadd.s32 1, %s24
    $region7: #{tpu_custom_call.1} parent=1 // loop_footer_branch
      %23 = sbr.rel target = $region3
    $region8: #{tpu_custom_call.1} parent=1 // loop_exit
      _
    %5040 = vsyncpa [#allocation3], 1
    %s5041 = scalar_lea.sflag [#allocation3], 1
    %5042 = vsyncpa %s5041, 1

</llo_original>
